<compile_context>
chip_gen: v7x
topology: tpu7x:2x2x1
jax: 0.10.0
libtpu: 0.0.40
codegen_flags: <defaults>
</compile_context>

<pallas_src>
import math

import jax
import jax.numpy as jnp
from jax.experimental import pallas as pl
from jax.experimental.pallas import tpu as pltpu


def _make_mha_kernel(WB, T, D, H):
    """One grid step == WB windows. Full MultiheadAttention for that block."""
    hd = D // H
    scale = 1.0 / math.sqrt(hd)

    def kernel(feat_ref, pos_ref, bias_ref,
               wqk_ref, bqk_ref, wv_ref, bv_ref, wo_ref, bo_ref,
               out_ref):
        x3 = feat_ref[...]                       # (WB, T, D)  window features
        p3 = pos_ref[...]                        # (WB, T, D)  positional embedding
        bias = bias_ref[...]                     # (WB, 1, T)  0 / -1e30 key bias

        # q = k = feat + pos ; v = feat  (cross_att=False path)
        x2 = x3.reshape(WB * T, D)
        qk2 = (x3 + p3).reshape(WB * T, D)

        # fused, pre-transposed in_proj: x @ W^T == x @ w_t
        QK = jnp.dot(qk2, wqk_ref[...],
                     preferred_element_type=jnp.float32) + bqk_ref[...]   # (WB*T, 2D)
        V = jnp.dot(x2, wv_ref[...],
                    preferred_element_type=jnp.float32) + bv_ref[...]     # (WB*T, D)

        Q3 = (QK[:, :D] * scale).reshape(WB, T, D)
        K3 = QK[:, D:].reshape(WB, T, D)
        V3 = V.reshape(WB, T, D)

        # Attention, batched over the WB windows of this block.  Heads are a
        # short static loop (H=4, hd=8): the kernel is HBM-bound, so the few
        # lane-slices/concat are negligible and we avoid risky 4-D relayouts.
        ctx_parts = []
        for h in range(H):
            sl = slice(h * hd, (h + 1) * hd)
            s = jnp.einsum('bqd,bkd->bqk', Q3[..., sl], K3[..., sl],
                           preferred_element_type=jnp.float32)            # (WB, T, T)
            a = jax.nn.softmax(s + bias, axis=-1)                         # mask padded keys
            ctx_parts.append(jnp.einsum('bqk,bkd->bqd', a, V3[..., sl],
                                        preferred_element_type=jnp.float32))
        ctx = jnp.concatenate(ctx_parts, axis=-1).reshape(WB * T, D)      # (WB*T, D)

        # pre-transposed out_proj
        out = jnp.dot(ctx, wo_ref[...],
                      preferred_element_type=jnp.float32) + bo_ref[...]
        out_ref[...] = out.reshape(WB, T, D).astype(out_ref.dtype)

    return kernel


def window_mha(feat_3d, pos_3d, mask_bias_3d, params, nhead, window_block=128):
    """feat_3d/pos_3d: (W, T, D); mask_bias_3d: (W, 1, T); returns (W, T, D)."""
    W, T, D = feat_3d.shape
    WB = min(window_block, W)
    # pad W up to a multiple of WB; padded windows are never gathered back.
    Wp = ((W + WB - 1) // WB) * WB
    if Wp != W:
        pad3 = ((0, Wp - W), (0, 0), (0, 0))
        feat_3d = jnp.pad(feat_3d, pad3)
        pos_3d = jnp.pad(pos_3d, pad3)
        mask_bias_3d = jnp.pad(mask_bias_3d, pad3)

    wqk_t, bqk, wv_t, bv, wo_t, bo = params
    kernel = _make_mha_kernel(WB, T, D, nhead)

    win_spec = pl.BlockSpec((WB, T, D), lambda w: (w, 0, 0))
    bias_spec = pl.BlockSpec((WB, 1, T), lambda w: (w, 0, 0))

    def const_spec(arr):
        return pl.BlockSpec(arr.shape, lambda w: (0, 0))

    out = pl.pallas_call(
        kernel,
        out_shape=jax.ShapeDtypeStruct((Wp, T, D), feat_3d.dtype),
        grid=(Wp // WB,),
        in_specs=[win_spec, win_spec, bias_spec,
                  const_spec(wqk_t), const_spec(bqk),
                  const_spec(wv_t), const_spec(bv),
                  const_spec(wo_t), const_spec(bo)],
        out_specs=win_spec,
        # NOTE: for very large WB (>= ~1024 windows / block) raise
        # vmem_limit_bytes; defaults are ample at these block sizes.
        compiler_params=pltpu.CompilerParams(dimension_semantics=("parallel",)),
    )(feat_3d, pos_3d, mask_bias_3d, wqk_t, bqk, wv_t, bv, wo_t, bo)
    return out[:W]


def window_attention_forward(feat_flat, pos_3d, key_padding_mask,
                             win_idx, tok_idx, params, nhead, window_block=128):
    """Full WindowAttention.forward (cross_att=False, single window-size name).

    feat_flat:        (N, D)    flat voxel features
    pos_3d:           (W, T, D) positional embedding per windowed slot
    key_padding_mask: (W, T)    bool, True = padded slot
    win_idx/tok_idx:  (N,)      flat2window scatter indices (ind_dict)
    """
    W, T, D = pos_3d.shape
    # flat2window_v2 (glue: scatter flat tokens into padded window layout)
    feat_3d = jnp.zeros((W, T, D), feat_flat.dtype).at[win_idx, tok_idx].set(feat_flat)
    mask_bias = jnp.where(key_padding_mask, jnp.float32(-1e30),
                          jnp.float32(0.0)).reshape(W, 1, T)
    out_3d = window_mha(feat_3d, pos_3d, mask_bias, params, nhead,
                        window_block=window_block)
    # window2flat_v2 (glue: gather valid tokens back to flat layout)
    return out_3d[win_idx, tok_idx]


def prepare_params(in_proj_w, in_proj_b, out_w, out_b):
    """Fuse / pre-transpose nn.MultiheadAttention weights for the kernel."""
    D = out_w.shape[0]
    wqk_t = in_proj_w[:2 * D].T               # (D, 2D)   [Wq^T | Wk^T]
    wv_t = in_proj_w[2 * D:].T                # (D, D)
    wo_t = out_w.T                            # (D, D)
    bqk = in_proj_b[:2 * D].reshape(1, 2 * D)
    bv = in_proj_b[2 * D:].reshape(1, D)
    bo = out_b.reshape(1, D)
    return (wqk_t, bqk, wv_t, bv, wo_t, bo)


def reference_mha(feat_3d, pos_3d, key_padding_mask, raw_params, nhead):
    """Pure-JAX reference of nn.MultiheadAttention with q=k=feat+pos, v=feat."""
    in_proj_w, in_proj_b, out_w, out_b = raw_params
    W, T, D = feat_3d.shape
    hd = D // nhead
    q_in = feat_3d + pos_3d
    Q = jnp.einsum('wtd,ed->wte', q_in, in_proj_w[:D]) + in_proj_b[:D]
    K = jnp.einsum('wtd,ed->wte', q_in, in_proj_w[D:2 * D]) + in_proj_b[D:2 * D]
    V = jnp.einsum('wtd,ed->wte', feat_3d, in_proj_w[2 * D:]) + in_proj_b[2 * D:]
    Q = Q.reshape(W, T, nhead, hd)
    K = K.reshape(W, T, nhead, hd)
    V = V.reshape(W, T, nhead, hd)
    s = jnp.einsum('wqhd,wkhd->whqk', Q, K) / math.sqrt(hd)
    bias = jnp.where(key_padding_mask, -1e30, 0.0)[:, None, None, :]
    a = jax.nn.softmax(s + bias, axis=-1)
    ctx = jnp.einsum('whqk,wkhd->wqhd', a, V).reshape(W, T, D)
    return jnp.einsum('wtd,ed->wte', ctx, out_w) + out_b


if __name__ == "__main__":
    d_model = 32
    nhead = 4
    T = 8                                    # max tokens per window
    counts = [7, 5, 8, 3, 6, 2, 8, 4, 1, 6]  # valid tokens per window
    W = len(counts)
    N = sum(counts)

    key = jax.random.PRNGKey(0)
    k_feat, k_pos, k1, k2, k3, k4 = jax.random.split(key, 6)

    feat_flat = jax.random.normal(k_feat, (N, d_model), jnp.float32)
    pos_3d = jax.random.normal(k_pos, (W, T, d_model), jnp.float32)

    # synthetic nn.MultiheadAttention weights
    in_proj_w = 0.1 * jax.random.normal(k1, (3 * d_model, d_model), jnp.float32)
    in_proj_b = 0.1 * jax.random.normal(k2, (3 * d_model,), jnp.float32)
    out_w = 0.1 * jax.random.normal(k3, (d_model, d_model), jnp.float32)
    out_b = 0.1 * jax.random.normal(k4, (d_model,), jnp.float32)
    params = prepare_params(in_proj_w, in_proj_b, out_w, out_b)

    # ind_dict equivalent: window / slot index of each flat token
    win_idx = jnp.asarray(sum(([w] * c for w, c in enumerate(counts)), []),
                          dtype=jnp.int32)
    tok_idx = jnp.asarray(sum((list(range(c)) for c in counts), []),
                          dtype=jnp.int32)
    # key_padding_mask: True for padded slots
    slot = jnp.arange(T)[None, :]
    key_padding_mask = slot >= jnp.asarray(counts, jnp.int32)[:, None]

    out = window_attention_forward(feat_flat, pos_3d, key_padding_mask,
                                   win_idx, tok_idx, params, nhead,
                                   window_block=4)   # W=10 -> padded to 12, grid=3
    jax.block_until_ready(out)

    # correctness check against pure-JAX reference (same valid tokens only)
    feat_3d = jnp.zeros((W, T, d_model), jnp.float32).at[win_idx, tok_idx].set(feat_flat)
    ref = reference_mha(feat_3d, pos_3d, key_padding_mask,
                        (in_proj_w, in_proj_b, out_w, out_b), nhead)[win_idx, tok_idx]

    assert out.shape == (N, d_model), out.shape
    assert bool(jnp.all(jnp.isfinite(out)))
    err = float(jnp.max(jnp.abs(out - ref)))
    assert err < 5e-2, f"max abs error vs reference: {err}"
    print("KERNEL_OK")
</pallas_src>

<mosaic_0001>
module attributes {stable_mosaic.version = 11 : i64} {
  func.func @kernel(%arg0: i32, %arg1: memref<4x8x32xf32, #tpu.memory_space<vmem>>, %arg2: memref<4x8x32xf32, #tpu.memory_space<vmem>>, %arg3: memref<4x1x8xf32, #tpu.memory_space<vmem>>, %arg4: memref<32x64xf32, #tpu.memory_space<vmem>>, %arg5: memref<1x64xf32, #tpu.memory_space<vmem>>, %arg6: memref<32x32xf32, #tpu.memory_space<vmem>>, %arg7: memref<1x32xf32, #tpu.memory_space<vmem>>, %arg8: memref<32x32xf32, #tpu.memory_space<vmem>>, %arg9: memref<1x32xf32, #tpu.memory_space<vmem>>, %arg10: memref<4x8x32xf32, #tpu.memory_space<vmem>>) attributes {dimension_semantics = [#tpu.dimension_semantics<parallel>], iteration_bounds = array<i64: 3>, scalar_prefetch = 0 : i64, scratch_operands = 0 : i64, tpu.core_type = #tpu.core_type<tc>, window_params = [{transform_indices = @transform_0, window_bounds = array<i64: 4, 8, 32>}, {transform_indices = @transform_1, window_bounds = array<i64: 4, 8, 32>}, {transform_indices = @transform_2, window_bounds = array<i64: 4, 1, 8>}, {pipeline_mode = #tpu.pipeline_mode<synchronous>, transform_indices = @transform_3, window_bounds = array<i64: 32, 64>}, {pipeline_mode = #tpu.pipeline_mode<synchronous>, transform_indices = @transform_4, window_bounds = array<i64: 1, 64>}, {pipeline_mode = #tpu.pipeline_mode<synchronous>, transform_indices = @transform_5, window_bounds = array<i64: 32, 32>}, {pipeline_mode = #tpu.pipeline_mode<synchronous>, transform_indices = @transform_6, window_bounds = array<i64: 1, 32>}, {pipeline_mode = #tpu.pipeline_mode<synchronous>, transform_indices = @transform_7, window_bounds = array<i64: 32, 32>}, {pipeline_mode = #tpu.pipeline_mode<synchronous>, transform_indices = @transform_8, window_bounds = array<i64: 1, 32>}, {transform_indices = @transform_9, window_bounds = array<i64: 4, 8, 32>}]} {
    %c0 = arith.constant 0 : index
    %c0_0 = arith.constant 0 : index
    %c0_1 = arith.constant 0 : index
    %0 = vector.load %arg1[%c0, %c0_0, %c0_1] : memref<4x8x32xf32, #tpu.memory_space<vmem>>, vector<4x8x32xf32>
    %c0_2 = arith.constant 0 : index
    %c0_3 = arith.constant 0 : index
    %c0_4 = arith.constant 0 : index
    %1 = vector.load %arg2[%c0_2, %c0_3, %c0_4] : memref<4x8x32xf32, #tpu.memory_space<vmem>>, vector<4x8x32xf32>
    %c0_5 = arith.constant 0 : index
    %c0_6 = arith.constant 0 : index
    %c0_7 = arith.constant 0 : index
    %2 = vector.load %arg3[%c0_5, %c0_6, %c0_7] : memref<4x1x8xf32, #tpu.memory_space<vmem>>, vector<4x1x8xf32>
    %3 = vector.shape_cast %0 : vector<4x8x32xf32> to vector<32x32xf32>
    %4 = arith.addf %0, %1 : vector<4x8x32xf32>
    %5 = vector.shape_cast %4 : vector<4x8x32xf32> to vector<32x32xf32>
    %c0_8 = arith.constant 0 : index
    %c0_9 = arith.constant 0 : index
    %6 = vector.load %arg4[%c0_8, %c0_9] : memref<32x64xf32, #tpu.memory_space<vmem>>, vector<32x64xf32>
    %cst = arith.constant dense<0.000000e+00> : vector<32x64xf32>
    %7 = tpu.matmul %5, %6, %cst {dimension_numbers = #tpu.dot_dimension_numbers<[1], [0], [0], [1], [0, 0, 1, 1], [], []>} : vector<32x32xf32>, vector<32x64xf32>, vector<32x64xf32> -> vector<32x64xf32>
    %c0_10 = arith.constant 0 : index
    %c0_11 = arith.constant 0 : index
    %8 = vector.load %arg5[%c0_10, %c0_11] : memref<1x64xf32, #tpu.memory_space<vmem>>, vector<1x64xf32>
    %9 = vector.broadcast %8 : vector<1x64xf32> to vector<32x64xf32>
    %10 = arith.addf %7, %9 : vector<32x64xf32>
    %c0_12 = arith.constant 0 : index
    %c0_13 = arith.constant 0 : index
    %11 = vector.load %arg6[%c0_12, %c0_13] : memref<32x32xf32, #tpu.memory_space<vmem>>, vector<32x32xf32>
    %cst_14 = arith.constant dense<0.000000e+00> : vector<32x32xf32>
    %12 = tpu.matmul %3, %11, %cst_14 {dimension_numbers = #tpu.dot_dimension_numbers<[1], [0], [0], [1], [0, 0, 1, 1], [], []>} : vector<32x32xf32>, vector<32x32xf32>, vector<32x32xf32> -> vector<32x32xf32>
    %c0_15 = arith.constant 0 : index
    %c0_16 = arith.constant 0 : index
    %13 = vector.load %arg7[%c0_15, %c0_16] : memref<1x32xf32, #tpu.memory_space<vmem>>, vector<1x32xf32>
    %14 = vector.broadcast %13 : vector<1x32xf32> to vector<32x32xf32>
    %15 = arith.addf %12, %14 : vector<32x32xf32>
    %16 = vector.extract_strided_slice %10 {offsets = [0, 0], sizes = [32, 32], strides = [1, 1]} : vector<32x64xf32> to vector<32x32xf32>
    %cst_17 = arith.constant 0.353553385 : f32
    %17 = vector.broadcast %cst_17 : f32 to vector<32x32xf32>
    %18 = arith.mulf %16, %17 : vector<32x32xf32>
    %19 = vector.shape_cast %18 : vector<32x32xf32> to vector<4x8x32xf32>
    %20 = vector.extract_strided_slice %10 {offsets = [0, 32], sizes = [32, 32], strides = [1, 1]} : vector<32x64xf32> to vector<32x32xf32>
    %21 = vector.shape_cast %20 : vector<32x32xf32> to vector<4x8x32xf32>
    %22 = vector.shape_cast %15 : vector<32x32xf32> to vector<4x8x32xf32>
    %23 = vector.extract_strided_slice %19 {offsets = [0, 0, 0], sizes = [4, 8, 8], strides = [1, 1, 1]} : vector<4x8x32xf32> to vector<4x8x8xf32>
    %24 = vector.extract_strided_slice %21 {offsets = [0, 0, 0], sizes = [4, 8, 8], strides = [1, 1, 1]} : vector<4x8x32xf32> to vector<4x8x8xf32>
    "tpu.trace_start"() <{level = 10 : i32, message = "bqd,bkd->bqk"}> : () -> ()
    %cst_18 = arith.constant dense<0.000000e+00> : vector<4x8x8xf32>
    %25 = tpu.matmul %23, %24, %cst_18 {dimension_numbers = #tpu.dot_dimension_numbers<[2], [2], [1], [1], [0, 0, 0, 1, 1, 1], [0], [0]>} : vector<4x8x8xf32>, vector<4x8x8xf32>, vector<4x8x8xf32> -> vector<4x8x8xf32>
    "tpu.trace_stop"() : () -> ()
    %26 = vector.broadcast %2 : vector<4x1x8xf32> to vector<4x8x8xf32>
    %27 = arith.addf %25, %26 : vector<4x8x8xf32>
    %cst_19 = arith.constant dense<0xFF800000> : vector<4x8xf32>
    %28 = vector.multi_reduction <maximumf>, %27, %cst_19 [2] : vector<4x8x8xf32> to vector<4x8xf32>
    %cst_20 = arith.constant 0xFF800000 : f32
    %29 = vector.broadcast %cst_20 : f32 to vector<4x8xf32>
    %30 = arith.maximumf %29, %28 : vector<4x8xf32>
    %31 = vector.shape_cast %30 : vector<4x8xf32> to vector<4x8x1xf32>
    %32 = vector.broadcast %31 : vector<4x8x1xf32> to vector<4x8x8xf32>
    %33 = arith.subf %27, %32 : vector<4x8x8xf32>
    %34 = math.exp %33 : vector<4x8x8xf32>
    %cst_21 = arith.constant dense<0.000000e+00> : vector<4x8xf32>
    %35 = vector.multi_reduction <add>, %34, %cst_21 [2] : vector<4x8x8xf32> to vector<4x8xf32>
    %36 = vector.shape_cast %35 : vector<4x8xf32> to vector<4x8x1xf32>
    %37 = vector.broadcast %36 : vector<4x8x1xf32> to vector<4x8x8xf32>
    %38 = arith.divf %34, %37 : vector<4x8x8xf32>
    %39 = vector.extract_strided_slice %22 {offsets = [0, 0, 0], sizes = [4, 8, 8], strides = [1, 1, 1]} : vector<4x8x32xf32> to vector<4x8x8xf32>
    "tpu.trace_start"() <{level = 10 : i32, message = "bqk,bkd->bqd"}> : () -> ()
    %cst_22 = arith.constant dense<0.000000e+00> : vector<4x8x8xf32>
    %40 = tpu.matmul %38, %39, %cst_22 {dimension_numbers = #tpu.dot_dimension_numbers<[2], [1], [1], [2], [0, 0, 0, 1, 1, 2], [0], [0]>} : vector<4x8x8xf32>, vector<4x8x8xf32>, vector<4x8x8xf32> -> vector<4x8x8xf32>
    "tpu.trace_stop"() : () -> ()
    %41 = vector.extract_strided_slice %19 {offsets = [0, 0, 8], sizes = [4, 8, 8], strides = [1, 1, 1]} : vector<4x8x32xf32> to vector<4x8x8xf32>
    %42 = vector.extract_strided_slice %21 {offsets = [0, 0, 8], sizes = [4, 8, 8], strides = [1, 1, 1]} : vector<4x8x32xf32> to vector<4x8x8xf32>
    "tpu.trace_start"() <{level = 10 : i32, message = "bqd,bkd->bqk"}> : () -> ()
    %cst_23 = arith.constant dense<0.000000e+00> : vector<4x8x8xf32>
    %43 = tpu.matmul %41, %42, %cst_23 {dimension_numbers = #tpu.dot_dimension_numbers<[2], [2], [1], [1], [0, 0, 0, 1, 1, 1], [0], [0]>} : vector<4x8x8xf32>, vector<4x8x8xf32>, vector<4x8x8xf32> -> vector<4x8x8xf32>
    "tpu.trace_stop"() : () -> ()
    %44 = vector.broadcast %2 : vector<4x1x8xf32> to vector<4x8x8xf32>
    %45 = arith.addf %43, %44 : vector<4x8x8xf32>
    %cst_24 = arith.constant dense<0xFF800000> : vector<4x8xf32>
    %46 = vector.multi_reduction <maximumf>, %45, %cst_24 [2] : vector<4x8x8xf32> to vector<4x8xf32>
    %cst_25 = arith.constant 0xFF800000 : f32
    %47 = vector.broadcast %cst_25 : f32 to vector<4x8xf32>
    %48 = arith.maximumf %47, %46 : vector<4x8xf32>
    %49 = vector.shape_cast %48 : vector<4x8xf32> to vector<4x8x1xf32>
    %50 = vector.broadcast %49 : vector<4x8x1xf32> to vector<4x8x8xf32>
    %51 = arith.subf %45, %50 : vector<4x8x8xf32>
    %52 = math.exp %51 : vector<4x8x8xf32>
    %cst_26 = arith.constant dense<0.000000e+00> : vector<4x8xf32>
    %53 = vector.multi_reduction <add>, %52, %cst_26 [2] : vector<4x8x8xf32> to vector<4x8xf32>
    %54 = vector.shape_cast %53 : vector<4x8xf32> to vector<4x8x1xf32>
    %55 = vector.broadcast %54 : vector<4x8x1xf32> to vector<4x8x8xf32>
    %56 = arith.divf %52, %55 : vector<4x8x8xf32>
    %57 = vector.extract_strided_slice %22 {offsets = [0, 0, 8], sizes = [4, 8, 8], strides = [1, 1, 1]} : vector<4x8x32xf32> to vector<4x8x8xf32>
    "tpu.trace_start"() <{level = 10 : i32, message = "bqk,bkd->bqd"}> : () -> ()
    %cst_27 = arith.constant dense<0.000000e+00> : vector<4x8x8xf32>
    %58 = tpu.matmul %56, %57, %cst_27 {dimension_numbers = #tpu.dot_dimension_numbers<[2], [1], [1], [2], [0, 0, 0, 1, 1, 2], [0], [0]>} : vector<4x8x8xf32>, vector<4x8x8xf32>, vector<4x8x8xf32> -> vector<4x8x8xf32>
    "tpu.trace_stop"() : () -> ()
    %59 = vector.extract_strided_slice %19 {offsets = [0, 0, 16], sizes = [4, 8, 8], strides = [1, 1, 1]} : vector<4x8x32xf32> to vector<4x8x8xf32>
    %60 = vector.extract_strided_slice %21 {offsets = [0, 0, 16], sizes = [4, 8, 8], strides = [1, 1, 1]} : vector<4x8x32xf32> to vector<4x8x8xf32>
    "tpu.trace_start"() <{level = 10 : i32, message = "bqd,bkd->bqk"}> : () -> ()
    %cst_28 = arith.constant dense<0.000000e+00> : vector<4x8x8xf32>
    %61 = tpu.matmul %59, %60, %cst_28 {dimension_numbers = #tpu.dot_dimension_numbers<[2], [2], [1], [1], [0, 0, 0, 1, 1, 1], [0], [0]>} : vector<4x8x8xf32>, vector<4x8x8xf32>, vector<4x8x8xf32> -> vector<4x8x8xf32>
    "tpu.trace_stop"() : () -> ()
    %62 = vector.broadcast %2 : vector<4x1x8xf32> to vector<4x8x8xf32>
    %63 = arith.addf %61, %62 : vector<4x8x8xf32>
    %cst_29 = arith.constant dense<0xFF800000> : vector<4x8xf32>
    %64 = vector.multi_reduction <maximumf>, %63, %cst_29 [2] : vector<4x8x8xf32> to vector<4x8xf32>
    %cst_30 = arith.constant 0xFF800000 : f32
    %65 = vector.broadcast %cst_30 : f32 to vector<4x8xf32>
    %66 = arith.maximumf %65, %64 : vector<4x8xf32>
    %67 = vector.shape_cast %66 : vector<4x8xf32> to vector<4x8x1xf32>
    %68 = vector.broadcast %67 : vector<4x8x1xf32> to vector<4x8x8xf32>
    %69 = arith.subf %63, %68 : vector<4x8x8xf32>
    %70 = math.exp %69 : vector<4x8x8xf32>
    %cst_31 = arith.constant dense<0.000000e+00> : vector<4x8xf32>
    %71 = vector.multi_reduction <add>, %70, %cst_31 [2] : vector<4x8x8xf32> to vector<4x8xf32>
    %72 = vector.shape_cast %71 : vector<4x8xf32> to vector<4x8x1xf32>
    %73 = vector.broadcast %72 : vector<4x8x1xf32> to vector<4x8x8xf32>
    %74 = arith.divf %70, %73 : vector<4x8x8xf32>
    %75 = vector.extract_strided_slice %22 {offsets = [0, 0, 16], sizes = [4, 8, 8], strides = [1, 1, 1]} : vector<4x8x32xf32> to vector<4x8x8xf32>
    "tpu.trace_start"() <{level = 10 : i32, message = "bqk,bkd->bqd"}> : () -> ()
    %cst_32 = arith.constant dense<0.000000e+00> : vector<4x8x8xf32>
    %76 = tpu.matmul %74, %75, %cst_32 {dimension_numbers = #tpu.dot_dimension_numbers<[2], [1], [1], [2], [0, 0, 0, 1, 1, 2], [0], [0]>} : vector<4x8x8xf32>, vector<4x8x8xf32>, vector<4x8x8xf32> -> vector<4x8x8xf32>
    "tpu.trace_stop"() : () -> ()
    %77 = vector.extract_strided_slice %19 {offsets = [0, 0, 24], sizes = [4, 8, 8], strides = [1, 1, 1]} : vector<4x8x32xf32> to vector<4x8x8xf32>
    %78 = vector.extract_strided_slice %21 {offsets = [0, 0, 24], sizes = [4, 8, 8], strides = [1, 1, 1]} : vector<4x8x32xf32> to vector<4x8x8xf32>
    "tpu.trace_start"() <{level = 10 : i32, message = "bqd,bkd->bqk"}> : () -> ()
    %cst_33 = arith.constant dense<0.000000e+00> : vector<4x8x8xf32>
    %79 = tpu.matmul %77, %78, %cst_33 {dimension_numbers = #tpu.dot_dimension_numbers<[2], [2], [1], [1], [0, 0, 0, 1, 1, 1], [0], [0]>} : vector<4x8x8xf32>, vector<4x8x8xf32>, vector<4x8x8xf32> -> vector<4x8x8xf32>
    "tpu.trace_stop"() : () -> ()
    %80 = vector.broadcast %2 : vector<4x1x8xf32> to vector<4x8x8xf32>
    %81 = arith.addf %79, %80 : vector<4x8x8xf32>
    %cst_34 = arith.constant dense<0xFF800000> : vector<4x8xf32>
    %82 = vector.multi_reduction <maximumf>, %81, %cst_34 [2] : vector<4x8x8xf32> to vector<4x8xf32>
    %cst_35 = arith.constant 0xFF800000 : f32
    %83 = vector.broadcast %cst_35 : f32 to vector<4x8xf32>
    %84 = arith.maximumf %83, %82 : vector<4x8xf32>
    %85 = vector.shape_cast %84 : vector<4x8xf32> to vector<4x8x1xf32>
    %86 = vector.broadcast %85 : vector<4x8x1xf32> to vector<4x8x8xf32>
    %87 = arith.subf %81, %86 : vector<4x8x8xf32>
    %88 = math.exp %87 : vector<4x8x8xf32>
    %cst_36 = arith.constant dense<0.000000e+00> : vector<4x8xf32>
    %89 = vector.multi_reduction <add>, %88, %cst_36 [2] : vector<4x8x8xf32> to vector<4x8xf32>
    %90 = vector.shape_cast %89 : vector<4x8xf32> to vector<4x8x1xf32>
    %91 = vector.broadcast %90 : vector<4x8x1xf32> to vector<4x8x8xf32>
    %92 = arith.divf %88, %91 : vector<4x8x8xf32>
    %93 = vector.extract_strided_slice %22 {offsets = [0, 0, 24], sizes = [4, 8, 8], strides = [1, 1, 1]} : vector<4x8x32xf32> to vector<4x8x8xf32>
    "tpu.trace_start"() <{level = 10 : i32, message = "bqk,bkd->bqd"}> : () -> ()
    %cst_37 = arith.constant dense<0.000000e+00> : vector<4x8x8xf32>
    %94 = tpu.matmul %92, %93, %cst_37 {dimension_numbers = #tpu.dot_dimension_numbers<[2], [1], [1], [2], [0, 0, 0, 1, 1, 2], [0], [0]>} : vector<4x8x8xf32>, vector<4x8x8xf32>, vector<4x8x8xf32> -> vector<4x8x8xf32>
    "tpu.trace_stop"() : () -> ()
    %95 = tpu.concatenate %40, %58, %76, %94 in 2 : vector<4x8x8xf32>, vector<4x8x8xf32>, vector<4x8x8xf32>, vector<4x8x8xf32> -> vector<4x8x32xf32>
    %96 = vector.shape_cast %95 : vector<4x8x32xf32> to vector<32x32xf32>
    %c0_38 = arith.constant 0 : index
    %c0_39 = arith.constant 0 : index
    %97 = vector.load %arg8[%c0_38, %c0_39] : memref<32x32xf32, #tpu.memory_space<vmem>>, vector<32x32xf32>
    %cst_40 = arith.constant dense<0.000000e+00> : vector<32x32xf32>
    %98 = tpu.matmul %96, %97, %cst_40 {dimension_numbers = #tpu.dot_dimension_numbers<[1], [0], [0], [1], [0, 0, 1, 1], [], []>} : vector<32x32xf32>, vector<32x32xf32>, vector<32x32xf32> -> vector<32x32xf32>
    %c0_41 = arith.constant 0 : index
    %c0_42 = arith.constant 0 : index
    %99 = vector.load %arg9[%c0_41, %c0_42] : memref<1x32xf32, #tpu.memory_space<vmem>>, vector<1x32xf32>
    %100 = vector.broadcast %99 : vector<1x32xf32> to vector<32x32xf32>
    %101 = arith.addf %98, %100 : vector<32x32xf32>
    %102 = vector.shape_cast %101 : vector<32x32xf32> to vector<4x8x32xf32>
    %c0_43 = arith.constant 0 : index
    %c0_44 = arith.constant 0 : index
    %c0_45 = arith.constant 0 : index
    %103 = vector.load %arg10[%c0_43, %c0_44, %c0_45] : memref<4x8x32xf32, #tpu.memory_space<vmem>>, vector<4x8x32xf32>
    tpu.vector_store %arg10[%c0_43, %c0_44, %c0_45], %102 {strides = array<i32>} : memref<4x8x32xf32, #tpu.memory_space<vmem>>, vector<4x8x32xf32>,
    return
  }
  func.func @transform_0(%arg0: i32) -> (i32, i32, i32) {
    %c0_i32 = arith.constant 0 : i32
    %c0_i32_0 = arith.constant 0 : i32
    %c0_i32_1 = arith.constant 0 : i32
    return %arg0, %c0_i32, %c0_i32_0 : i32, i32, i32
  }
  func.func @transform_1(%arg0: i32) -> (i32, i32, i32) {
    %c0_i32 = arith.constant 0 : i32
    %c0_i32_0 = arith.constant 0 : i32
    %c0_i32_1 = arith.constant 0 : i32
    return %arg0, %c0_i32, %c0_i32_0 : i32, i32, i32
  }
  func.func @transform_2(%arg0: i32) -> (i32, i32, i32) {
    %c0_i32 = arith.constant 0 : i32
    %c0_i32_0 = arith.constant 0 : i32
    %c0_i32_1 = arith.constant 0 : i32
    return %arg0, %c0_i32, %c0_i32_0 : i32, i32, i32
  }
  func.func @transform_3(%arg0: i32) -> (i32, i32) {
    %c0_i32 = arith.constant 0 : i32
    %c0_i32_0 = arith.constant 0 : i32
    %c0_i32_1 = arith.constant 0 : i32
    return %c0_i32, %c0_i32_0 : i32, i32
  }
  func.func @transform_4(%arg0: i32) -> (i32, i32) {
    %c0_i32 = arith.constant 0 : i32
    %c0_i32_0 = arith.constant 0 : i32
    %c0_i32_1 = arith.constant 0 : i32
    return %c0_i32, %c0_i32_0 : i32, i32
  }
  func.func @transform_5(%arg0: i32) -> (i32, i32) {
    %c0_i32 = arith.constant 0 : i32
    %c0_i32_0 = arith.constant 0 : i32
    %c0_i32_1 = arith.constant 0 : i32
    return %c0_i32, %c0_i32_0 : i32, i32
  }
  func.func @transform_6(%arg0: i32) -> (i32, i32) {
    %c0_i32 = arith.constant 0 : i32
    %c0_i32_0 = arith.constant 0 : i32
    %c0_i32_1 = arith.constant 0 : i32
    return %c0_i32, %c0_i32_0 : i32, i32
  }
  func.func @transform_7(%arg0: i32) -> (i32, i32) {
    %c0_i32 = arith.constant 0 : i32
    %c0_i32_0 = arith.constant 0 : i32
    %c0_i32_1 = arith.constant 0 : i32
    return %c0_i32, %c0_i32_0 : i32, i32
  }
  func.func @transform_8(%arg0: i32) -> (i32, i32) {
    %c0_i32 = arith.constant 0 : i32
    %c0_i32_0 = arith.constant 0 : i32
    %c0_i32_1 = arith.constant 0 : i32
    return %c0_i32, %c0_i32_0 : i32, i32
  }
  func.func @transform_9(%arg0: i32) -> (i32, i32, i32) {
    %c0_i32 = arith.constant 0 : i32
    %c0_i32_0 = arith.constant 0 : i32
    %c0_i32_1 = arith.constant 0 : i32
    return %arg0, %c0_i32, %c0_i32_0 : i32, i32, i32
  }
}

</mosaic_0001>

<llo_original>
// kernel: tpu_custom_call.1
$region0: #{tpu_custom_call.1}
  #allocation0 [shape = 'u32[]', space=smem, size = 0x4, offset = 0x4, fixed_abs, tag = 'smem constant byte address 0x4 - core index']
  #allocation1 [shape = 'u32[144,128]{1,0:T(1,128)}', space=vmem, size = 0x12000, scoped, tag = 'internal scratch']
  %s0 = inlined_call_operand.hbm [shape: f32[12,8,32], index: 0, kind: input, shape index: {}]
  %s1 = inlined_call_operand.hbm [shape: f32[12,8,32], index: 1, kind: input, shape index: {}]
  %s2 = inlined_call_operand.vmem [shape: f32[12,1,8], index: 2, kind: input, shape index: {}]
  %s3 = inlined_call_operand.hbm [shape: f32[32,64], index: 3, kind: input, shape index: {}]
  %s4 = inlined_call_operand.vmem [shape: f32[1,64], index: 4, kind: input, shape index: {}]
  %s5 = inlined_call_operand.vmem [shape: f32[32,32], index: 5, kind: input, shape index: {}]
  %s6 = inlined_call_operand.vmem [shape: f32[1,32], index: 6, kind: input, shape index: {}]
  %s7 = inlined_call_operand.hbm [shape: f32[32,32], index: 7, kind: input, shape index: {}]
  %s8 = inlined_call_operand.vmem [shape: f32[1,32], index: 8, kind: input, shape index: {}]
  %s9 = inlined_call_operand.hbm [shape: f32[12,8,32], index: 9, kind: output, shape index: {}]
  %s10 = sld [smem:[#allocation0]]
  $region85: #{tpu_custom_call.1} parent=0
    _
  %s12 = ssub.s32 1, %s10
  %s13 = scalar_select 0, %s12, %s10
  $region1: #{tpu_custom_call.1} parent=0
    #allocation2 [shape = 'u8[32768]{0}', space=vmem, size = 0x8000, scoped, tag = 'input window, operand 0']
    #allocation3 [shape = 's32[2]{0}', space=sflag, size = 0x8, scoped, tag = 'scoped memory for tpu_custom_call.1']
    #allocation4 [shape = 's32[2]{0}', space=sflag, size = 0x8, scoped, tag = 'scoped memory for tpu_custom_call.1']
    #allocation5 [shape = 'u8[32768]{0}', space=vmem, size = 0x8000, scoped, tag = 'input window, operand 1']
    #allocation6 [shape = 's32[2]{0}', space=sflag, size = 0x8, scoped, tag = 'scoped memory for tpu_custom_call.1']
    #allocation7 [shape = 'u8[16384]{0}', space=vmem, size = 0x4000, scoped, tag = 'input window, operand 3, single buffered']
    #allocation8 [shape = 'u8[16384]{0}', space=vmem, size = 0x4000, scoped, tag = 'input window, operand 7, single buffered']
    #allocation9 [shape = 's32[1]{0}', space=sflag, size = 0x4, scoped, tag = 'scoped memory for tpu_custom_call.1']
    #allocation10 [shape = 'u8[32768]{0}', space=vmem, size = 0x8000, scoped, tag = 'output window, operand 0']
    %14 = vsyncpa [#allocation3], 0
    %s15 = scalar_lea.sflag [#allocation3], 1
    %16 = vsyncpa %s15, 0
    %17 = vsyncpa [#allocation6], 0
    %s18 = scalar_lea.sflag [#allocation6], 1
    %19 = vsyncpa %s18, 0
    %20 = vsyncpa [#allocation9], 0
    %21 = vsyncpa [#allocation4], 0
    %s22 = scalar_lea.sflag [#allocation4], 1
    %23 = vsyncpa %s22, 0
    loop: start=0, step=1, limit=5
    $region2: #{tpu_custom_call.1} parent=1 // loop_pre_header
      _
    $region3: #{tpu_custom_call.1} parent=1 // loop_header
      %s25 = sphi 0, %s29
      %p26 = scmp.ge.s32.totalorder %s25, 5
      %s35 = sphi 0, %s37
      %s38 = sphi 0, %s35
      %s39 = sphi 0, %s38
      %s55 = sphi 0, %s39
      %s61 = sphi 0, %s63
      %s64 = sphi 0, %s61
      %s65 = sphi 0, %s64
      %s81 = sphi 0, %s65
      %s87 = sphi 0, %s89
      %s90 = sphi 0, %s87
      %s91 = sphi 0, %s90
      %s107 = sphi 0, %s91
      %s111 = sphi 0, %s111
      %s113 = sphi 0, %s111
      %s114 = sphi 0, %s113
      %s128 = sphi 0, %s114
      %s132 = sphi 0, %s132
      %s134 = sphi 0, %s132
      %s135 = sphi 0, %s134
      %s149 = sphi 0, %s135
      %s153 = sphi 0, %s153
      %s155 = sphi 0, %s153
      %s156 = sphi 0, %s155
      %s170 = sphi 0, %s156
      %s174 = sphi 0, %s174
      %s176 = sphi 0, %s174
      %s177 = sphi 0, %s176
      %s191 = sphi 0, %s177
      %s195 = sphi 0, %s195
      %s197 = sphi 0, %s195
      %s198 = sphi 0, %s197
      %s212 = sphi 0, %s198
      %s216 = sphi 0, %s216
      %s218 = sphi 0, %s216
      %s219 = sphi 0, %s218
      %s233 = sphi 0, %s219
      %s239 = sphi 0, %s241
      %s242 = sphi 0, %s239
      %s243 = sphi 0, %s242
      %s259 = sphi 0, %s243
    $region4: #{tpu_custom_call.1} parent=1 // loop_header_branch
      %28 = sbr.rel (%p26) target = $region8
    $region5: #{tpu_custom_call.1} parent=1 // loop_body
      %s30 = ssub.s32 %s25, 1
      %s31 = ssub.s32 %s25, 2
      %s32 = sadd.s32 %s25, 1
      %s33 = ssub.s32 %s25, %s32
      %p34 = scmp.eq.s32.totalorder %s33, 0
      %s36 = sadd.s32 %s35, 1
      %s37 = scalar_select %p34, %s35, %s36
      %p40 = pneg %p34
      %p41 = scmp.eq.s32.totalorder %s25, 2
      %p42 = por %p40, %p41
      %p43 = scmp.ne.s32.totalorder %s35, %s38
      %p44 = scmp.eq.s32.totalorder %s25, 0
      %p45 = por %p43, %p44
      %p46 = scmp.ne.s32.totalorder %s35, %s38
      %p47 = scmp.eq.s32.totalorder %s30, 2
      %p48 = por %p46, %p47
      %p49 = scmp.ne.s32.totalorder %s38, %s39
      %p50 = scmp.eq.s32.totalorder %s30, 0
      %p51 = por %p49, %p50
      %p52 = scmp.ne.s32.totalorder %s38, %s39
      %p53 = scmp.eq.s32.totalorder %s31, 2
      %p54 = por %p52, %p53
      %p56 = scmp.ne.s32.totalorder %s39, %s55
      %p57 = scmp.eq.s32.totalorder %s31, 0
      %p58 = por %p56, %p57
      %s59 = ssub.s32 %s25, %s32
      %p60 = scmp.eq.s32.totalorder %s59, 0
      %s62 = sadd.s32 %s61, 1
      %s63 = scalar_select %p60, %s61, %s62
      %p66 = pneg %p60
      %p67 = scmp.eq.s32.totalorder %s25, 2
      %p68 = por %p66, %p67
      %p69 = scmp.ne.s32.totalorder %s61, %s64
      %p70 = scmp.eq.s32.totalorder %s25, 0
      %p71 = por %p69, %p70
      %p72 = scmp.ne.s32.totalorder %s61, %s64
      %p73 = scmp.eq.s32.totalorder %s30, 2
      %p74 = por %p72, %p73
      %p75 = scmp.ne.s32.totalorder %s64, %s65
      %p76 = scmp.eq.s32.totalorder %s30, 0
      %p77 = por %p75, %p76
      %p78 = scmp.ne.s32.totalorder %s64, %s65
      %p79 = scmp.eq.s32.totalorder %s31, 2
      %p80 = por %p78, %p79
      %p82 = scmp.ne.s32.totalorder %s65, %s81
      %p83 = scmp.eq.s32.totalorder %s31, 0
      %p84 = por %p82, %p83
      %s85 = ssub.s32 %s25, %s32
      %p86 = scmp.eq.s32.totalorder %s85, 0
      %s88 = sadd.s32 %s87, 1
      %s89 = scalar_select %p86, %s87, %s88
      %p92 = pneg %p86
      %p93 = scmp.eq.s32.totalorder %s25, 2
      %p94 = por %p92, %p93
      %p95 = scmp.ne.s32.totalorder %s87, %s90
      %p96 = scmp.eq.s32.totalorder %s25, 0
      %p97 = por %p95, %p96
      %p98 = scmp.ne.s32.totalorder %s87, %s90
      %p99 = scmp.eq.s32.totalorder %s30, 2
      %p100 = por %p98, %p99
      %p101 = scmp.ne.s32.totalorder %s90, %s91
      %p102 = scmp.eq.s32.totalorder %s30, 0
      %p103 = por %p101, %p102
      %p104 = scmp.ne.s32.totalorder %s90, %s91
      %p105 = scmp.eq.s32.totalorder %s31, 2
      %p106 = por %p104, %p105
      %p108 = scmp.ne.s32.totalorder %s91, %s107
      %p109 = scmp.eq.s32.totalorder %s31, 0
      %p110 = por %p108, %p109
      %s112 = sadd.s32 %s111, 1
      %p115 = scmp.eq.s32.totalorder %s25, 2
      %p116 = scmp.ne.s32.totalorder %s111, %s113
      %p117 = scmp.eq.s32.totalorder %s25, 0
      %p118 = por %p116, %p117
      %p119 = scmp.ne.s32.totalorder %s111, %s113
      %p120 = scmp.eq.s32.totalorder %s30, 2
      %p121 = por %p119, %p120
      %p122 = scmp.ne.s32.totalorder %s113, %s114
      %p123 = scmp.eq.s32.totalorder %s30, 0
      %p124 = por %p122, %p123
      %p125 = scmp.ne.s32.totalorder %s113, %s114
      %p126 = scmp.eq.s32.totalorder %s31, 2
      %p127 = por %p125, %p126
      %p129 = scmp.ne.s32.totalorder %s114, %s128
      %p130 = scmp.eq.s32.totalorder %s31, 0
      %p131 = por %p129, %p130
      %s133 = sadd.s32 %s132, 1
      %p136 = scmp.eq.s32.totalorder %s25, 2
      %p137 = scmp.ne.s32.totalorder %s132, %s134
      %p138 = scmp.eq.s32.totalorder %s25, 0
      %p139 = por %p137, %p138
      %p140 = scmp.ne.s32.totalorder %s132, %s134
      %p141 = scmp.eq.s32.totalorder %s30, 2
      %p142 = por %p140, %p141
      %p143 = scmp.ne.s32.totalorder %s134, %s135
      %p144 = scmp.eq.s32.totalorder %s30, 0
      %p145 = por %p143, %p144
      %p146 = scmp.ne.s32.totalorder %s134, %s135
      %p147 = scmp.eq.s32.totalorder %s31, 2
      %p148 = por %p146, %p147
      %p150 = scmp.ne.s32.totalorder %s135, %s149
      %p151 = scmp.eq.s32.totalorder %s31, 0
      %p152 = por %p150, %p151
      %s154 = sadd.s32 %s153, 1
      %p157 = scmp.eq.s32.totalorder %s25, 2
      %p158 = scmp.ne.s32.totalorder %s153, %s155
      %p159 = scmp.eq.s32.totalorder %s25, 0
      %p160 = por %p158, %p159
      %p161 = scmp.ne.s32.totalorder %s153, %s155
      %p162 = scmp.eq.s32.totalorder %s30, 2
      %p163 = por %p161, %p162
      %p164 = scmp.ne.s32.totalorder %s155, %s156
      %p165 = scmp.eq.s32.totalorder %s30, 0
      %p166 = por %p164, %p165
      %p167 = scmp.ne.s32.totalorder %s155, %s156
      %p168 = scmp.eq.s32.totalorder %s31, 2
      %p169 = por %p167, %p168
      %p171 = scmp.ne.s32.totalorder %s156, %s170
      %p172 = scmp.eq.s32.totalorder %s31, 0
      %p173 = por %p171, %p172
      %s175 = sadd.s32 %s174, 1
      %p178 = scmp.eq.s32.totalorder %s25, 2
      %p179 = scmp.ne.s32.totalorder %s174, %s176
      %p180 = scmp.eq.s32.totalorder %s25, 0
      %p181 = por %p179, %p180
      %p182 = scmp.ne.s32.totalorder %s174, %s176
      %p183 = scmp.eq.s32.totalorder %s30, 2
      %p184 = por %p182, %p183
      %p185 = scmp.ne.s32.totalorder %s176, %s177
      %p186 = scmp.eq.s32.totalorder %s30, 0
      %p187 = por %p185, %p186
      %p188 = scmp.ne.s32.totalorder %s176, %s177
      %p189 = scmp.eq.s32.totalorder %s31, 2
      %p190 = por %p188, %p189
      %p192 = scmp.ne.s32.totalorder %s177, %s191
      %p193 = scmp.eq.s32.totalorder %s31, 0
      %p194 = por %p192, %p193
      %s196 = sadd.s32 %s195, 1
      %p199 = scmp.eq.s32.totalorder %s25, 2
      %p200 = scmp.ne.s32.totalorder %s195, %s197
      %p201 = scmp.eq.s32.totalorder %s25, 0
      %p202 = por %p200, %p201
      %p203 = scmp.ne.s32.totalorder %s195, %s197
      %p204 = scmp.eq.s32.totalorder %s30, 2
      %p205 = por %p203, %p204
      %p206 = scmp.ne.s32.totalorder %s197, %s198
      %p207 = scmp.eq.s32.totalorder %s30, 0
      %p208 = por %p206, %p207
      %p209 = scmp.ne.s32.totalorder %s197, %s198
      %p210 = scmp.eq.s32.totalorder %s31, 2
      %p211 = por %p209, %p210
      %p213 = scmp.ne.s32.totalorder %s198, %s212
      %p214 = scmp.eq.s32.totalorder %s31, 0
      %p215 = por %p213, %p214
      %s217 = sadd.s32 %s216, 1
      %p220 = scmp.eq.s32.totalorder %s25, 2
      %p221 = scmp.ne.s32.totalorder %s216, %s218
      %p222 = scmp.eq.s32.totalorder %s25, 0
      %p223 = por %p221, %p222
      %p224 = scmp.ne.s32.totalorder %s216, %s218
      %p225 = scmp.eq.s32.totalorder %s30, 2
      %p226 = por %p224, %p225
      %p227 = scmp.ne.s32.totalorder %s218, %s219
      %p228 = scmp.eq.s32.totalorder %s30, 0
      %p229 = por %p227, %p228
      %p230 = scmp.ne.s32.totalorder %s218, %s219
      %p231 = scmp.eq.s32.totalorder %s31, 2
      %p232 = por %p230, %p231
      %p234 = scmp.ne.s32.totalorder %s219, %s233
      %p235 = scmp.eq.s32.totalorder %s31, 0
      %p236 = por %p234, %p235
      %s237 = ssub.s32 %s25, %s32
      %p238 = scmp.eq.s32.totalorder %s237, 0
      %s240 = sadd.s32 %s239, 1
      %s241 = scalar_select %p238, %s239, %s240
      %p244 = pneg %p238
      %p245 = scmp.eq.s32.totalorder %s25, 2
      %p246 = por %p244, %p245
      %p247 = scmp.ne.s32.totalorder %s239, %s242
      %p248 = scmp.eq.s32.totalorder %s25, 0
      %p249 = por %p247, %p248
      %p250 = scmp.ne.s32.totalorder %s239, %s242
      %p251 = scmp.eq.s32.totalorder %s30, 2
      %p252 = por %p250, %p251
      %p253 = scmp.ne.s32.totalorder %s242, %s243
      %p254 = scmp.eq.s32.totalorder %s30, 0
      %p255 = por %p253, %p254
      %p256 = scmp.ne.s32.totalorder %s242, %s243
      %p257 = scmp.eq.s32.totalorder %s31, 2
      %p258 = por %p256, %p257
      %p260 = scmp.ne.s32.totalorder %s243, %s259
      %p261 = scmp.eq.s32.totalorder %s31, 0
      %p262 = por %p260, %p261
      %p263 = scmp.le.s32.totalorder 1, %s25
      %p264 = scmp.lt.s32.totalorder %s25, 4
      %p265 = pnand %p263, %p264
      %p266 = pneg %p265
      // Predicated region
      $region9: #{tpu_custom_call.1} parent=5 // pred_check
        _
      $region10: #{tpu_custom_call.1} parent=5 // pred_check_branch
        %268 = sbr.rel (%p265) target = $region12
      $region11: #{tpu_custom_call.1} parent=5 // pred_region
        %s269 = ssub.s32 %s25, 1
        // Predicated region
        $region13: #{tpu_custom_call.1} parent=11 // pred_check
          %p270 = pneg %p124
        $region14: #{tpu_custom_call.1} parent=11 // pred_check_branch
          %272 = sbr.rel (%p270) target = $region16
        $region15: #{tpu_custom_call.1} parent=11 // pred_region
          %s274 = ssub.s32 512, 512
          %275 = vsyncadd [#allocation6], %s274
          %s276 = sshll.u32 [#allocation7], 4
          %s277 = int_to_ptr.vmem [resolvable:$true] %s276
          %282 = dma.hbm_to_vmem [thread:$0]  %s3, 512, %s277, [#allocation6], 128, 128, 8
        $region16: #{tpu_custom_call.1} parent=11 // pred_fallthru
          _
        // Predicated region
        $region17: #{tpu_custom_call.1} parent=11 // pred_check
          %p283 = pneg %p145
        $region18: #{tpu_custom_call.1} parent=11 // pred_check_branch
          %285 = sbr.rel (%p283) target = $region20
        $region19: #{tpu_custom_call.1} parent=11 // pred_region
          _
        $region20: #{tpu_custom_call.1} parent=11 // pred_fallthru
          _
        // Predicated region
        $region21: #{tpu_custom_call.1} parent=11 // pred_check
          %p286 = pneg %p166
        $region22: #{tpu_custom_call.1} parent=11 // pred_check_branch
          %288 = sbr.rel (%p286) target = $region24
        $region23: #{tpu_custom_call.1} parent=11 // pred_region
          _
        $region24: #{tpu_custom_call.1} parent=11 // pred_fallthru
          _
        // Predicated region
        $region25: #{tpu_custom_call.1} parent=11 // pred_check
          %p289 = pneg %p187
        $region26: #{tpu_custom_call.1} parent=11 // pred_check_branch
          %291 = sbr.rel (%p289) target = $region28
        $region27: #{tpu_custom_call.1} parent=11 // pred_region
          _
        $region28: #{tpu_custom_call.1} parent=11 // pred_fallthru
          _
        // Predicated region
        $region29: #{tpu_custom_call.1} parent=11 // pred_check
          %p292 = pneg %p208
        $region30: #{tpu_custom_call.1} parent=11 // pred_check_branch
          %294 = sbr.rel (%p292) target = $region32
        $region31: #{tpu_custom_call.1} parent=11 // pred_region
          %s296 = ssub.s32 512, 512
          %297 = vsyncadd [#allocation9], %s296
          %s298 = sshll.u32 [#allocation8], 4
          %s299 = int_to_ptr.vmem [resolvable:$true] %s298
          %304 = dma.hbm_to_vmem [thread:$0]  %s7, 512, %s299, [#allocation9], 128, 128, 8
        $region32: #{tpu_custom_call.1} parent=11 // pred_fallthru
          _
        // Predicated region
        $region33: #{tpu_custom_call.1} parent=11 // pred_check
          %p305 = pneg %p229
        $region34: #{tpu_custom_call.1} parent=11 // pred_check_branch
          %307 = sbr.rel (%p305) target = $region36
        $region35: #{tpu_custom_call.1} parent=11 // pred_region
          _
        $region36: #{tpu_custom_call.1} parent=11 // pred_fallthru
          _
      $region12: #{tpu_custom_call.1} parent=5 // pred_fallthru
        _
      %p308 = scmp.lt.s32.totalorder %s25, 3
      // Predicated region
      $region37: #{tpu_custom_call.1} parent=5 // pred_check
        %p309 = pneg %p308
      $region38: #{tpu_custom_call.1} parent=5 // pred_check_branch
        %311 = sbr.rel (%p309) target = $region40
      $region39: #{tpu_custom_call.1} parent=5 // pred_region
        // Predicated region
        $region41: #{tpu_custom_call.1} parent=39 // pred_check
          %p312 = pneg %p45
        $region42: #{tpu_custom_call.1} parent=39 // pred_check_branch
          %314 = sbr.rel (%p312) target = $region44
        $region43: #{tpu_custom_call.1} parent=39 // pred_region
          %s315 = sand.u32 %s35, 1
          %s316 = scalar_lea.sflag [#allocation3], %s315
          %s317 = sand.u32 %s35, 1
          %s318 = smul.addr %s317, 32
          %s319 = scalar_lea.vmem [#allocation2], %s318
          %s320 = smul.u32 4, %s25
          %s322 = ssub.s32 512, 512
          %323 = vsyncadd %s316, %s322
          %s324 = smul.addr %s320, 128
          %s325 = scalar_lea.hbm %s0, %s324
          %s326 = sshll.u32 %s319, 4
          %s327 = int_to_ptr.vmem [resolvable:$true] %s326
          %332 = dma.hbm_to_vmem [thread:$0]  %s325, 512, %s327, %s316, 128, 128, 8
        $region44: #{tpu_custom_call.1} parent=39 // pred_fallthru
          _
        // Predicated region
        $region45: #{tpu_custom_call.1} parent=39 // pred_check
          %p333 = pneg %p71
        $region46: #{tpu_custom_call.1} parent=39 // pred_check_branch
          %335 = sbr.rel (%p333) target = $region48
        $region47: #{tpu_custom_call.1} parent=39 // pred_region
          %s336 = sand.u32 %s25, 1
          %s337 = scalar_lea.sflag [#allocation6], %s336
          %s338 = sand.u32 %s61, 1
          %s339 = smul.addr %s338, 32
          %s340 = scalar_lea.vmem [#allocation5], %s339
          %s341 = smul.u32 4, %s25
          %s343 = ssub.s32 512, 512
          %344 = vsyncadd %s337, %s343
          %s345 = smul.addr %s341, 128
          %s346 = scalar_lea.hbm %s1, %s345
          %s347 = sshll.u32 %s340, 4
          %s348 = int_to_ptr.vmem [resolvable:$true] %s347
          %353 = dma.hbm_to_vmem [thread:$0]  %s346, 512, %s348, %s337, 128, 128, 8
        $region48: #{tpu_custom_call.1} parent=39 // pred_fallthru
          _
        // Predicated region
        $region49: #{tpu_custom_call.1} parent=39 // pred_check
          %p354 = pneg %p97
        $region50: #{tpu_custom_call.1} parent=39 // pred_check_branch
          %356 = sbr.rel (%p354) target = $region52
        $region51: #{tpu_custom_call.1} parent=39 // pred_region
          %s357 = smul.u32 4, %s25
          %p358 = scmp.lt.s32.totalorder %s357, 11
          %s359 = scalar_select %p358, %s357, 11
          %s360 = scalar_lea.vmem %s2, %s359
          %s361 = smul.u32 4, %s25
        $region52: #{tpu_custom_call.1} parent=39 // pred_fallthru
          _
      $region40: #{tpu_custom_call.1} parent=5 // pred_fallthru
        _
      %p362 = scmp.le.s32.totalorder 1, %s25
      %p363 = scmp.lt.s32.totalorder %s25, 4
      %p364 = pnand %p362, %p363
      %p365 = pneg %p364
      // Predicated region
      $region53: #{tpu_custom_call.1} parent=5 // pred_check
        _
      $region54: #{tpu_custom_call.1} parent=5 // pred_check_branch
        %367 = sbr.rel (%p364) target = $region56
      $region55: #{tpu_custom_call.1} parent=5 // pred_region
        %s368 = ssub.s32 %s25, 1
        %s369 = sand.u32 %s38, 1
        %s370 = scalar_lea.sflag [#allocation3], %s369
        %s371 = sand.u32 %s38, 1
        %s372 = smul.addr %s371, 32
        %s373 = scalar_lea.vmem [#allocation2], %s372
        // Predicated region
        $region57: #{tpu_custom_call.1} parent=55 // pred_check
          %p374 = pneg %p51
        $region58: #{tpu_custom_call.1} parent=55 // pred_check_branch
          %376 = sbr.rel (%p374) target = $region60
        $region59: #{tpu_custom_call.1} parent=55 // pred_region
          %377 = dma.done %s370, 512
        $region60: #{tpu_custom_call.1} parent=55 // pred_fallthru
          _
        %s378 = sand.u32 %s30, 1
        %s379 = scalar_lea.sflag [#allocation6], %s378
        %s380 = sand.u32 %s64, 1
        %s381 = smul.addr %s380, 32
        %s382 = scalar_lea.vmem [#allocation5], %s381
        // Predicated region
        $region61: #{tpu_custom_call.1} parent=55 // pred_check
          %p383 = pneg %p77
        $region62: #{tpu_custom_call.1} parent=55 // pred_check_branch
          %385 = sbr.rel (%p383) target = $region64
        $region63: #{tpu_custom_call.1} parent=55 // pred_region
          %386 = dma.done %s379, 512
        $region64: #{tpu_custom_call.1} parent=55 // pred_fallthru
          _
        // Predicated region
        $region65: #{tpu_custom_call.1} parent=55 // pred_check
          %p387 = pneg %p124
        $region66: #{tpu_custom_call.1} parent=55 // pred_check_branch
          %389 = sbr.rel (%p387) target = $region68
        $region67: #{tpu_custom_call.1} parent=55 // pred_region
          %390 = dma.done [#allocation6], 512
        $region68: #{tpu_custom_call.1} parent=55 // pred_fallthru
          _
        // Predicated region
        $region69: #{tpu_custom_call.1} parent=55 // pred_check
          %p391 = pneg %p208
        $region70: #{tpu_custom_call.1} parent=55 // pred_check_branch
          %393 = sbr.rel (%p391) target = $region72
        $region71: #{tpu_custom_call.1} parent=55 // pred_region
          %394 = dma.done [#allocation9], 512
        $region72: #{tpu_custom_call.1} parent=55 // pred_fallthru
          _
        %s395 = sand.u32 %s38, 1
        %s396 = scalar_lea.sflag [#allocation3], %s395
        %s397 = sand.u32 %s38, 1
        %s398 = smul.addr %s397, 32
        %s399 = scalar_lea.vmem [#allocation2], %s398
        %p400 = pneg %p51
        %p401 = pneg %p48
        %s402 = sand.u32 %s30, 1
        %s403 = scalar_lea.sflag [#allocation6], %s402
        %s404 = sand.u32 %s64, 1
        %s405 = smul.addr %s404, 32
        %s406 = scalar_lea.vmem [#allocation5], %s405
        %p407 = pneg %p77
        %p408 = pneg %p74
        %s409 = smul.u32 4, %s30
        %p410 = scmp.lt.s32.totalorder %s409, 11
        %s411 = scalar_select %p410, %s409, 11
        %s412 = scalar_lea.vmem %s2, %s411
        %p413 = pneg %p103
        %p414 = pneg %p100
        %p415 = pneg %p124
        %p416 = pneg %p121
        %p417 = pneg %p145
        %p418 = pneg %p142
        %p419 = pneg %p166
        %p420 = pneg %p163
        %p421 = pneg %p187
        %p422 = pneg %p184
        %p423 = pneg %p208
        %p424 = pneg %p205
        %p425 = pneg %p229
        %p426 = pneg %p226
        %p427 = pneg %p255
        %p428 = pneg %p252
        %s429 = sand.u32 %s242, 1
        %s430 = scalar_lea.sflag [#allocation4], %s429
        %s431 = sand.u32 %s242, 1
        %s432 = smul.addr %s431, 32
        %s433 = scalar_lea.vmem [#allocation10], %s432
        %s434 = smul.u32 4, %s30
        %s435 = smul.u32 4, %s30
        %s436 = smul.u32 4, %s30
        %p437 = scmp.lt.s32.totalorder %s436, 11
        %s438 = scalar_select %p437, %s436, 11
        %s439 = scalar_lea.vmem %s2, %s438
        %s440 = smul.u32 4, %s30
        %s441 = smul.u32 4, %s30
        %v442 = vld [vmem:[%s373] sm:$0xff]
        %v443 = vld [vmem:[%s373 + $0x8] sm:$0xff]
        %v444 = vld [vmem:[%s373 + $0x10] sm:$0xff]
        %v445 = vld [vmem:[%s373 + $0x18] sm:$0xff]
        %v446 = vld [vmem:[%s382] sm:$0xff]
        %v447 = vld [vmem:[%s382 + $0x8] sm:$0xff]
        %v448 = vld [vmem:[%s382 + $0x10] sm:$0xff]
        %v449 = vld [vmem:[%s382 + $0x18] sm:$0xff]
        %v450 = vld [vmem:[%s439] sm:$0x1]
        %v451 = vld [vmem:[%s439 + $0x1] sm:$0x1]
        %v452 = vld [vmem:[%s439 + $0x2] sm:$0x1]
        %v453 = vld [vmem:[%s439 + $0x3] sm:$0x1]
        %v454 = vadd.f32 %v442, %v446
        %v455 = vadd.f32 %v443, %v447
        %v456 = vadd.f32 %v444, %v448
        %v457 = vadd.f32 %v445, %v449
        %v458 = vld [vmem:[#allocation7] sm:$0xff]
        %v459 = vld [vmem:[#allocation7 + $0x8] sm:$0xff]
        %v460 = vld [vmem:[#allocation7 + $0x10] sm:$0xff]
        %v461 = vld [vmem:[#allocation7 + $0x18] sm:$0xff]
        %v462 = vld [vmem:[%s4] sm:$0x1]
        %v464 = vlaneseq
        %v465 = vshrl.u32 %v464, 7
        %v466 = vsub.s32 0, %v465
        %v467 = vrot.slane %v462, %v466
        %vm469 = vcmask 261120
        %v471 = vsel %vm469, %v454, 0
        %v474 = vsel %vm469, %v455, 0
        %v477 = vsel %vm469, %v456, 0
        %v480 = vsel %vm469, %v457, 0
        %482 = vmatprep.subr.mxu0 0.0
        %483 = vmatpush1.msra.mxu0 %v458
        %484 = vmatprep.subr.mxu0 0.0
        %485 = vmatpush1.msra.mxu0 %v459
        %486 = vmatprep.subr.mxu0 0.0
        %487 = vmatpush1.msra.mxu0 %v460
        %488 = vmatprep.subr.mxu0 0.0
        %489 = vmatpush1.msra.mxu0 %v461
        %490 = vmatprep.subr.mxu0 0.0
        %491 = vmatpush1.msra.mxu0 0.0
        %492 = vmatprep.subr.mxu0 0.0
        %493 = vmatpush1.msra.mxu0 0.0
        %494 = vmatprep.subr.mxu0 0.0
        %495 = vmatpush1.msra.mxu0 0.0
        %496 = vmatprep.subr.mxu0 0.0
        %497 = vmatpush1.msra.mxu0 0.0
        %498 = vmatprep.subr.mxu0 0.0
        %499 = vmatpush1.msra.mxu0 0.0
        %500 = vmatprep.subr.mxu0 0.0
        %501 = vmatpush1.msra.mxu0 0.0
        %502 = vmatprep.subr.mxu0 0.0
        %503 = vmatpush1.msra.mxu0 0.0
        %504 = vmatprep.subr.mxu0 0.0
        %505 = vmatpush1.msra.mxu0 0.0
        %506 = vmatprep.subr.mxu0 0.0
        %507 = vmatpush1.msra.mxu0 0.0
        %508 = vmatprep.subr.mxu0 0.0
        %509 = vmatpush1.msra.mxu0 0.0
        %510 = vmatprep.subr.mxu0 0.0
        %511 = vmatpush1.msra.mxu0 0.0
        %512 = vmatprep.subr.mxu0 0.0
        %513 = vmatpush1.msra.mxu0 0.0
        %514 = vmatprep.subr.mxu0 0.0
        %515 = vmatpush1.msra.mxu0 0.0
        %516 = vmatprep.subr.mxu0 0.0
        %517 = vmatpush1.msra.mxu0 0.0
        %518 = vmatprep.subr.mxu0 0.0
        %519 = vmatpush1.msra.mxu0 0.0
        %520 = vmatprep.subr.mxu0 0.0
        %521 = vmatpush1.msra.mxu0 0.0
        %522 = vmatprep.subr.mxu0 0.0
        %523 = vmatpush1.msra.mxu0 0.0
        %524 = vmatprep.subr.mxu0 0.0
        %525 = vmatpush1.msra.mxu0 0.0
        %526 = vmatprep.subr.mxu0 0.0
        %527 = vmatpush1.msra.mxu0 0.0
        %528 = vmatprep.subr.mxu0 0.0
        %529 = vmatpush1.msra.mxu0 0.0
        %530 = vmatprep.subr.mxu0 0.0
        %531 = vmatpush1.msra.mxu0 0.0
        %532 = vmatprep.subr.mxu0 0.0
        %533 = vmatpush1.msra.mxu0 0.0
        %534 = vmatprep.subr.mxu0 0.0
        %535 = vmatpush1.msra.mxu0 0.0
        %536 = vmatprep.subr.mxu0 0.0
        %537 = vmatpush1.msra.mxu0 0.0
        %538 = vmatprep.subr.mxu0 0.0
        %539 = vmatpush1.msra.mxu0 0.0
        %540 = vmatprep.subr.mxu0 0.0
        %541 = vmatpush1.msra.mxu0 0.0
        %542 = vmatprep.subr.mxu0 0.0
        %543 = vmatpush1.msra.mxu0 0.0
        %544 = vmatprep.subr.mxu0 0.0
        %545 = vmatpush1.msra.mxu0 0.0
        %546 = vmatprep.mubr.f32.mxu0 0.0
        %547 = vmatmul.mubr.f32.gmra.mrb[0].mxu0 %v471
        %v548 = vpop.f32.mrb[0].mxu0
        %v549 = vadd.f32 %v467, %v548
        %v550 = vpop.f32.mrb[0].mxu0
        %551 = vmatprep.mubr.f32.mxu0 0.0
        %552 = vmatmul.mubr.f32.gmra.mrb[0].mxu0 %v474
        %v553 = vpop.f32.mrb[0].mxu0
        %v554 = vadd.f32 %v467, %v553
        %v555 = vpop.f32.mrb[0].mxu0
        %556 = vmatprep.mubr.f32.mxu0 0.0
        %557 = vmatmul.mubr.f32.gmra.mrb[0].mxu0 %v477
        %v558 = vpop.f32.mrb[0].mxu0
        %v559 = vadd.f32 %v467, %v558
        %v560 = vpop.f32.mrb[0].mxu0
        %561 = vmatprep.mubr.f32.mxu0 0.0
        %562 = vmatmul.mubr.f32.gmra.mrb[0].mxu0 %v480
        %v563 = vpop.f32.mrb[0].mxu0
        %v564 = vadd.f32 %v467, %v563
        %v565 = vpop.f32.mrb[0].mxu0
        %566 = vdwg.mxu0
        %v567 = vld [vmem:[%s5] sm:$0xff]
        %v568 = vld [vmem:[%s5 + $0x8] sm:$0xff]
        %v569 = vld [vmem:[%s5 + $0x10] sm:$0xff]
        %v570 = vld [vmem:[%s5 + $0x18] sm:$0xff]
        %v571 = vld [vmem:[%s6] sm:$0x1]
        %v573 = vlaneseq
        %v574 = vshrl.u32 %v573, 7
        %v575 = vsub.s32 0, %v574
        %v576 = vrot.slane %v571, %v575
        %v579 = vsel %vm469, %v442, 0
        %v582 = vsel %vm469, %v443, 0
        %v585 = vsel %vm469, %v444, 0
        %v588 = vsel %vm469, %v445, 0
        %590 = vmatprep.subr.mxu0 0.0
        %591 = vmatpush1.msra.mxu0 %v567
        %592 = vmatprep.subr.mxu0 0.0
        %593 = vmatpush1.msra.mxu0 %v568
        %594 = vmatprep.subr.mxu0 0.0
        %595 = vmatpush1.msra.mxu0 %v569
        %596 = vmatprep.subr.mxu0 0.0
        %597 = vmatpush1.msra.mxu0 %v570
        %598 = vmatprep.subr.mxu0 0.0
        %599 = vmatpush1.msra.mxu0 0.0
        %600 = vmatprep.subr.mxu0 0.0
        %601 = vmatpush1.msra.mxu0 0.0
        %602 = vmatprep.subr.mxu0 0.0
        %603 = vmatpush1.msra.mxu0 0.0
        %604 = vmatprep.subr.mxu0 0.0
        %605 = vmatpush1.msra.mxu0 0.0
        %606 = vmatprep.subr.mxu0 0.0
        %607 = vmatpush1.msra.mxu0 0.0
        %608 = vmatprep.subr.mxu0 0.0
        %609 = vmatpush1.msra.mxu0 0.0
        %610 = vmatprep.subr.mxu0 0.0
        %611 = vmatpush1.msra.mxu0 0.0
        %612 = vmatprep.subr.mxu0 0.0
        %613 = vmatpush1.msra.mxu0 0.0
        %614 = vmatprep.subr.mxu0 0.0
        %615 = vmatpush1.msra.mxu0 0.0
        %616 = vmatprep.subr.mxu0 0.0
        %617 = vmatpush1.msra.mxu0 0.0
        %618 = vmatprep.subr.mxu0 0.0
        %619 = vmatpush1.msra.mxu0 0.0
        %620 = vmatprep.subr.mxu0 0.0
        %621 = vmatpush1.msra.mxu0 0.0
        %622 = vmatprep.subr.mxu0 0.0
        %623 = vmatpush1.msra.mxu0 0.0
        %624 = vmatprep.subr.mxu0 0.0
        %625 = vmatpush1.msra.mxu0 0.0
        %626 = vmatprep.subr.mxu0 0.0
        %627 = vmatpush1.msra.mxu0 0.0
        %628 = vmatprep.subr.mxu0 0.0
        %629 = vmatpush1.msra.mxu0 0.0
        %630 = vmatprep.subr.mxu0 0.0
        %631 = vmatpush1.msra.mxu0 0.0
        %632 = vmatprep.subr.mxu0 0.0
        %633 = vmatpush1.msra.mxu0 0.0
        %634 = vmatprep.subr.mxu0 0.0
        %635 = vmatpush1.msra.mxu0 0.0
        %636 = vmatprep.subr.mxu0 0.0
        %637 = vmatpush1.msra.mxu0 0.0
        %638 = vmatprep.subr.mxu0 0.0
        %639 = vmatpush1.msra.mxu0 0.0
        %640 = vmatprep.subr.mxu0 0.0
        %641 = vmatpush1.msra.mxu0 0.0
        %642 = vmatprep.subr.mxu0 0.0
        %643 = vmatpush1.msra.mxu0 0.0
        %644 = vmatprep.subr.mxu0 0.0
        %645 = vmatpush1.msra.mxu0 0.0
        %646 = vmatprep.subr.mxu0 0.0
        %647 = vmatpush1.msra.mxu0 0.0
        %648 = vmatprep.subr.mxu0 0.0
        %649 = vmatpush1.msra.mxu0 0.0
        %650 = vmatprep.subr.mxu0 0.0
        %651 = vmatpush1.msra.mxu0 0.0
        %652 = vmatprep.subr.mxu0 0.0
        %653 = vmatpush1.msra.mxu0 0.0
        %654 = vmatprep.mubr.f32.mxu0 0.0
        %655 = vmatmul.mubr.f32.gmra.mrb[0].mxu0 %v579
        %v656 = vpop.f32.mrb[0].mxu0
        %v657 = vadd.f32 %v576, %v656
        %v658 = vpop.f32.mrb[0].mxu0
        %659 = vmatprep.mubr.f32.mxu0 0.0
        %660 = vmatmul.mubr.f32.gmra.mrb[0].mxu0 %v582
        %v661 = vpop.f32.mrb[0].mxu0
        %v662 = vadd.f32 %v576, %v661
        %v663 = vpop.f32.mrb[0].mxu0
        %664 = vmatprep.mubr.f32.mxu0 0.0
        %665 = vmatmul.mubr.f32.gmra.mrb[0].mxu0 %v585
        %v666 = vpop.f32.mrb[0].mxu0
        %v667 = vadd.f32 %v576, %v666
        %v668 = vpop.f32.mrb[0].mxu0
        %669 = vmatprep.mubr.f32.mxu0 0.0
        %670 = vmatmul.mubr.f32.gmra.mrb[0].mxu0 %v588
        %v671 = vpop.f32.mrb[0].mxu0
        %v672 = vadd.f32 %v576, %v671
        %v673 = vpop.f32.mrb[0].mxu0
        %674 = vdwg.mxu0
        %v675 = vmul.f32 %v549, 0.35355338
        %v676 = vmul.f32 %v554, 0.35355338
        %v677 = vmul.f32 %v559, 0.35355338
        %v678 = vmul.f32 %v564, 0.35355338
        %v683 = vlaneseq
        %v684 = vshrl.u32 %v683, 7
        %v685 = vsub.s32 0, %v684
        %v686 = vrot.slane %v450, %v685
        %v687 = vlaneseq
        %v688 = vshrl.u32 %v687, 7
        %v689 = vsub.s32 0, %v688
        %v690 = vrot.slane %v451, %v689
        %v691 = vlaneseq
        %v692 = vshrl.u32 %v691, 7
        %v693 = vsub.s32 0, %v692
        %v694 = vrot.slane %v452, %v693
        %v695 = vlaneseq
        %v696 = vshrl.u32 %v695, 7
        %v697 = vsub.s32 0, %v696
        %v698 = vrot.slane %v453, %v697
        %704 = vrot.lane.b32.xlu0 %v549, 96
        %v705 = vpop.permute.xlu0 %704
        %vm706 = vcmask 64512
        %v708 = vsel %vm706, %v675, 0
        %v710 = vsel %vm706, %v705, 0
        %712 = vmatprep.subr.mxu0 0.0
        %713 = vmatpush1.xpose.msra.mxu0 %v710
        %714 = vmatprep.subr.mxu0 0.0
        %715 = vmatpush1.xpose.msra.mxu0 0.0
        %716 = vmatprep.subr.mxu0 0.0
        %717 = vmatpush1.xpose.msra.mxu0 0.0
        %718 = vmatprep.subr.mxu0 0.0
        %719 = vmatpush1.xpose.msra.mxu0 0.0
        %720 = vmatprep.subr.mxu0 0.0
        %721 = vmatpush1.xpose.msra.mxu0 0.0
        %722 = vmatprep.subr.mxu0 0.0
        %723 = vmatpush1.xpose.msra.mxu0 0.0
        %724 = vmatprep.subr.mxu0 0.0
        %725 = vmatpush1.xpose.msra.mxu0 0.0
        %726 = vmatprep.subr.mxu0 0.0
        %727 = vmatpush1.xpose.msra.mxu0 0.0
        %728 = vmatprep.subr.mxu0 0.0
        %729 = vmatpush1.xpose.msra.mxu0 0.0
        %730 = vmatprep.subr.mxu0 0.0
        %731 = vmatpush1.xpose.msra.mxu0 0.0
        %732 = vmatprep.subr.mxu0 0.0
        %733 = vmatpush1.xpose.msra.mxu0 0.0
        %734 = vmatprep.subr.mxu0 0.0
        %735 = vmatpush1.xpose.msra.mxu0 0.0
        %736 = vmatprep.subr.mxu0 0.0
        %737 = vmatpush1.xpose.msra.mxu0 0.0
        %738 = vmatprep.subr.mxu0 0.0
        %739 = vmatpush1.xpose.msra.mxu0 0.0
        %740 = vmatprep.subr.mxu0 0.0
        %741 = vmatpush1.xpose.msra.mxu0 0.0
        %742 = vmatprep.subr.mxu0 0.0
        %743 = vmatpush1.xpose.msra.mxu0 0.0
        %744 = vmatprep.subr.mxu0 0.0
        %745 = vmatpush1.xpose.msra.mxu0 0.0
        %746 = vmatprep.subr.mxu0 0.0
        %747 = vmatpush1.xpose.msra.mxu0 0.0
        %748 = vmatprep.subr.mxu0 0.0
        %749 = vmatpush1.xpose.msra.mxu0 0.0
        %750 = vmatprep.subr.mxu0 0.0
        %751 = vmatpush1.xpose.msra.mxu0 0.0
        %752 = vmatprep.subr.mxu0 0.0
        %753 = vmatpush1.xpose.msra.mxu0 0.0
        %754 = vmatprep.subr.mxu0 0.0
        %755 = vmatpush1.xpose.msra.mxu0 0.0
        %756 = vmatprep.subr.mxu0 0.0
        %757 = vmatpush1.xpose.msra.mxu0 0.0
        %758 = vmatprep.subr.mxu0 0.0
        %759 = vmatpush1.xpose.msra.mxu0 0.0
        %760 = vmatprep.subr.mxu0 0.0
        %761 = vmatpush1.xpose.msra.mxu0 0.0
        %762 = vmatprep.subr.mxu0 0.0
        %763 = vmatpush1.xpose.msra.mxu0 0.0
        %764 = vmatprep.subr.mxu0 0.0
        %765 = vmatpush1.xpose.msra.mxu0 0.0
        %766 = vmatprep.subr.mxu0 0.0
        %767 = vmatpush1.xpose.msra.mxu0 0.0
        %768 = vmatprep.subr.mxu0 0.0
        %769 = vmatpush1.xpose.msra.mxu0 0.0
        %770 = vmatprep.subr.mxu0 0.0
        %771 = vmatpush1.xpose.msra.mxu0 0.0
        %772 = vmatprep.subr.mxu0 0.0
        %773 = vmatpush1.xpose.msra.mxu0 0.0
        %774 = vmatprep.subr.mxu0 0.0
        %775 = vmatpush1.xpose.msra.mxu0 0.0
        %776 = vmatprep.mubr.f32.mxu0 0.0
        %777 = vmatmul.mubr.f32.gmra.mrb[0].mxu0 %v708
        %v778 = vpop.f32.mrb[0].mxu0
        %v779 = vadd.f32 %v686, %v778
        %v780 = vpop.f32.mrb[0].mxu0
        %781 = vdwg.mxu0
        %783 = vrot.lane.b32.xlu0 %v554, 96
        %v784 = vpop.permute.xlu0 %783
        %v786 = vsel %vm706, %v676, 0
        %v788 = vsel %vm706, %v784, 0
        %790 = vmatprep.subr.mxu0 0.0
        %791 = vmatpush1.xpose.msra.mxu0 %v788
        %792 = vmatprep.subr.mxu0 0.0
        %793 = vmatpush1.xpose.msra.mxu0 0.0
        %794 = vmatprep.subr.mxu0 0.0
        %795 = vmatpush1.xpose.msra.mxu0 0.0
        %796 = vmatprep.subr.mxu0 0.0
        %797 = vmatpush1.xpose.msra.mxu0 0.0
        %798 = vmatprep.subr.mxu0 0.0
        %799 = vmatpush1.xpose.msra.mxu0 0.0
        %800 = vmatprep.subr.mxu0 0.0
        %801 = vmatpush1.xpose.msra.mxu0 0.0
        %802 = vmatprep.subr.mxu0 0.0
        %803 = vmatpush1.xpose.msra.mxu0 0.0
        %804 = vmatprep.subr.mxu0 0.0
        %805 = vmatpush1.xpose.msra.mxu0 0.0
        %806 = vmatprep.subr.mxu0 0.0
        %807 = vmatpush1.xpose.msra.mxu0 0.0
        %808 = vmatprep.subr.mxu0 0.0
        %809 = vmatpush1.xpose.msra.mxu0 0.0
        %810 = vmatprep.subr.mxu0 0.0
        %811 = vmatpush1.xpose.msra.mxu0 0.0
        %812 = vmatprep.subr.mxu0 0.0
        %813 = vmatpush1.xpose.msra.mxu0 0.0
        %814 = vmatprep.subr.mxu0 0.0
        %815 = vmatpush1.xpose.msra.mxu0 0.0
        %816 = vmatprep.subr.mxu0 0.0
        %817 = vmatpush1.xpose.msra.mxu0 0.0
        %818 = vmatprep.subr.mxu0 0.0
        %819 = vmatpush1.xpose.msra.mxu0 0.0
        %820 = vmatprep.subr.mxu0 0.0
        %821 = vmatpush1.xpose.msra.mxu0 0.0
        %822 = vmatprep.subr.mxu0 0.0
        %823 = vmatpush1.xpose.msra.mxu0 0.0
        %824 = vmatprep.subr.mxu0 0.0
        %825 = vmatpush1.xpose.msra.mxu0 0.0
        %826 = vmatprep.subr.mxu0 0.0
        %827 = vmatpush1.xpose.msra.mxu0 0.0
        %828 = vmatprep.subr.mxu0 0.0
        %829 = vmatpush1.xpose.msra.mxu0 0.0
        %830 = vmatprep.subr.mxu0 0.0
        %831 = vmatpush1.xpose.msra.mxu0 0.0
        %832 = vmatprep.subr.mxu0 0.0
        %833 = vmatpush1.xpose.msra.mxu0 0.0
        %834 = vmatprep.subr.mxu0 0.0
        %835 = vmatpush1.xpose.msra.mxu0 0.0
        %836 = vmatprep.subr.mxu0 0.0
        %837 = vmatpush1.xpose.msra.mxu0 0.0
        %838 = vmatprep.subr.mxu0 0.0
        %839 = vmatpush1.xpose.msra.mxu0 0.0
        %840 = vmatprep.subr.mxu0 0.0
        %841 = vmatpush1.xpose.msra.mxu0 0.0
        %842 = vmatprep.subr.mxu0 0.0
        %843 = vmatpush1.xpose.msra.mxu0 0.0
        %844 = vmatprep.subr.mxu0 0.0
        %845 = vmatpush1.xpose.msra.mxu0 0.0
        %846 = vmatprep.subr.mxu0 0.0
        %847 = vmatpush1.xpose.msra.mxu0 0.0
        %848 = vmatprep.subr.mxu0 0.0
        %849 = vmatpush1.xpose.msra.mxu0 0.0
        %850 = vmatprep.subr.mxu0 0.0
        %851 = vmatpush1.xpose.msra.mxu0 0.0
        %852 = vmatprep.subr.mxu0 0.0
        %853 = vmatpush1.xpose.msra.mxu0 0.0
        %854 = vmatprep.mubr.f32.mxu0 0.0
        %855 = vmatmul.mubr.f32.gmra.mrb[0].mxu0 %v786
        %v856 = vpop.f32.mrb[0].mxu0
        %v857 = vadd.f32 %v690, %v856
        %v858 = vpop.f32.mrb[0].mxu0
        %859 = vdwg.mxu0
        %861 = vrot.lane.b32.xlu0 %v559, 96
        %v862 = vpop.permute.xlu0 %861
        %v864 = vsel %vm706, %v677, 0
        %v866 = vsel %vm706, %v862, 0
        %868 = vmatprep.subr.mxu0 0.0
        %869 = vmatpush1.xpose.msra.mxu0 %v866
        %870 = vmatprep.subr.mxu0 0.0
        %871 = vmatpush1.xpose.msra.mxu0 0.0
        %872 = vmatprep.subr.mxu0 0.0
        %873 = vmatpush1.xpose.msra.mxu0 0.0
        %874 = vmatprep.subr.mxu0 0.0
        %875 = vmatpush1.xpose.msra.mxu0 0.0
        %876 = vmatprep.subr.mxu0 0.0
        %877 = vmatpush1.xpose.msra.mxu0 0.0
        %878 = vmatprep.subr.mxu0 0.0
        %879 = vmatpush1.xpose.msra.mxu0 0.0
        %880 = vmatprep.subr.mxu0 0.0
        %881 = vmatpush1.xpose.msra.mxu0 0.0
        %882 = vmatprep.subr.mxu0 0.0
        %883 = vmatpush1.xpose.msra.mxu0 0.0
        %884 = vmatprep.subr.mxu0 0.0
        %885 = vmatpush1.xpose.msra.mxu0 0.0
        %886 = vmatprep.subr.mxu0 0.0
        %887 = vmatpush1.xpose.msra.mxu0 0.0
        %888 = vmatprep.subr.mxu0 0.0
        %889 = vmatpush1.xpose.msra.mxu0 0.0
        %890 = vmatprep.subr.mxu0 0.0
        %891 = vmatpush1.xpose.msra.mxu0 0.0
        %892 = vmatprep.subr.mxu0 0.0
        %893 = vmatpush1.xpose.msra.mxu0 0.0
        %894 = vmatprep.subr.mxu0 0.0
        %895 = vmatpush1.xpose.msra.mxu0 0.0
        %896 = vmatprep.subr.mxu0 0.0
        %897 = vmatpush1.xpose.msra.mxu0 0.0
        %898 = vmatprep.subr.mxu0 0.0
        %899 = vmatpush1.xpose.msra.mxu0 0.0
        %900 = vmatprep.subr.mxu0 0.0
        %901 = vmatpush1.xpose.msra.mxu0 0.0
        %902 = vmatprep.subr.mxu0 0.0
        %903 = vmatpush1.xpose.msra.mxu0 0.0
        %904 = vmatprep.subr.mxu0 0.0
        %905 = vmatpush1.xpose.msra.mxu0 0.0
        %906 = vmatprep.subr.mxu0 0.0
        %907 = vmatpush1.xpose.msra.mxu0 0.0
        %908 = vmatprep.subr.mxu0 0.0
        %909 = vmatpush1.xpose.msra.mxu0 0.0
        %910 = vmatprep.subr.mxu0 0.0
        %911 = vmatpush1.xpose.msra.mxu0 0.0
        %912 = vmatprep.subr.mxu0 0.0
        %913 = vmatpush1.xpose.msra.mxu0 0.0
        %914 = vmatprep.subr.mxu0 0.0
        %915 = vmatpush1.xpose.msra.mxu0 0.0
        %916 = vmatprep.subr.mxu0 0.0
        %917 = vmatpush1.xpose.msra.mxu0 0.0
        %918 = vmatprep.subr.mxu0 0.0
        %919 = vmatpush1.xpose.msra.mxu0 0.0
        %920 = vmatprep.subr.mxu0 0.0
        %921 = vmatpush1.xpose.msra.mxu0 0.0
        %922 = vmatprep.subr.mxu0 0.0
        %923 = vmatpush1.xpose.msra.mxu0 0.0
        %924 = vmatprep.subr.mxu0 0.0
        %925 = vmatpush1.xpose.msra.mxu0 0.0
        %926 = vmatprep.subr.mxu0 0.0
        %927 = vmatpush1.xpose.msra.mxu0 0.0
        %928 = vmatprep.subr.mxu0 0.0
        %929 = vmatpush1.xpose.msra.mxu0 0.0
        %930 = vmatprep.subr.mxu0 0.0
        %931 = vmatpush1.xpose.msra.mxu0 0.0
        %932 = vmatprep.mubr.f32.mxu0 0.0
        %933 = vmatmul.mubr.f32.gmra.mrb[0].mxu0 %v864
        %v934 = vpop.f32.mrb[0].mxu0
        %v935 = vadd.f32 %v694, %v934
        %v936 = vpop.f32.mrb[0].mxu0
        %937 = vdwg.mxu0
        %939 = vrot.lane.b32.xlu0 %v564, 96
        %v940 = vpop.permute.xlu0 %939
        %v942 = vsel %vm706, %v678, 0
        %v944 = vsel %vm706, %v940, 0
        %946 = vmatprep.subr.mxu0 0.0
        %947 = vmatpush1.xpose.msra.mxu0 %v944
        %948 = vmatprep.subr.mxu0 0.0
        %949 = vmatpush1.xpose.msra.mxu0 0.0
        %950 = vmatprep.subr.mxu0 0.0
        %951 = vmatpush1.xpose.msra.mxu0 0.0
        %952 = vmatprep.subr.mxu0 0.0
        %953 = vmatpush1.xpose.msra.mxu0 0.0
        %954 = vmatprep.subr.mxu0 0.0
        %955 = vmatpush1.xpose.msra.mxu0 0.0
        %956 = vmatprep.subr.mxu0 0.0
        %957 = vmatpush1.xpose.msra.mxu0 0.0
        %958 = vmatprep.subr.mxu0 0.0
        %959 = vmatpush1.xpose.msra.mxu0 0.0
        %960 = vmatprep.subr.mxu0 0.0
        %961 = vmatpush1.xpose.msra.mxu0 0.0
        %962 = vmatprep.subr.mxu0 0.0
        %963 = vmatpush1.xpose.msra.mxu0 0.0
        %964 = vmatprep.subr.mxu0 0.0
        %965 = vmatpush1.xpose.msra.mxu0 0.0
        %966 = vmatprep.subr.mxu0 0.0
        %967 = vmatpush1.xpose.msra.mxu0 0.0
        %968 = vmatprep.subr.mxu0 0.0
        %969 = vmatpush1.xpose.msra.mxu0 0.0
        %970 = vmatprep.subr.mxu0 0.0
        %971 = vmatpush1.xpose.msra.mxu0 0.0
        %972 = vmatprep.subr.mxu0 0.0
        %973 = vmatpush1.xpose.msra.mxu0 0.0
        %974 = vmatprep.subr.mxu0 0.0
        %975 = vmatpush1.xpose.msra.mxu0 0.0
        %976 = vmatprep.subr.mxu0 0.0
        %977 = vmatpush1.xpose.msra.mxu0 0.0
        %978 = vmatprep.subr.mxu0 0.0
        %979 = vmatpush1.xpose.msra.mxu0 0.0
        %980 = vmatprep.subr.mxu0 0.0
        %981 = vmatpush1.xpose.msra.mxu0 0.0
        %982 = vmatprep.subr.mxu0 0.0
        %983 = vmatpush1.xpose.msra.mxu0 0.0
        %984 = vmatprep.subr.mxu0 0.0
        %985 = vmatpush1.xpose.msra.mxu0 0.0
        %986 = vmatprep.subr.mxu0 0.0
        %987 = vmatpush1.xpose.msra.mxu0 0.0
        %988 = vmatprep.subr.mxu0 0.0
        %989 = vmatpush1.xpose.msra.mxu0 0.0
        %990 = vmatprep.subr.mxu0 0.0
        %991 = vmatpush1.xpose.msra.mxu0 0.0
        %992 = vmatprep.subr.mxu0 0.0
        %993 = vmatpush1.xpose.msra.mxu0 0.0
        %994 = vmatprep.subr.mxu0 0.0
        %995 = vmatpush1.xpose.msra.mxu0 0.0
        %996 = vmatprep.subr.mxu0 0.0
        %997 = vmatpush1.xpose.msra.mxu0 0.0
        %998 = vmatprep.subr.mxu0 0.0
        %999 = vmatpush1.xpose.msra.mxu0 0.0
        %1000 = vmatprep.subr.mxu0 0.0
        %1001 = vmatpush1.xpose.msra.mxu0 0.0
        %1002 = vmatprep.subr.mxu0 0.0
        %1003 = vmatpush1.xpose.msra.mxu0 0.0
        %1004 = vmatprep.subr.mxu0 0.0
        %1005 = vmatpush1.xpose.msra.mxu0 0.0
        %1006 = vmatprep.subr.mxu0 0.0
        %1007 = vmatpush1.xpose.msra.mxu0 0.0
        %1008 = vmatprep.subr.mxu0 0.0
        %1009 = vmatpush1.xpose.msra.mxu0 0.0
        %1010 = vmatprep.mubr.f32.mxu0 0.0
        %1011 = vmatmul.mubr.f32.gmra.mrb[0].mxu0 %v942
        %v1012 = vpop.f32.mrb[0].mxu0
        %v1013 = vadd.f32 %v698, %v1012
        %v1014 = vpop.f32.mrb[0].mxu0
        %1015 = vdwg.mxu0
        %v1016 = vsel %vm706, %v779, -inf
        %1017 = vmax.xlane.f32.xlu0 %v1016
        %v1018 = vpop.xlane.xlu0 %1017
        %v1019 = vsel %vm706, %v857, -inf
        %1020 = vmax.xlane.f32.xlu0 %v1019
        %v1021 = vpop.xlane.xlu0 %1020
        %v1022 = vsel %vm706, %v935, -inf
        %1023 = vmax.xlane.f32.xlu0 %v1022
        %v1024 = vpop.xlane.xlu0 %1023
        %v1025 = vsel %vm706, %v1013, -inf
        %1026 = vmax.xlane.f32.xlu0 %v1025
        %v1027 = vpop.xlane.xlu0 %1026
        %v1028 = vsub.f32 %v779, %v1018
        %v1029 = vsub.f32 %v857, %v1021
        %v1030 = vsub.f32 %v935, %v1024
        %v1031 = vsub.f32 %v1013, %v1027
        %v1032 = vmul.f32 %v1028, 1.442695
        %v1033 = vpow.pop %v1032
        %v1034 = vmul.f32 %v1029, 1.442695
        %v1035 = vpow.pop %v1034
        %v1036 = vmul.f32 %v1030, 1.442695
        %v1037 = vpow.pop %v1036
        %v1038 = vmul.f32 %v1031, 1.442695
        %v1039 = vpow.pop %v1038
        %v1040 = vsel %vm706, %v1033, 0.0
        %1041 = vadd.xlane.f32.xlu0 %v1040
        %v1042 = vpop.xlane.xlu0 %1041
        %v1043 = vsel %vm706, %v1035, 0.0
        %1044 = vadd.xlane.f32.xlu0 %v1043
        %v1045 = vpop.xlane.xlu0 %1044
        %v1046 = vsel %vm706, %v1037, 0.0
        %1047 = vadd.xlane.f32.xlu0 %v1046
        %v1048 = vpop.xlane.xlu0 %1047
        %v1049 = vsel %vm706, %v1039, 0.0
        %1050 = vadd.xlane.f32.xlu0 %v1049
        %v1051 = vpop.xlane.xlu0 %1050
        %v1052 = vrcp.pop %v1042
        %v1053 = vmul.f32 %v1033, %v1052
        %v1054 = vrcp.pop %v1045
        %v1055 = vmul.f32 %v1035, %v1054
        %v1056 = vrcp.pop %v1048
        %v1057 = vmul.f32 %v1037, %v1056
        %v1058 = vrcp.pop %v1051
        %v1059 = vmul.f32 %v1039, %v1058
        %v1061 = vsel %vm706, %v1053, 0
        %1063 = vmatprep.subr.mxu0 0.0
        %1064 = vmatpush1.msra.mxu0 %v657
        %1065 = vmatprep.subr.mxu0 0.0
        %1066 = vmatpush1.msra.mxu0 0.0
        %1067 = vmatprep.subr.mxu0 0.0
        %1068 = vmatpush1.msra.mxu0 0.0
        %1069 = vmatprep.subr.mxu0 0.0
        %1070 = vmatpush1.msra.mxu0 0.0
        %1071 = vmatprep.subr.mxu0 0.0
        %1072 = vmatpush1.msra.mxu0 0.0
        %1073 = vmatprep.subr.mxu0 0.0
        %1074 = vmatpush1.msra.mxu0 0.0
        %1075 = vmatprep.subr.mxu0 0.0
        %1076 = vmatpush1.msra.mxu0 0.0
        %1077 = vmatprep.subr.mxu0 0.0
        %1078 = vmatpush1.msra.mxu0 0.0
        %1079 = vmatprep.subr.mxu0 0.0
        %1080 = vmatpush1.msra.mxu0 0.0
        %1081 = vmatprep.subr.mxu0 0.0
        %1082 = vmatpush1.msra.mxu0 0.0
        %1083 = vmatprep.subr.mxu0 0.0
        %1084 = vmatpush1.msra.mxu0 0.0
        %1085 = vmatprep.subr.mxu0 0.0
        %1086 = vmatpush1.msra.mxu0 0.0
        %1087 = vmatprep.subr.mxu0 0.0
        %1088 = vmatpush1.msra.mxu0 0.0
        %1089 = vmatprep.subr.mxu0 0.0
        %1090 = vmatpush1.msra.mxu0 0.0
        %1091 = vmatprep.subr.mxu0 0.0
        %1092 = vmatpush1.msra.mxu0 0.0
        %1093 = vmatprep.subr.mxu0 0.0
        %1094 = vmatpush1.msra.mxu0 0.0
        %1095 = vmatprep.subr.mxu0 0.0
        %1096 = vmatpush1.msra.mxu0 0.0
        %1097 = vmatprep.subr.mxu0 0.0
        %1098 = vmatpush1.msra.mxu0 0.0
        %1099 = vmatprep.subr.mxu0 0.0
        %1100 = vmatpush1.msra.mxu0 0.0
        %1101 = vmatprep.subr.mxu0 0.0
        %1102 = vmatpush1.msra.mxu0 0.0
        %1103 = vmatprep.subr.mxu0 0.0
        %1104 = vmatpush1.msra.mxu0 0.0
        %1105 = vmatprep.subr.mxu0 0.0
        %1106 = vmatpush1.msra.mxu0 0.0
        %1107 = vmatprep.subr.mxu0 0.0
        %1108 = vmatpush1.msra.mxu0 0.0
        %1109 = vmatprep.subr.mxu0 0.0
        %1110 = vmatpush1.msra.mxu0 0.0
        %1111 = vmatprep.subr.mxu0 0.0
        %1112 = vmatpush1.msra.mxu0 0.0
        %1113 = vmatprep.subr.mxu0 0.0
        %1114 = vmatpush1.msra.mxu0 0.0
        %1115 = vmatprep.subr.mxu0 0.0
        %1116 = vmatpush1.msra.mxu0 0.0
        %1117 = vmatprep.subr.mxu0 0.0
        %1118 = vmatpush1.msra.mxu0 0.0
        %1119 = vmatprep.subr.mxu0 0.0
        %1120 = vmatpush1.msra.mxu0 0.0
        %1121 = vmatprep.subr.mxu0 0.0
        %1122 = vmatpush1.msra.mxu0 0.0
        %1123 = vmatprep.subr.mxu0 0.0
        %1124 = vmatpush1.msra.mxu0 0.0
        %1125 = vmatprep.subr.mxu0 0.0
        %1126 = vmatpush1.msra.mxu0 0.0
        %1127 = vmatprep.mubr.f32.mxu0 0.0
        %1128 = vmatmul.mubr.f32.gmra.mrb[0].mxu0 %v1061
        %v1129 = vpop.f32.mrb[0].mxu0
        %v1130 = vadd.f32 0.0, %v1129
        %v1131 = vpop.f32.mrb[0].mxu0
        %1132 = vdwg.mxu0
        %v1134 = vsel %vm706, %v1055, 0
        %1136 = vmatprep.subr.mxu0 0.0
        %1137 = vmatpush1.msra.mxu0 %v662
        %1138 = vmatprep.subr.mxu0 0.0
        %1139 = vmatpush1.msra.mxu0 0.0
        %1140 = vmatprep.subr.mxu0 0.0
        %1141 = vmatpush1.msra.mxu0 0.0
        %1142 = vmatprep.subr.mxu0 0.0
        %1143 = vmatpush1.msra.mxu0 0.0
        %1144 = vmatprep.subr.mxu0 0.0
        %1145 = vmatpush1.msra.mxu0 0.0
        %1146 = vmatprep.subr.mxu0 0.0
        %1147 = vmatpush1.msra.mxu0 0.0
        %1148 = vmatprep.subr.mxu0 0.0
        %1149 = vmatpush1.msra.mxu0 0.0
        %1150 = vmatprep.subr.mxu0 0.0
        %1151 = vmatpush1.msra.mxu0 0.0
        %1152 = vmatprep.subr.mxu0 0.0
        %1153 = vmatpush1.msra.mxu0 0.0
        %1154 = vmatprep.subr.mxu0 0.0
        %1155 = vmatpush1.msra.mxu0 0.0
        %1156 = vmatprep.subr.mxu0 0.0
        %1157 = vmatpush1.msra.mxu0 0.0
        %1158 = vmatprep.subr.mxu0 0.0
        %1159 = vmatpush1.msra.mxu0 0.0
        %1160 = vmatprep.subr.mxu0 0.0
        %1161 = vmatpush1.msra.mxu0 0.0
        %1162 = vmatprep.subr.mxu0 0.0
        %1163 = vmatpush1.msra.mxu0 0.0
        %1164 = vmatprep.subr.mxu0 0.0
        %1165 = vmatpush1.msra.mxu0 0.0
        %1166 = vmatprep.subr.mxu0 0.0
        %1167 = vmatpush1.msra.mxu0 0.0
        %1168 = vmatprep.subr.mxu0 0.0
        %1169 = vmatpush1.msra.mxu0 0.0
        %1170 = vmatprep.subr.mxu0 0.0
        %1171 = vmatpush1.msra.mxu0 0.0
        %1172 = vmatprep.subr.mxu0 0.0
        %1173 = vmatpush1.msra.mxu0 0.0
        %1174 = vmatprep.subr.mxu0 0.0
        %1175 = vmatpush1.msra.mxu0 0.0
        %1176 = vmatprep.subr.mxu0 0.0
        %1177 = vmatpush1.msra.mxu0 0.0
        %1178 = vmatprep.subr.mxu0 0.0
        %1179 = vmatpush1.msra.mxu0 0.0
        %1180 = vmatprep.subr.mxu0 0.0
        %1181 = vmatpush1.msra.mxu0 0.0
        %1182 = vmatprep.subr.mxu0 0.0
        %1183 = vmatpush1.msra.mxu0 0.0
        %1184 = vmatprep.subr.mxu0 0.0
        %1185 = vmatpush1.msra.mxu0 0.0
        %1186 = vmatprep.subr.mxu0 0.0
        %1187 = vmatpush1.msra.mxu0 0.0
        %1188 = vmatprep.subr.mxu0 0.0
        %1189 = vmatpush1.msra.mxu0 0.0
        %1190 = vmatprep.subr.mxu0 0.0
        %1191 = vmatpush1.msra.mxu0 0.0
        %1192 = vmatprep.subr.mxu0 0.0
        %1193 = vmatpush1.msra.mxu0 0.0
        %1194 = vmatprep.subr.mxu0 0.0
        %1195 = vmatpush1.msra.mxu0 0.0
        %1196 = vmatprep.subr.mxu0 0.0
        %1197 = vmatpush1.msra.mxu0 0.0
        %1198 = vmatprep.subr.mxu0 0.0
        %1199 = vmatpush1.msra.mxu0 0.0
        %1200 = vmatprep.mubr.f32.mxu0 0.0
        %1201 = vmatmul.mubr.f32.gmra.mrb[0].mxu0 %v1134
        %v1202 = vpop.f32.mrb[0].mxu0
        %v1203 = vadd.f32 0.0, %v1202
        %v1204 = vpop.f32.mrb[0].mxu0
        %1205 = vdwg.mxu0
        %v1207 = vsel %vm706, %v1057, 0
        %1209 = vmatprep.subr.mxu0 0.0
        %1210 = vmatpush1.msra.mxu0 %v667
        %1211 = vmatprep.subr.mxu0 0.0
        %1212 = vmatpush1.msra.mxu0 0.0
        %1213 = vmatprep.subr.mxu0 0.0
        %1214 = vmatpush1.msra.mxu0 0.0
        %1215 = vmatprep.subr.mxu0 0.0
        %1216 = vmatpush1.msra.mxu0 0.0
        %1217 = vmatprep.subr.mxu0 0.0
        %1218 = vmatpush1.msra.mxu0 0.0
        %1219 = vmatprep.subr.mxu0 0.0
        %1220 = vmatpush1.msra.mxu0 0.0
        %1221 = vmatprep.subr.mxu0 0.0
        %1222 = vmatpush1.msra.mxu0 0.0
        %1223 = vmatprep.subr.mxu0 0.0
        %1224 = vmatpush1.msra.mxu0 0.0
        %1225 = vmatprep.subr.mxu0 0.0
        %1226 = vmatpush1.msra.mxu0 0.0
        %1227 = vmatprep.subr.mxu0 0.0
        %1228 = vmatpush1.msra.mxu0 0.0
        %1229 = vmatprep.subr.mxu0 0.0
        %1230 = vmatpush1.msra.mxu0 0.0
        %1231 = vmatprep.subr.mxu0 0.0
        %1232 = vmatpush1.msra.mxu0 0.0
        %1233 = vmatprep.subr.mxu0 0.0
        %1234 = vmatpush1.msra.mxu0 0.0
        %1235 = vmatprep.subr.mxu0 0.0
        %1236 = vmatpush1.msra.mxu0 0.0
        %1237 = vmatprep.subr.mxu0 0.0
        %1238 = vmatpush1.msra.mxu0 0.0
        %1239 = vmatprep.subr.mxu0 0.0
        %1240 = vmatpush1.msra.mxu0 0.0
        %1241 = vmatprep.subr.mxu0 0.0
        %1242 = vmatpush1.msra.mxu0 0.0
        %1243 = vmatprep.subr.mxu0 0.0
        %1244 = vmatpush1.msra.mxu0 0.0
        %1245 = vmatprep.subr.mxu0 0.0
        %1246 = vmatpush1.msra.mxu0 0.0
        %1247 = vmatprep.subr.mxu0 0.0
        %1248 = vmatpush1.msra.mxu0 0.0
        %1249 = vmatprep.subr.mxu0 0.0
        %1250 = vmatpush1.msra.mxu0 0.0
        %1251 = vmatprep.subr.mxu0 0.0
        %1252 = vmatpush1.msra.mxu0 0.0
        %1253 = vmatprep.subr.mxu0 0.0
        %1254 = vmatpush1.msra.mxu0 0.0
        %1255 = vmatprep.subr.mxu0 0.0
        %1256 = vmatpush1.msra.mxu0 0.0
        %1257 = vmatprep.subr.mxu0 0.0
        %1258 = vmatpush1.msra.mxu0 0.0
        %1259 = vmatprep.subr.mxu0 0.0
        %1260 = vmatpush1.msra.mxu0 0.0
        %1261 = vmatprep.subr.mxu0 0.0
        %1262 = vmatpush1.msra.mxu0 0.0
        %1263 = vmatprep.subr.mxu0 0.0
        %1264 = vmatpush1.msra.mxu0 0.0
        %1265 = vmatprep.subr.mxu0 0.0
        %1266 = vmatpush1.msra.mxu0 0.0
        %1267 = vmatprep.subr.mxu0 0.0
        %1268 = vmatpush1.msra.mxu0 0.0
        %1269 = vmatprep.subr.mxu0 0.0
        %1270 = vmatpush1.msra.mxu0 0.0
        %1271 = vmatprep.subr.mxu0 0.0
        %1272 = vmatpush1.msra.mxu0 0.0
        %1273 = vmatprep.mubr.f32.mxu0 0.0
        %1274 = vmatmul.mubr.f32.gmra.mrb[0].mxu0 %v1207
        %v1275 = vpop.f32.mrb[0].mxu0
        %v1276 = vadd.f32 0.0, %v1275
        %v1277 = vpop.f32.mrb[0].mxu0
        %1278 = vdwg.mxu0
        %v1280 = vsel %vm706, %v1059, 0
        %1282 = vmatprep.subr.mxu0 0.0
        %1283 = vmatpush1.msra.mxu0 %v672
        %1284 = vmatprep.subr.mxu0 0.0
        %1285 = vmatpush1.msra.mxu0 0.0
        %1286 = vmatprep.subr.mxu0 0.0
        %1287 = vmatpush1.msra.mxu0 0.0
        %1288 = vmatprep.subr.mxu0 0.0
        %1289 = vmatpush1.msra.mxu0 0.0
        %1290 = vmatprep.subr.mxu0 0.0
        %1291 = vmatpush1.msra.mxu0 0.0
        %1292 = vmatprep.subr.mxu0 0.0
        %1293 = vmatpush1.msra.mxu0 0.0
        %1294 = vmatprep.subr.mxu0 0.0
        %1295 = vmatpush1.msra.mxu0 0.0
        %1296 = vmatprep.subr.mxu0 0.0
        %1297 = vmatpush1.msra.mxu0 0.0
        %1298 = vmatprep.subr.mxu0 0.0
        %1299 = vmatpush1.msra.mxu0 0.0
        %1300 = vmatprep.subr.mxu0 0.0
        %1301 = vmatpush1.msra.mxu0 0.0
        %1302 = vmatprep.subr.mxu0 0.0
        %1303 = vmatpush1.msra.mxu0 0.0
        %1304 = vmatprep.subr.mxu0 0.0
        %1305 = vmatpush1.msra.mxu0 0.0
        %1306 = vmatprep.subr.mxu0 0.0
        %1307 = vmatpush1.msra.mxu0 0.0
        %1308 = vmatprep.subr.mxu0 0.0
        %1309 = vmatpush1.msra.mxu0 0.0
        %1310 = vmatprep.subr.mxu0 0.0
        %1311 = vmatpush1.msra.mxu0 0.0
        %1312 = vmatprep.subr.mxu0 0.0
        %1313 = vmatpush1.msra.mxu0 0.0
        %1314 = vmatprep.subr.mxu0 0.0
        %1315 = vmatpush1.msra.mxu0 0.0
        %1316 = vmatprep.subr.mxu0 0.0
        %1317 = vmatpush1.msra.mxu0 0.0
        %1318 = vmatprep.subr.mxu0 0.0
        %1319 = vmatpush1.msra.mxu0 0.0
        %1320 = vmatprep.subr.mxu0 0.0
        %1321 = vmatpush1.msra.mxu0 0.0
        %1322 = vmatprep.subr.mxu0 0.0
        %1323 = vmatpush1.msra.mxu0 0.0
        %1324 = vmatprep.subr.mxu0 0.0
        %1325 = vmatpush1.msra.mxu0 0.0
        %1326 = vmatprep.subr.mxu0 0.0
        %1327 = vmatpush1.msra.mxu0 0.0
        %1328 = vmatprep.subr.mxu0 0.0
        %1329 = vmatpush1.msra.mxu0 0.0
        %1330 = vmatprep.subr.mxu0 0.0
        %1331 = vmatpush1.msra.mxu0 0.0
        %1332 = vmatprep.subr.mxu0 0.0
        %1333 = vmatpush1.msra.mxu0 0.0
        %1334 = vmatprep.subr.mxu0 0.0
        %1335 = vmatpush1.msra.mxu0 0.0
        %1336 = vmatprep.subr.mxu0 0.0
        %1337 = vmatpush1.msra.mxu0 0.0
        %1338 = vmatprep.subr.mxu0 0.0
        %1339 = vmatpush1.msra.mxu0 0.0
        %1340 = vmatprep.subr.mxu0 0.0
        %1341 = vmatpush1.msra.mxu0 0.0
        %1342 = vmatprep.subr.mxu0 0.0
        %1343 = vmatpush1.msra.mxu0 0.0
        %1344 = vmatprep.subr.mxu0 0.0
        %1345 = vmatpush1.msra.mxu0 0.0
        %1346 = vmatprep.mubr.f32.mxu0 0.0
        %1347 = vmatmul.mubr.f32.gmra.mrb[0].mxu0 %v1280
        %v1348 = vpop.f32.mrb[0].mxu0
        %v1349 = vadd.f32 0.0, %v1348
        %v1350 = vpop.f32.mrb[0].mxu0
        %1351 = vdwg.mxu0
        %1352 = vrot.lane.b32.xlu0 %v675, 120
        %v1353 = vpop.permute.xlu0 %1352
        %1354 = vrot.lane.b32.xlu0 %v549, 88
        %v1355 = vpop.permute.xlu0 %1354
        %v1356 = vsel %vm706, %v1353, 0
        %v1358 = vsel %vm706, %v1355, 0
        %1360 = vmatprep.subr.mxu0 0.0
        %1361 = vmatpush1.xpose.msra.mxu0 %v1358
        %1362 = vmatprep.subr.mxu0 0.0
        %1363 = vmatpush1.xpose.msra.mxu0 0.0
        %1364 = vmatprep.subr.mxu0 0.0
        %1365 = vmatpush1.xpose.msra.mxu0 0.0
        %1366 = vmatprep.subr.mxu0 0.0
        %1367 = vmatpush1.xpose.msra.mxu0 0.0
        %1368 = vmatprep.subr.mxu0 0.0
        %1369 = vmatpush1.xpose.msra.mxu0 0.0
        %1370 = vmatprep.subr.mxu0 0.0
        %1371 = vmatpush1.xpose.msra.mxu0 0.0
        %1372 = vmatprep.subr.mxu0 0.0
        %1373 = vmatpush1.xpose.msra.mxu0 0.0
        %1374 = vmatprep.subr.mxu0 0.0
        %1375 = vmatpush1.xpose.msra.mxu0 0.0
        %1376 = vmatprep.subr.mxu0 0.0
        %1377 = vmatpush1.xpose.msra.mxu0 0.0
        %1378 = vmatprep.subr.mxu0 0.0
        %1379 = vmatpush1.xpose.msra.mxu0 0.0
        %1380 = vmatprep.subr.mxu0 0.0
        %1381 = vmatpush1.xpose.msra.mxu0 0.0
        %1382 = vmatprep.subr.mxu0 0.0
        %1383 = vmatpush1.xpose.msra.mxu0 0.0
        %1384 = vmatprep.subr.mxu0 0.0
        %1385 = vmatpush1.xpose.msra.mxu0 0.0
        %1386 = vmatprep.subr.mxu0 0.0
        %1387 = vmatpush1.xpose.msra.mxu0 0.0
        %1388 = vmatprep.subr.mxu0 0.0
        %1389 = vmatpush1.xpose.msra.mxu0 0.0
        %1390 = vmatprep.subr.mxu0 0.0
        %1391 = vmatpush1.xpose.msra.mxu0 0.0
        %1392 = vmatprep.subr.mxu0 0.0
        %1393 = vmatpush1.xpose.msra.mxu0 0.0
        %1394 = vmatprep.subr.mxu0 0.0
        %1395 = vmatpush1.xpose.msra.mxu0 0.0
        %1396 = vmatprep.subr.mxu0 0.0
        %1397 = vmatpush1.xpose.msra.mxu0 0.0
        %1398 = vmatprep.subr.mxu0 0.0
        %1399 = vmatpush1.xpose.msra.mxu0 0.0
        %1400 = vmatprep.subr.mxu0 0.0
        %1401 = vmatpush1.xpose.msra.mxu0 0.0
        %1402 = vmatprep.subr.mxu0 0.0
        %1403 = vmatpush1.xpose.msra.mxu0 0.0
        %1404 = vmatprep.subr.mxu0 0.0
        %1405 = vmatpush1.xpose.msra.mxu0 0.0
        %1406 = vmatprep.subr.mxu0 0.0
        %1407 = vmatpush1.xpose.msra.mxu0 0.0
        %1408 = vmatprep.subr.mxu0 0.0
        %1409 = vmatpush1.xpose.msra.mxu0 0.0
        %1410 = vmatprep.subr.mxu0 0.0
        %1411 = vmatpush1.xpose.msra.mxu0 0.0
        %1412 = vmatprep.subr.mxu0 0.0
        %1413 = vmatpush1.xpose.msra.mxu0 0.0
        %1414 = vmatprep.subr.mxu0 0.0
        %1415 = vmatpush1.xpose.msra.mxu0 0.0
        %1416 = vmatprep.subr.mxu0 0.0
        %1417 = vmatpush1.xpose.msra.mxu0 0.0
        %1418 = vmatprep.subr.mxu0 0.0
        %1419 = vmatpush1.xpose.msra.mxu0 0.0
        %1420 = vmatprep.subr.mxu0 0.0
        %1421 = vmatpush1.xpose.msra.mxu0 0.0
        %1422 = vmatprep.subr.mxu0 0.0
        %1423 = vmatpush1.xpose.msra.mxu0 0.0
        %1424 = vmatprep.mubr.f32.mxu0 0.0
        %1425 = vmatmul.mubr.f32.gmra.mrb[0].mxu0 %v1356
        %v1426 = vpop.f32.mrb[0].mxu0
        %v1427 = vadd.f32 %v686, %v1426
        %v1428 = vpop.f32.mrb[0].mxu0
        %1429 = vdwg.mxu0
        %1430 = vrot.lane.b32.xlu0 %v676, 120
        %v1431 = vpop.permute.xlu0 %1430
        %1432 = vrot.lane.b32.xlu0 %v554, 88
        %v1433 = vpop.permute.xlu0 %1432
        %v1434 = vsel %vm706, %v1431, 0
        %v1436 = vsel %vm706, %v1433, 0
        %1438 = vmatprep.subr.mxu0 0.0
        %1439 = vmatpush1.xpose.msra.mxu0 %v1436
        %1440 = vmatprep.subr.mxu0 0.0
        %1441 = vmatpush1.xpose.msra.mxu0 0.0
        %1442 = vmatprep.subr.mxu0 0.0
        %1443 = vmatpush1.xpose.msra.mxu0 0.0
        %1444 = vmatprep.subr.mxu0 0.0
        %1445 = vmatpush1.xpose.msra.mxu0 0.0
        %1446 = vmatprep.subr.mxu0 0.0
        %1447 = vmatpush1.xpose.msra.mxu0 0.0
        %1448 = vmatprep.subr.mxu0 0.0
        %1449 = vmatpush1.xpose.msra.mxu0 0.0
        %1450 = vmatprep.subr.mxu0 0.0
        %1451 = vmatpush1.xpose.msra.mxu0 0.0
        %1452 = vmatprep.subr.mxu0 0.0
        %1453 = vmatpush1.xpose.msra.mxu0 0.0
        %1454 = vmatprep.subr.mxu0 0.0
        %1455 = vmatpush1.xpose.msra.mxu0 0.0
        %1456 = vmatprep.subr.mxu0 0.0
        %1457 = vmatpush1.xpose.msra.mxu0 0.0
        %1458 = vmatprep.subr.mxu0 0.0
        %1459 = vmatpush1.xpose.msra.mxu0 0.0
        %1460 = vmatprep.subr.mxu0 0.0
        %1461 = vmatpush1.xpose.msra.mxu0 0.0
        %1462 = vmatprep.subr.mxu0 0.0
        %1463 = vmatpush1.xpose.msra.mxu0 0.0
        %1464 = vmatprep.subr.mxu0 0.0
        %1465 = vmatpush1.xpose.msra.mxu0 0.0
        %1466 = vmatprep.subr.mxu0 0.0
        %1467 = vmatpush1.xpose.msra.mxu0 0.0
        %1468 = vmatprep.subr.mxu0 0.0
        %1469 = vmatpush1.xpose.msra.mxu0 0.0
        %1470 = vmatprep.subr.mxu0 0.0
        %1471 = vmatpush1.xpose.msra.mxu0 0.0
        %1472 = vmatprep.subr.mxu0 0.0
        %1473 = vmatpush1.xpose.msra.mxu0 0.0
        %1474 = vmatprep.subr.mxu0 0.0
        %1475 = vmatpush1.xpose.msra.mxu0 0.0
        %1476 = vmatprep.subr.mxu0 0.0
        %1477 = vmatpush1.xpose.msra.mxu0 0.0
        %1478 = vmatprep.subr.mxu0 0.0
        %1479 = vmatpush1.xpose.msra.mxu0 0.0
        %1480 = vmatprep.subr.mxu0 0.0
        %1481 = vmatpush1.xpose.msra.mxu0 0.0
        %1482 = vmatprep.subr.mxu0 0.0
        %1483 = vmatpush1.xpose.msra.mxu0 0.0
        %1484 = vmatprep.subr.mxu0 0.0
        %1485 = vmatpush1.xpose.msra.mxu0 0.0
        %1486 = vmatprep.subr.mxu0 0.0
        %1487 = vmatpush1.xpose.msra.mxu0 0.0
        %1488 = vmatprep.subr.mxu0 0.0
        %1489 = vmatpush1.xpose.msra.mxu0 0.0
        %1490 = vmatprep.subr.mxu0 0.0
        %1491 = vmatpush1.xpose.msra.mxu0 0.0
        %1492 = vmatprep.subr.mxu0 0.0
        %1493 = vmatpush1.xpose.msra.mxu0 0.0
        %1494 = vmatprep.subr.mxu0 0.0
        %1495 = vmatpush1.xpose.msra.mxu0 0.0
        %1496 = vmatprep.subr.mxu0 0.0
        %1497 = vmatpush1.xpose.msra.mxu0 0.0
        %1498 = vmatprep.subr.mxu0 0.0
        %1499 = vmatpush1.xpose.msra.mxu0 0.0
        %1500 = vmatprep.subr.mxu0 0.0
        %1501 = vmatpush1.xpose.msra.mxu0 0.0
        %1502 = vmatprep.mubr.f32.mxu0 0.0
        %1503 = vmatmul.mubr.f32.gmra.mrb[0].mxu0 %v1434
        %v1504 = vpop.f32.mrb[0].mxu0
        %v1505 = vadd.f32 %v690, %v1504
        %v1506 = vpop.f32.mrb[0].mxu0
        %1507 = vdwg.mxu0
        %1508 = vrot.lane.b32.xlu0 %v677, 120
        %v1509 = vpop.permute.xlu0 %1508
        %1510 = vrot.lane.b32.xlu0 %v559, 88
        %v1511 = vpop.permute.xlu0 %1510
        %v1512 = vsel %vm706, %v1509, 0
        %v1514 = vsel %vm706, %v1511, 0
        %1516 = vmatprep.subr.mxu0 0.0
        %1517 = vmatpush1.xpose.msra.mxu0 %v1514
        %1518 = vmatprep.subr.mxu0 0.0
        %1519 = vmatpush1.xpose.msra.mxu0 0.0
        %1520 = vmatprep.subr.mxu0 0.0
        %1521 = vmatpush1.xpose.msra.mxu0 0.0
        %1522 = vmatprep.subr.mxu0 0.0
        %1523 = vmatpush1.xpose.msra.mxu0 0.0
        %1524 = vmatprep.subr.mxu0 0.0
        %1525 = vmatpush1.xpose.msra.mxu0 0.0
        %1526 = vmatprep.subr.mxu0 0.0
        %1527 = vmatpush1.xpose.msra.mxu0 0.0
        %1528 = vmatprep.subr.mxu0 0.0
        %1529 = vmatpush1.xpose.msra.mxu0 0.0
        %1530 = vmatprep.subr.mxu0 0.0
        %1531 = vmatpush1.xpose.msra.mxu0 0.0
        %1532 = vmatprep.subr.mxu0 0.0
        %1533 = vmatpush1.xpose.msra.mxu0 0.0
        %1534 = vmatprep.subr.mxu0 0.0
        %1535 = vmatpush1.xpose.msra.mxu0 0.0
        %1536 = vmatprep.subr.mxu0 0.0
        %1537 = vmatpush1.xpose.msra.mxu0 0.0
        %1538 = vmatprep.subr.mxu0 0.0
        %1539 = vmatpush1.xpose.msra.mxu0 0.0
        %1540 = vmatprep.subr.mxu0 0.0
        %1541 = vmatpush1.xpose.msra.mxu0 0.0
        %1542 = vmatprep.subr.mxu0 0.0
        %1543 = vmatpush1.xpose.msra.mxu0 0.0
        %1544 = vmatprep.subr.mxu0 0.0
        %1545 = vmatpush1.xpose.msra.mxu0 0.0
        %1546 = vmatprep.subr.mxu0 0.0
        %1547 = vmatpush1.xpose.msra.mxu0 0.0
        %1548 = vmatprep.subr.mxu0 0.0
        %1549 = vmatpush1.xpose.msra.mxu0 0.0
        %1550 = vmatprep.subr.mxu0 0.0
        %1551 = vmatpush1.xpose.msra.mxu0 0.0
        %1552 = vmatprep.subr.mxu0 0.0
        %1553 = vmatpush1.xpose.msra.mxu0 0.0
        %1554 = vmatprep.subr.mxu0 0.0
        %1555 = vmatpush1.xpose.msra.mxu0 0.0
        %1556 = vmatprep.subr.mxu0 0.0
        %1557 = vmatpush1.xpose.msra.mxu0 0.0
        %1558 = vmatprep.subr.mxu0 0.0
        %1559 = vmatpush1.xpose.msra.mxu0 0.0
        %1560 = vmatprep.subr.mxu0 0.0
        %1561 = vmatpush1.xpose.msra.mxu0 0.0
        %1562 = vmatprep.subr.mxu0 0.0
        %1563 = vmatpush1.xpose.msra.mxu0 0.0
        %1564 = vmatprep.subr.mxu0 0.0
        %1565 = vmatpush1.xpose.msra.mxu0 0.0
        %1566 = vmatprep.subr.mxu0 0.0
        %1567 = vmatpush1.xpose.msra.mxu0 0.0
        %1568 = vmatprep.subr.mxu0 0.0
        %1569 = vmatpush1.xpose.msra.mxu0 0.0
        %1570 = vmatprep.subr.mxu0 0.0
        %1571 = vmatpush1.xpose.msra.mxu0 0.0
        %1572 = vmatprep.subr.mxu0 0.0
        %1573 = vmatpush1.xpose.msra.mxu0 0.0
        %1574 = vmatprep.subr.mxu0 0.0
        %1575 = vmatpush1.xpose.msra.mxu0 0.0
        %1576 = vmatprep.subr.mxu0 0.0
        %1577 = vmatpush1.xpose.msra.mxu0 0.0
        %1578 = vmatprep.subr.mxu0 0.0
        %1579 = vmatpush1.xpose.msra.mxu0 0.0
        %1580 = vmatprep.mubr.f32.mxu0 0.0
        %1581 = vmatmul.mubr.f32.gmra.mrb[0].mxu0 %v1512
        %v1582 = vpop.f32.mrb[0].mxu0
        %v1583 = vadd.f32 %v694, %v1582
        %v1584 = vpop.f32.mrb[0].mxu0
        %1585 = vdwg.mxu0
        %1586 = vrot.lane.b32.xlu0 %v678, 120
        %v1587 = vpop.permute.xlu0 %1586
        %1588 = vrot.lane.b32.xlu0 %v564, 88
        %v1589 = vpop.permute.xlu0 %1588
        %v1590 = vsel %vm706, %v1587, 0
        %v1592 = vsel %vm706, %v1589, 0
        %1594 = vmatprep.subr.mxu0 0.0
        %1595 = vmatpush1.xpose.msra.mxu0 %v1592
        %1596 = vmatprep.subr.mxu0 0.0
        %1597 = vmatpush1.xpose.msra.mxu0 0.0
        %1598 = vmatprep.subr.mxu0 0.0
        %1599 = vmatpush1.xpose.msra.mxu0 0.0
        %1600 = vmatprep.subr.mxu0 0.0
        %1601 = vmatpush1.xpose.msra.mxu0 0.0
        %1602 = vmatprep.subr.mxu0 0.0
        %1603 = vmatpush1.xpose.msra.mxu0 0.0
        %1604 = vmatprep.subr.mxu0 0.0
        %1605 = vmatpush1.xpose.msra.mxu0 0.0
        %1606 = vmatprep.subr.mxu0 0.0
        %1607 = vmatpush1.xpose.msra.mxu0 0.0
        %1608 = vmatprep.subr.mxu0 0.0
        %1609 = vmatpush1.xpose.msra.mxu0 0.0
        %1610 = vmatprep.subr.mxu0 0.0
        %1611 = vmatpush1.xpose.msra.mxu0 0.0
        %1612 = vmatprep.subr.mxu0 0.0
        %1613 = vmatpush1.xpose.msra.mxu0 0.0
        %1614 = vmatprep.subr.mxu0 0.0
        %1615 = vmatpush1.xpose.msra.mxu0 0.0
        %1616 = vmatprep.subr.mxu0 0.0
        %1617 = vmatpush1.xpose.msra.mxu0 0.0
        %1618 = vmatprep.subr.mxu0 0.0
        %1619 = vmatpush1.xpose.msra.mxu0 0.0
        %1620 = vmatprep.subr.mxu0 0.0
        %1621 = vmatpush1.xpose.msra.mxu0 0.0
        %1622 = vmatprep.subr.mxu0 0.0
        %1623 = vmatpush1.xpose.msra.mxu0 0.0
        %1624 = vmatprep.subr.mxu0 0.0
        %1625 = vmatpush1.xpose.msra.mxu0 0.0
        %1626 = vmatprep.subr.mxu0 0.0
        %1627 = vmatpush1.xpose.msra.mxu0 0.0
        %1628 = vmatprep.subr.mxu0 0.0
        %1629 = vmatpush1.xpose.msra.mxu0 0.0
        %1630 = vmatprep.subr.mxu0 0.0
        %1631 = vmatpush1.xpose.msra.mxu0 0.0
        %1632 = vmatprep.subr.mxu0 0.0
        %1633 = vmatpush1.xpose.msra.mxu0 0.0
        %1634 = vmatprep.subr.mxu0 0.0
        %1635 = vmatpush1.xpose.msra.mxu0 0.0
        %1636 = vmatprep.subr.mxu0 0.0
        %1637 = vmatpush1.xpose.msra.mxu0 0.0
        %1638 = vmatprep.subr.mxu0 0.0
        %1639 = vmatpush1.xpose.msra.mxu0 0.0
        %1640 = vmatprep.subr.mxu0 0.0
        %1641 = vmatpush1.xpose.msra.mxu0 0.0
        %1642 = vmatprep.subr.mxu0 0.0
        %1643 = vmatpush1.xpose.msra.mxu0 0.0
        %1644 = vmatprep.subr.mxu0 0.0
        %1645 = vmatpush1.xpose.msra.mxu0 0.0
        %1646 = vmatprep.subr.mxu0 0.0
        %1647 = vmatpush1.xpose.msra.mxu0 0.0
        %1648 = vmatprep.subr.mxu0 0.0
        %1649 = vmatpush1.xpose.msra.mxu0 0.0
        %1650 = vmatprep.subr.mxu0 0.0
        %1651 = vmatpush1.xpose.msra.mxu0 0.0
        %1652 = vmatprep.subr.mxu0 0.0
        %1653 = vmatpush1.xpose.msra.mxu0 0.0
        %1654 = vmatprep.subr.mxu0 0.0
        %1655 = vmatpush1.xpose.msra.mxu0 0.0
        %1656 = vmatprep.subr.mxu0 0.0
        %1657 = vmatpush1.xpose.msra.mxu0 0.0
        %1658 = vmatprep.mubr.f32.mxu0 0.0
        %1659 = vmatmul.mubr.f32.gmra.mrb[0].mxu0 %v1590
        %v1660 = vpop.f32.mrb[0].mxu0
        %v1661 = vadd.f32 %v698, %v1660
        %v1662 = vpop.f32.mrb[0].mxu0
        %1663 = vdwg.mxu0
        %v1664 = vsel %vm706, %v1427, -inf
        %1665 = vmax.xlane.f32.xlu0 %v1664
        %v1666 = vpop.xlane.xlu0 %1665
        %v1667 = vsel %vm706, %v1505, -inf
        %1668 = vmax.xlane.f32.xlu0 %v1667
        %v1669 = vpop.xlane.xlu0 %1668
        %v1670 = vsel %vm706, %v1583, -inf
        %1671 = vmax.xlane.f32.xlu0 %v1670
        %v1672 = vpop.xlane.xlu0 %1671
        %v1673 = vsel %vm706, %v1661, -inf
        %1674 = vmax.xlane.f32.xlu0 %v1673
        %v1675 = vpop.xlane.xlu0 %1674
        %v1676 = vsub.f32 %v1427, %v1666
        %v1677 = vsub.f32 %v1505, %v1669
        %v1678 = vsub.f32 %v1583, %v1672
        %v1679 = vsub.f32 %v1661, %v1675
        %v1680 = vmul.f32 %v1676, 1.442695
        %v1681 = vpow.pop %v1680
        %v1682 = vmul.f32 %v1677, 1.442695
        %v1683 = vpow.pop %v1682
        %v1684 = vmul.f32 %v1678, 1.442695
        %v1685 = vpow.pop %v1684
        %v1686 = vmul.f32 %v1679, 1.442695
        %v1687 = vpow.pop %v1686
        %v1688 = vsel %vm706, %v1681, 0.0
        %1689 = vadd.xlane.f32.xlu0 %v1688
        %v1690 = vpop.xlane.xlu0 %1689
        %v1691 = vsel %vm706, %v1683, 0.0
        %1692 = vadd.xlane.f32.xlu0 %v1691
        %v1693 = vpop.xlane.xlu0 %1692
        %v1694 = vsel %vm706, %v1685, 0.0
        %1695 = vadd.xlane.f32.xlu0 %v1694
        %v1696 = vpop.xlane.xlu0 %1695
        %v1697 = vsel %vm706, %v1687, 0.0
        %1698 = vadd.xlane.f32.xlu0 %v1697
        %v1699 = vpop.xlane.xlu0 %1698
        %v1700 = vrcp.pop %v1690
        %v1701 = vmul.f32 %v1681, %v1700
        %v1702 = vrcp.pop %v1693
        %v1703 = vmul.f32 %v1683, %v1702
        %v1704 = vrcp.pop %v1696
        %v1705 = vmul.f32 %v1685, %v1704
        %v1706 = vrcp.pop %v1699
        %v1707 = vmul.f32 %v1687, %v1706
        %1709 = vrot.lane.b32.xlu0 %v657, 120
        %v1710 = vpop.permute.xlu0 %1709
        %v1713 = vsel %vm706, %v1701, 0
        %1715 = vmatprep.subr.mxu0 0.0
        %1716 = vmatpush1.msra.mxu0 %v1710
        %1717 = vmatprep.subr.mxu0 0.0
        %1718 = vmatpush1.msra.mxu0 0.0
        %1719 = vmatprep.subr.mxu0 0.0
        %1720 = vmatpush1.msra.mxu0 0.0
        %1721 = vmatprep.subr.mxu0 0.0
        %1722 = vmatpush1.msra.mxu0 0.0
        %1723 = vmatprep.subr.mxu0 0.0
        %1724 = vmatpush1.msra.mxu0 0.0
        %1725 = vmatprep.subr.mxu0 0.0
        %1726 = vmatpush1.msra.mxu0 0.0
        %1727 = vmatprep.subr.mxu0 0.0
        %1728 = vmatpush1.msra.mxu0 0.0
        %1729 = vmatprep.subr.mxu0 0.0
        %1730 = vmatpush1.msra.mxu0 0.0
        %1731 = vmatprep.subr.mxu0 0.0
        %1732 = vmatpush1.msra.mxu0 0.0
        %1733 = vmatprep.subr.mxu0 0.0
        %1734 = vmatpush1.msra.mxu0 0.0
        %1735 = vmatprep.subr.mxu0 0.0
        %1736 = vmatpush1.msra.mxu0 0.0
        %1737 = vmatprep.subr.mxu0 0.0
        %1738 = vmatpush1.msra.mxu0 0.0
        %1739 = vmatprep.subr.mxu0 0.0
        %1740 = vmatpush1.msra.mxu0 0.0
        %1741 = vmatprep.subr.mxu0 0.0
        %1742 = vmatpush1.msra.mxu0 0.0
        %1743 = vmatprep.subr.mxu0 0.0
        %1744 = vmatpush1.msra.mxu0 0.0
        %1745 = vmatprep.subr.mxu0 0.0
        %1746 = vmatpush1.msra.mxu0 0.0
        %1747 = vmatprep.subr.mxu0 0.0
        %1748 = vmatpush1.msra.mxu0 0.0
        %1749 = vmatprep.subr.mxu0 0.0
        %1750 = vmatpush1.msra.mxu0 0.0
        %1751 = vmatprep.subr.mxu0 0.0
        %1752 = vmatpush1.msra.mxu0 0.0
        %1753 = vmatprep.subr.mxu0 0.0
        %1754 = vmatpush1.msra.mxu0 0.0
        %1755 = vmatprep.subr.mxu0 0.0
        %1756 = vmatpush1.msra.mxu0 0.0
        %1757 = vmatprep.subr.mxu0 0.0
        %1758 = vmatpush1.msra.mxu0 0.0
        %1759 = vmatprep.subr.mxu0 0.0
        %1760 = vmatpush1.msra.mxu0 0.0
        %1761 = vmatprep.subr.mxu0 0.0
        %1762 = vmatpush1.msra.mxu0 0.0
        %1763 = vmatprep.subr.mxu0 0.0
        %1764 = vmatpush1.msra.mxu0 0.0
        %1765 = vmatprep.subr.mxu0 0.0
        %1766 = vmatpush1.msra.mxu0 0.0
        %1767 = vmatprep.subr.mxu0 0.0
        %1768 = vmatpush1.msra.mxu0 0.0
        %1769 = vmatprep.subr.mxu0 0.0
        %1770 = vmatpush1.msra.mxu0 0.0
        %1771 = vmatprep.subr.mxu0 0.0
        %1772 = vmatpush1.msra.mxu0 0.0
        %1773 = vmatprep.subr.mxu0 0.0
        %1774 = vmatpush1.msra.mxu0 0.0
        %1775 = vmatprep.subr.mxu0 0.0
        %1776 = vmatpush1.msra.mxu0 0.0
        %1777 = vmatprep.subr.mxu0 0.0
        %1778 = vmatpush1.msra.mxu0 0.0
        %1779 = vmatprep.mubr.f32.mxu0 0.0
        %1780 = vmatmul.mubr.f32.gmra.mrb[0].mxu0 %v1713
        %v1781 = vpop.f32.mrb[0].mxu0
        %v1782 = vadd.f32 0.0, %v1781
        %v1783 = vpop.f32.mrb[0].mxu0
        %1784 = vdwg.mxu0
        %1786 = vrot.lane.b32.xlu0 %v662, 120
        %v1787 = vpop.permute.xlu0 %1786
        %v1790 = vsel %vm706, %v1703, 0
        %1792 = vmatprep.subr.mxu0 0.0
        %1793 = vmatpush1.msra.mxu0 %v1787
        %1794 = vmatprep.subr.mxu0 0.0
        %1795 = vmatpush1.msra.mxu0 0.0
        %1796 = vmatprep.subr.mxu0 0.0
        %1797 = vmatpush1.msra.mxu0 0.0
        %1798 = vmatprep.subr.mxu0 0.0
        %1799 = vmatpush1.msra.mxu0 0.0
        %1800 = vmatprep.subr.mxu0 0.0
        %1801 = vmatpush1.msra.mxu0 0.0
        %1802 = vmatprep.subr.mxu0 0.0
        %1803 = vmatpush1.msra.mxu0 0.0
        %1804 = vmatprep.subr.mxu0 0.0
        %1805 = vmatpush1.msra.mxu0 0.0
        %1806 = vmatprep.subr.mxu0 0.0
        %1807 = vmatpush1.msra.mxu0 0.0
        %1808 = vmatprep.subr.mxu0 0.0
        %1809 = vmatpush1.msra.mxu0 0.0
        %1810 = vmatprep.subr.mxu0 0.0
        %1811 = vmatpush1.msra.mxu0 0.0
        %1812 = vmatprep.subr.mxu0 0.0
        %1813 = vmatpush1.msra.mxu0 0.0
        %1814 = vmatprep.subr.mxu0 0.0
        %1815 = vmatpush1.msra.mxu0 0.0
        %1816 = vmatprep.subr.mxu0 0.0
        %1817 = vmatpush1.msra.mxu0 0.0
        %1818 = vmatprep.subr.mxu0 0.0
        %1819 = vmatpush1.msra.mxu0 0.0
        %1820 = vmatprep.subr.mxu0 0.0
        %1821 = vmatpush1.msra.mxu0 0.0
        %1822 = vmatprep.subr.mxu0 0.0
        %1823 = vmatpush1.msra.mxu0 0.0
        %1824 = vmatprep.subr.mxu0 0.0
        %1825 = vmatpush1.msra.mxu0 0.0
        %1826 = vmatprep.subr.mxu0 0.0
        %1827 = vmatpush1.msra.mxu0 0.0
        %1828 = vmatprep.subr.mxu0 0.0
        %1829 = vmatpush1.msra.mxu0 0.0
        %1830 = vmatprep.subr.mxu0 0.0
        %1831 = vmatpush1.msra.mxu0 0.0
        %1832 = vmatprep.subr.mxu0 0.0
        %1833 = vmatpush1.msra.mxu0 0.0
        %1834 = vmatprep.subr.mxu0 0.0
        %1835 = vmatpush1.msra.mxu0 0.0
        %1836 = vmatprep.subr.mxu0 0.0
        %1837 = vmatpush1.msra.mxu0 0.0
        %1838 = vmatprep.subr.mxu0 0.0
        %1839 = vmatpush1.msra.mxu0 0.0
        %1840 = vmatprep.subr.mxu0 0.0
        %1841 = vmatpush1.msra.mxu0 0.0
        %1842 = vmatprep.subr.mxu0 0.0
        %1843 = vmatpush1.msra.mxu0 0.0
        %1844 = vmatprep.subr.mxu0 0.0
        %1845 = vmatpush1.msra.mxu0 0.0
        %1846 = vmatprep.subr.mxu0 0.0
        %1847 = vmatpush1.msra.mxu0 0.0
        %1848 = vmatprep.subr.mxu0 0.0
        %1849 = vmatpush1.msra.mxu0 0.0
        %1850 = vmatprep.subr.mxu0 0.0
        %1851 = vmatpush1.msra.mxu0 0.0
        %1852 = vmatprep.subr.mxu0 0.0
        %1853 = vmatpush1.msra.mxu0 0.0
        %1854 = vmatprep.subr.mxu0 0.0
        %1855 = vmatpush1.msra.mxu0 0.0
        %1856 = vmatprep.mubr.f32.mxu0 0.0
        %1857 = vmatmul.mubr.f32.gmra.mrb[0].mxu0 %v1790
        %v1858 = vpop.f32.mrb[0].mxu0
        %v1859 = vadd.f32 0.0, %v1858
        %v1860 = vpop.f32.mrb[0].mxu0
        %1861 = vdwg.mxu0
        %1863 = vrot.lane.b32.xlu0 %v667, 120
        %v1864 = vpop.permute.xlu0 %1863
        %v1867 = vsel %vm706, %v1705, 0
        %1869 = vmatprep.subr.mxu0 0.0
        %1870 = vmatpush1.msra.mxu0 %v1864
        %1871 = vmatprep.subr.mxu0 0.0
        %1872 = vmatpush1.msra.mxu0 0.0
        %1873 = vmatprep.subr.mxu0 0.0
        %1874 = vmatpush1.msra.mxu0 0.0
        %1875 = vmatprep.subr.mxu0 0.0
        %1876 = vmatpush1.msra.mxu0 0.0
        %1877 = vmatprep.subr.mxu0 0.0
        %1878 = vmatpush1.msra.mxu0 0.0
        %1879 = vmatprep.subr.mxu0 0.0
        %1880 = vmatpush1.msra.mxu0 0.0
        %1881 = vmatprep.subr.mxu0 0.0
        %1882 = vmatpush1.msra.mxu0 0.0
        %1883 = vmatprep.subr.mxu0 0.0
        %1884 = vmatpush1.msra.mxu0 0.0
        %1885 = vmatprep.subr.mxu0 0.0
        %1886 = vmatpush1.msra.mxu0 0.0
        %1887 = vmatprep.subr.mxu0 0.0
        %1888 = vmatpush1.msra.mxu0 0.0
        %1889 = vmatprep.subr.mxu0 0.0
        %1890 = vmatpush1.msra.mxu0 0.0
        %1891 = vmatprep.subr.mxu0 0.0
        %1892 = vmatpush1.msra.mxu0 0.0
        %1893 = vmatprep.subr.mxu0 0.0
        %1894 = vmatpush1.msra.mxu0 0.0
        %1895 = vmatprep.subr.mxu0 0.0
        %1896 = vmatpush1.msra.mxu0 0.0
        %1897 = vmatprep.subr.mxu0 0.0
        %1898 = vmatpush1.msra.mxu0 0.0
        %1899 = vmatprep.subr.mxu0 0.0
        %1900 = vmatpush1.msra.mxu0 0.0
        %1901 = vmatprep.subr.mxu0 0.0
        %1902 = vmatpush1.msra.mxu0 0.0
        %1903 = vmatprep.subr.mxu0 0.0
        %1904 = vmatpush1.msra.mxu0 0.0
        %1905 = vmatprep.subr.mxu0 0.0
        %1906 = vmatpush1.msra.mxu0 0.0
        %1907 = vmatprep.subr.mxu0 0.0
        %1908 = vmatpush1.msra.mxu0 0.0
        %1909 = vmatprep.subr.mxu0 0.0
        %1910 = vmatpush1.msra.mxu0 0.0
        %1911 = vmatprep.subr.mxu0 0.0
        %1912 = vmatpush1.msra.mxu0 0.0
        %1913 = vmatprep.subr.mxu0 0.0
        %1914 = vmatpush1.msra.mxu0 0.0
        %1915 = vmatprep.subr.mxu0 0.0
        %1916 = vmatpush1.msra.mxu0 0.0
        %1917 = vmatprep.subr.mxu0 0.0
        %1918 = vmatpush1.msra.mxu0 0.0
        %1919 = vmatprep.subr.mxu0 0.0
        %1920 = vmatpush1.msra.mxu0 0.0
        %1921 = vmatprep.subr.mxu0 0.0
        %1922 = vmatpush1.msra.mxu0 0.0
        %1923 = vmatprep.subr.mxu0 0.0
        %1924 = vmatpush1.msra.mxu0 0.0
        %1925 = vmatprep.subr.mxu0 0.0
        %1926 = vmatpush1.msra.mxu0 0.0
        %1927 = vmatprep.subr.mxu0 0.0
        %1928 = vmatpush1.msra.mxu0 0.0
        %1929 = vmatprep.subr.mxu0 0.0
        %1930 = vmatpush1.msra.mxu0 0.0
        %1931 = vmatprep.subr.mxu0 0.0
        %1932 = vmatpush1.msra.mxu0 0.0
        %1933 = vmatprep.mubr.f32.mxu0 0.0
        %1934 = vmatmul.mubr.f32.gmra.mrb[0].mxu0 %v1867
        %v1935 = vpop.f32.mrb[0].mxu0
        %v1936 = vadd.f32 0.0, %v1935
        %v1937 = vpop.f32.mrb[0].mxu0
        %1938 = vdwg.mxu0
        %1940 = vrot.lane.b32.xlu0 %v672, 120
        %v1941 = vpop.permute.xlu0 %1940
        %v1944 = vsel %vm706, %v1707, 0
        %1946 = vmatprep.subr.mxu0 0.0
        %1947 = vmatpush1.msra.mxu0 %v1941
        %1948 = vmatprep.subr.mxu0 0.0
        %1949 = vmatpush1.msra.mxu0 0.0
        %1950 = vmatprep.subr.mxu0 0.0
        %1951 = vmatpush1.msra.mxu0 0.0
        %1952 = vmatprep.subr.mxu0 0.0
        %1953 = vmatpush1.msra.mxu0 0.0
        %1954 = vmatprep.subr.mxu0 0.0
        %1955 = vmatpush1.msra.mxu0 0.0
        %1956 = vmatprep.subr.mxu0 0.0
        %1957 = vmatpush1.msra.mxu0 0.0
        %1958 = vmatprep.subr.mxu0 0.0
        %1959 = vmatpush1.msra.mxu0 0.0
        %1960 = vmatprep.subr.mxu0 0.0
        %1961 = vmatpush1.msra.mxu0 0.0
        %1962 = vmatprep.subr.mxu0 0.0
        %1963 = vmatpush1.msra.mxu0 0.0
        %1964 = vmatprep.subr.mxu0 0.0
        %1965 = vmatpush1.msra.mxu0 0.0
        %1966 = vmatprep.subr.mxu0 0.0
        %1967 = vmatpush1.msra.mxu0 0.0
        %1968 = vmatprep.subr.mxu0 0.0
        %1969 = vmatpush1.msra.mxu0 0.0
        %1970 = vmatprep.subr.mxu0 0.0
        %1971 = vmatpush1.msra.mxu0 0.0
        %1972 = vmatprep.subr.mxu0 0.0
        %1973 = vmatpush1.msra.mxu0 0.0
        %1974 = vmatprep.subr.mxu0 0.0
        %1975 = vmatpush1.msra.mxu0 0.0
        %1976 = vmatprep.subr.mxu0 0.0
        %1977 = vmatpush1.msra.mxu0 0.0
        %1978 = vmatprep.subr.mxu0 0.0
        %1979 = vmatpush1.msra.mxu0 0.0
        %1980 = vmatprep.subr.mxu0 0.0
        %1981 = vmatpush1.msra.mxu0 0.0
        %1982 = vmatprep.subr.mxu0 0.0
        %1983 = vmatpush1.msra.mxu0 0.0
        %1984 = vmatprep.subr.mxu0 0.0
        %1985 = vmatpush1.msra.mxu0 0.0
        %1986 = vmatprep.subr.mxu0 0.0
        %1987 = vmatpush1.msra.mxu0 0.0
        %1988 = vmatprep.subr.mxu0 0.0
        %1989 = vmatpush1.msra.mxu0 0.0
        %1990 = vmatprep.subr.mxu0 0.0
        %1991 = vmatpush1.msra.mxu0 0.0
        %1992 = vmatprep.subr.mxu0 0.0
        %1993 = vmatpush1.msra.mxu0 0.0
        %1994 = vmatprep.subr.mxu0 0.0
        %1995 = vmatpush1.msra.mxu0 0.0
        %1996 = vmatprep.subr.mxu0 0.0
        %1997 = vmatpush1.msra.mxu0 0.0
        %1998 = vmatprep.subr.mxu0 0.0
        %1999 = vmatpush1.msra.mxu0 0.0
        %2000 = vmatprep.subr.mxu0 0.0
        %2001 = vmatpush1.msra.mxu0 0.0
        %2002 = vmatprep.subr.mxu0 0.0
        %2003 = vmatpush1.msra.mxu0 0.0
        %2004 = vmatprep.subr.mxu0 0.0
        %2005 = vmatpush1.msra.mxu0 0.0
        %2006 = vmatprep.subr.mxu0 0.0
        %2007 = vmatpush1.msra.mxu0 0.0
        %2008 = vmatprep.subr.mxu0 0.0
        %2009 = vmatpush1.msra.mxu0 0.0
        %2010 = vmatprep.mubr.f32.mxu0 0.0
        %2011 = vmatmul.mubr.f32.gmra.mrb[0].mxu0 %v1944
        %v2012 = vpop.f32.mrb[0].mxu0
        %v2013 = vadd.f32 0.0, %v2012
        %v2014 = vpop.f32.mrb[0].mxu0
        %2015 = vdwg.mxu0
        %2016 = vrot.lane.b32.xlu0 %v675, 112
        %v2017 = vpop.permute.xlu0 %2016
        %2018 = vrot.lane.b32.xlu0 %v549, 80
        %v2019 = vpop.permute.xlu0 %2018
        %v2020 = vsel %vm706, %v2017, 0
        %v2022 = vsel %vm706, %v2019, 0
        %2024 = vmatprep.subr.mxu0 0.0
        %2025 = vmatpush1.xpose.msra.mxu0 %v2022
        %2026 = vmatprep.subr.mxu0 0.0
        %2027 = vmatpush1.xpose.msra.mxu0 0.0
        %2028 = vmatprep.subr.mxu0 0.0
        %2029 = vmatpush1.xpose.msra.mxu0 0.0
        %2030 = vmatprep.subr.mxu0 0.0
        %2031 = vmatpush1.xpose.msra.mxu0 0.0
        %2032 = vmatprep.subr.mxu0 0.0
        %2033 = vmatpush1.xpose.msra.mxu0 0.0
        %2034 = vmatprep.subr.mxu0 0.0
        %2035 = vmatpush1.xpose.msra.mxu0 0.0
        %2036 = vmatprep.subr.mxu0 0.0
        %2037 = vmatpush1.xpose.msra.mxu0 0.0
        %2038 = vmatprep.subr.mxu0 0.0
        %2039 = vmatpush1.xpose.msra.mxu0 0.0
        %2040 = vmatprep.subr.mxu0 0.0
        %2041 = vmatpush1.xpose.msra.mxu0 0.0
        %2042 = vmatprep.subr.mxu0 0.0
        %2043 = vmatpush1.xpose.msra.mxu0 0.0
        %2044 = vmatprep.subr.mxu0 0.0
        %2045 = vmatpush1.xpose.msra.mxu0 0.0
        %2046 = vmatprep.subr.mxu0 0.0
        %2047 = vmatpush1.xpose.msra.mxu0 0.0
        %2048 = vmatprep.subr.mxu0 0.0
        %2049 = vmatpush1.xpose.msra.mxu0 0.0
        %2050 = vmatprep.subr.mxu0 0.0
        %2051 = vmatpush1.xpose.msra.mxu0 0.0
        %2052 = vmatprep.subr.mxu0 0.0
        %2053 = vmatpush1.xpose.msra.mxu0 0.0
        %2054 = vmatprep.subr.mxu0 0.0
        %2055 = vmatpush1.xpose.msra.mxu0 0.0
        %2056 = vmatprep.subr.mxu0 0.0
        %2057 = vmatpush1.xpose.msra.mxu0 0.0
        %2058 = vmatprep.subr.mxu0 0.0
        %2059 = vmatpush1.xpose.msra.mxu0 0.0
        %2060 = vmatprep.subr.mxu0 0.0
        %2061 = vmatpush1.xpose.msra.mxu0 0.0
        %2062 = vmatprep.subr.mxu0 0.0
        %2063 = vmatpush1.xpose.msra.mxu0 0.0
        %2064 = vmatprep.subr.mxu0 0.0
        %2065 = vmatpush1.xpose.msra.mxu0 0.0
        %2066 = vmatprep.subr.mxu0 0.0
        %2067 = vmatpush1.xpose.msra.mxu0 0.0
        %2068 = vmatprep.subr.mxu0 0.0
        %2069 = vmatpush1.xpose.msra.mxu0 0.0
        %2070 = vmatprep.subr.mxu0 0.0
        %2071 = vmatpush1.xpose.msra.mxu0 0.0
        %2072 = vmatprep.subr.mxu0 0.0
        %2073 = vmatpush1.xpose.msra.mxu0 0.0
        %2074 = vmatprep.subr.mxu0 0.0
        %2075 = vmatpush1.xpose.msra.mxu0 0.0
        %2076 = vmatprep.subr.mxu0 0.0
        %2077 = vmatpush1.xpose.msra.mxu0 0.0
        %2078 = vmatprep.subr.mxu0 0.0
        %2079 = vmatpush1.xpose.msra.mxu0 0.0
        %2080 = vmatprep.subr.mxu0 0.0
        %2081 = vmatpush1.xpose.msra.mxu0 0.0
        %2082 = vmatprep.subr.mxu0 0.0
        %2083 = vmatpush1.xpose.msra.mxu0 0.0
        %2084 = vmatprep.subr.mxu0 0.0
        %2085 = vmatpush1.xpose.msra.mxu0 0.0
        %2086 = vmatprep.subr.mxu0 0.0
        %2087 = vmatpush1.xpose.msra.mxu0 0.0
        %2088 = vmatprep.mubr.f32.mxu0 0.0
        %2089 = vmatmul.mubr.f32.gmra.mrb[0].mxu0 %v2020
        %v2090 = vpop.f32.mrb[0].mxu0
        %v2091 = vadd.f32 %v686, %v2090
        %v2092 = vpop.f32.mrb[0].mxu0
        %2093 = vdwg.mxu0
        %2094 = vrot.lane.b32.xlu0 %v676, 112
        %v2095 = vpop.permute.xlu0 %2094
        %2096 = vrot.lane.b32.xlu0 %v554, 80
        %v2097 = vpop.permute.xlu0 %2096
        %v2098 = vsel %vm706, %v2095, 0
        %v2100 = vsel %vm706, %v2097, 0
        %2102 = vmatprep.subr.mxu0 0.0
        %2103 = vmatpush1.xpose.msra.mxu0 %v2100
        %2104 = vmatprep.subr.mxu0 0.0
        %2105 = vmatpush1.xpose.msra.mxu0 0.0
        %2106 = vmatprep.subr.mxu0 0.0
        %2107 = vmatpush1.xpose.msra.mxu0 0.0
        %2108 = vmatprep.subr.mxu0 0.0
        %2109 = vmatpush1.xpose.msra.mxu0 0.0
        %2110 = vmatprep.subr.mxu0 0.0
        %2111 = vmatpush1.xpose.msra.mxu0 0.0
        %2112 = vmatprep.subr.mxu0 0.0
        %2113 = vmatpush1.xpose.msra.mxu0 0.0
        %2114 = vmatprep.subr.mxu0 0.0
        %2115 = vmatpush1.xpose.msra.mxu0 0.0
        %2116 = vmatprep.subr.mxu0 0.0
        %2117 = vmatpush1.xpose.msra.mxu0 0.0
        %2118 = vmatprep.subr.mxu0 0.0
        %2119 = vmatpush1.xpose.msra.mxu0 0.0
        %2120 = vmatprep.subr.mxu0 0.0
        %2121 = vmatpush1.xpose.msra.mxu0 0.0
        %2122 = vmatprep.subr.mxu0 0.0
        %2123 = vmatpush1.xpose.msra.mxu0 0.0
        %2124 = vmatprep.subr.mxu0 0.0
        %2125 = vmatpush1.xpose.msra.mxu0 0.0
        %2126 = vmatprep.subr.mxu0 0.0
        %2127 = vmatpush1.xpose.msra.mxu0 0.0
        %2128 = vmatprep.subr.mxu0 0.0
        %2129 = vmatpush1.xpose.msra.mxu0 0.0
        %2130 = vmatprep.subr.mxu0 0.0
        %2131 = vmatpush1.xpose.msra.mxu0 0.0
        %2132 = vmatprep.subr.mxu0 0.0
        %2133 = vmatpush1.xpose.msra.mxu0 0.0
        %2134 = vmatprep.subr.mxu0 0.0
        %2135 = vmatpush1.xpose.msra.mxu0 0.0
        %2136 = vmatprep.subr.mxu0 0.0
        %2137 = vmatpush1.xpose.msra.mxu0 0.0
        %2138 = vmatprep.subr.mxu0 0.0
        %2139 = vmatpush1.xpose.msra.mxu0 0.0
        %2140 = vmatprep.subr.mxu0 0.0
        %2141 = vmatpush1.xpose.msra.mxu0 0.0
        %2142 = vmatprep.subr.mxu0 0.0
        %2143 = vmatpush1.xpose.msra.mxu0 0.0
        %2144 = vmatprep.subr.mxu0 0.0
        %2145 = vmatpush1.xpose.msra.mxu0 0.0
        %2146 = vmatprep.subr.mxu0 0.0
        %2147 = vmatpush1.xpose.msra.mxu0 0.0
        %2148 = vmatprep.subr.mxu0 0.0
        %2149 = vmatpush1.xpose.msra.mxu0 0.0
        %2150 = vmatprep.subr.mxu0 0.0
        %2151 = vmatpush1.xpose.msra.mxu0 0.0
        %2152 = vmatprep.subr.mxu0 0.0
        %2153 = vmatpush1.xpose.msra.mxu0 0.0
        %2154 = vmatprep.subr.mxu0 0.0
        %2155 = vmatpush1.xpose.msra.mxu0 0.0
        %2156 = vmatprep.subr.mxu0 0.0
        %2157 = vmatpush1.xpose.msra.mxu0 0.0
        %2158 = vmatprep.subr.mxu0 0.0
        %2159 = vmatpush1.xpose.msra.mxu0 0.0
        %2160 = vmatprep.subr.mxu0 0.0
        %2161 = vmatpush1.xpose.msra.mxu0 0.0
        %2162 = vmatprep.subr.mxu0 0.0
        %2163 = vmatpush1.xpose.msra.mxu0 0.0
        %2164 = vmatprep.subr.mxu0 0.0
        %2165 = vmatpush1.xpose.msra.mxu0 0.0
        %2166 = vmatprep.mubr.f32.mxu0 0.0
        %2167 = vmatmul.mubr.f32.gmra.mrb[0].mxu0 %v2098
        %v2168 = vpop.f32.mrb[0].mxu0
        %v2169 = vadd.f32 %v690, %v2168
        %v2170 = vpop.f32.mrb[0].mxu0
        %2171 = vdwg.mxu0
        %2172 = vrot.lane.b32.xlu0 %v677, 112
        %v2173 = vpop.permute.xlu0 %2172
        %2174 = vrot.lane.b32.xlu0 %v559, 80
        %v2175 = vpop.permute.xlu0 %2174
        %v2176 = vsel %vm706, %v2173, 0
        %v2178 = vsel %vm706, %v2175, 0
        %2180 = vmatprep.subr.mxu0 0.0
        %2181 = vmatpush1.xpose.msra.mxu0 %v2178
        %2182 = vmatprep.subr.mxu0 0.0
        %2183 = vmatpush1.xpose.msra.mxu0 0.0
        %2184 = vmatprep.subr.mxu0 0.0
        %2185 = vmatpush1.xpose.msra.mxu0 0.0
        %2186 = vmatprep.subr.mxu0 0.0
        %2187 = vmatpush1.xpose.msra.mxu0 0.0
        %2188 = vmatprep.subr.mxu0 0.0
        %2189 = vmatpush1.xpose.msra.mxu0 0.0
        %2190 = vmatprep.subr.mxu0 0.0
        %2191 = vmatpush1.xpose.msra.mxu0 0.0
        %2192 = vmatprep.subr.mxu0 0.0
        %2193 = vmatpush1.xpose.msra.mxu0 0.0
        %2194 = vmatprep.subr.mxu0 0.0
        %2195 = vmatpush1.xpose.msra.mxu0 0.0
        %2196 = vmatprep.subr.mxu0 0.0
        %2197 = vmatpush1.xpose.msra.mxu0 0.0
        %2198 = vmatprep.subr.mxu0 0.0
        %2199 = vmatpush1.xpose.msra.mxu0 0.0
        %2200 = vmatprep.subr.mxu0 0.0
        %2201 = vmatpush1.xpose.msra.mxu0 0.0
        %2202 = vmatprep.subr.mxu0 0.0
        %2203 = vmatpush1.xpose.msra.mxu0 0.0
        %2204 = vmatprep.subr.mxu0 0.0
        %2205 = vmatpush1.xpose.msra.mxu0 0.0
        %2206 = vmatprep.subr.mxu0 0.0
        %2207 = vmatpush1.xpose.msra.mxu0 0.0
        %2208 = vmatprep.subr.mxu0 0.0
        %2209 = vmatpush1.xpose.msra.mxu0 0.0
        %2210 = vmatprep.subr.mxu0 0.0
        %2211 = vmatpush1.xpose.msra.mxu0 0.0
        %2212 = vmatprep.subr.mxu0 0.0
        %2213 = vmatpush1.xpose.msra.mxu0 0.0
        %2214 = vmatprep.subr.mxu0 0.0
        %2215 = vmatpush1.xpose.msra.mxu0 0.0
        %2216 = vmatprep.subr.mxu0 0.0
        %2217 = vmatpush1.xpose.msra.mxu0 0.0
        %2218 = vmatprep.subr.mxu0 0.0
        %2219 = vmatpush1.xpose.msra.mxu0 0.0
        %2220 = vmatprep.subr.mxu0 0.0
        %2221 = vmatpush1.xpose.msra.mxu0 0.0
        %2222 = vmatprep.subr.mxu0 0.0
        %2223 = vmatpush1.xpose.msra.mxu0 0.0
        %2224 = vmatprep.subr.mxu0 0.0
        %2225 = vmatpush1.xpose.msra.mxu0 0.0
        %2226 = vmatprep.subr.mxu0 0.0
        %2227 = vmatpush1.xpose.msra.mxu0 0.0
        %2228 = vmatprep.subr.mxu0 0.0
        %2229 = vmatpush1.xpose.msra.mxu0 0.0
        %2230 = vmatprep.subr.mxu0 0.0
        %2231 = vmatpush1.xpose.msra.mxu0 0.0
        %2232 = vmatprep.subr.mxu0 0.0
        %2233 = vmatpush1.xpose.msra.mxu0 0.0
        %2234 = vmatprep.subr.mxu0 0.0
        %2235 = vmatpush1.xpose.msra.mxu0 0.0
        %2236 = vmatprep.subr.mxu0 0.0
        %2237 = vmatpush1.xpose.msra.mxu0 0.0
        %2238 = vmatprep.subr.mxu0 0.0
        %2239 = vmatpush1.xpose.msra.mxu0 0.0
        %2240 = vmatprep.subr.mxu0 0.0
        %2241 = vmatpush1.xpose.msra.mxu0 0.0
        %2242 = vmatprep.subr.mxu0 0.0
        %2243 = vmatpush1.xpose.msra.mxu0 0.0
        %2244 = vmatprep.mubr.f32.mxu0 0.0
        %2245 = vmatmul.mubr.f32.gmra.mrb[0].mxu0 %v2176
        %v2246 = vpop.f32.mrb[0].mxu0
        %v2247 = vadd.f32 %v694, %v2246
        %v2248 = vpop.f32.mrb[0].mxu0
        %2249 = vdwg.mxu0
        %2250 = vrot.lane.b32.xlu0 %v678, 112
        %v2251 = vpop.permute.xlu0 %2250
        %2252 = vrot.lane.b32.xlu0 %v564, 80
        %v2253 = vpop.permute.xlu0 %2252
        %v2254 = vsel %vm706, %v2251, 0
        %v2256 = vsel %vm706, %v2253, 0
        %2258 = vmatprep.subr.mxu0 0.0
        %2259 = vmatpush1.xpose.msra.mxu0 %v2256
        %2260 = vmatprep.subr.mxu0 0.0
        %2261 = vmatpush1.xpose.msra.mxu0 0.0
        %2262 = vmatprep.subr.mxu0 0.0
        %2263 = vmatpush1.xpose.msra.mxu0 0.0
        %2264 = vmatprep.subr.mxu0 0.0
        %2265 = vmatpush1.xpose.msra.mxu0 0.0
        %2266 = vmatprep.subr.mxu0 0.0
        %2267 = vmatpush1.xpose.msra.mxu0 0.0
        %2268 = vmatprep.subr.mxu0 0.0
        %2269 = vmatpush1.xpose.msra.mxu0 0.0
        %2270 = vmatprep.subr.mxu0 0.0
        %2271 = vmatpush1.xpose.msra.mxu0 0.0
        %2272 = vmatprep.subr.mxu0 0.0
        %2273 = vmatpush1.xpose.msra.mxu0 0.0
        %2274 = vmatprep.subr.mxu0 0.0
        %2275 = vmatpush1.xpose.msra.mxu0 0.0
        %2276 = vmatprep.subr.mxu0 0.0
        %2277 = vmatpush1.xpose.msra.mxu0 0.0
        %2278 = vmatprep.subr.mxu0 0.0
        %2279 = vmatpush1.xpose.msra.mxu0 0.0
        %2280 = vmatprep.subr.mxu0 0.0
        %2281 = vmatpush1.xpose.msra.mxu0 0.0
        %2282 = vmatprep.subr.mxu0 0.0
        %2283 = vmatpush1.xpose.msra.mxu0 0.0
        %2284 = vmatprep.subr.mxu0 0.0
        %2285 = vmatpush1.xpose.msra.mxu0 0.0
        %2286 = vmatprep.subr.mxu0 0.0
        %2287 = vmatpush1.xpose.msra.mxu0 0.0
        %2288 = vmatprep.subr.mxu0 0.0
        %2289 = vmatpush1.xpose.msra.mxu0 0.0
        %2290 = vmatprep.subr.mxu0 0.0
        %2291 = vmatpush1.xpose.msra.mxu0 0.0
        %2292 = vmatprep.subr.mxu0 0.0
        %2293 = vmatpush1.xpose.msra.mxu0 0.0
        %2294 = vmatprep.subr.mxu0 0.0
        %2295 = vmatpush1.xpose.msra.mxu0 0.0
        %2296 = vmatprep.subr.mxu0 0.0
        %2297 = vmatpush1.xpose.msra.mxu0 0.0
        %2298 = vmatprep.subr.mxu0 0.0
        %2299 = vmatpush1.xpose.msra.mxu0 0.0
        %2300 = vmatprep.subr.mxu0 0.0
        %2301 = vmatpush1.xpose.msra.mxu0 0.0
        %2302 = vmatprep.subr.mxu0 0.0
        %2303 = vmatpush1.xpose.msra.mxu0 0.0
        %2304 = vmatprep.subr.mxu0 0.0
        %2305 = vmatpush1.xpose.msra.mxu0 0.0
        %2306 = vmatprep.subr.mxu0 0.0
        %2307 = vmatpush1.xpose.msra.mxu0 0.0
        %2308 = vmatprep.subr.mxu0 0.0
        %2309 = vmatpush1.xpose.msra.mxu0 0.0
        %2310 = vmatprep.subr.mxu0 0.0
        %2311 = vmatpush1.xpose.msra.mxu0 0.0
        %2312 = vmatprep.subr.mxu0 0.0
        %2313 = vmatpush1.xpose.msra.mxu0 0.0
        %2314 = vmatprep.subr.mxu0 0.0
        %2315 = vmatpush1.xpose.msra.mxu0 0.0
        %2316 = vmatprep.subr.mxu0 0.0
        %2317 = vmatpush1.xpose.msra.mxu0 0.0
        %2318 = vmatprep.subr.mxu0 0.0
        %2319 = vmatpush1.xpose.msra.mxu0 0.0
        %2320 = vmatprep.subr.mxu0 0.0
        %2321 = vmatpush1.xpose.msra.mxu0 0.0
        %2322 = vmatprep.mubr.f32.mxu0 0.0
        %2323 = vmatmul.mubr.f32.gmra.mrb[0].mxu0 %v2254
        %v2324 = vpop.f32.mrb[0].mxu0
        %v2325 = vadd.f32 %v698, %v2324
        %v2326 = vpop.f32.mrb[0].mxu0
        %2327 = vdwg.mxu0
        %v2328 = vsel %vm706, %v2091, -inf
        %2329 = vmax.xlane.f32.xlu0 %v2328
        %v2330 = vpop.xlane.xlu0 %2329
        %v2331 = vsel %vm706, %v2169, -inf
        %2332 = vmax.xlane.f32.xlu0 %v2331
        %v2333 = vpop.xlane.xlu0 %2332
        %v2334 = vsel %vm706, %v2247, -inf
        %2335 = vmax.xlane.f32.xlu0 %v2334
        %v2336 = vpop.xlane.xlu0 %2335
        %v2337 = vsel %vm706, %v2325, -inf
        %2338 = vmax.xlane.f32.xlu0 %v2337
        %v2339 = vpop.xlane.xlu0 %2338
        %v2340 = vsub.f32 %v2091, %v2330
        %v2341 = vsub.f32 %v2169, %v2333
        %v2342 = vsub.f32 %v2247, %v2336
        %v2343 = vsub.f32 %v2325, %v2339
        %v2344 = vmul.f32 %v2340, 1.442695
        %v2345 = vpow.pop %v2344
        %v2346 = vmul.f32 %v2341, 1.442695
        %v2347 = vpow.pop %v2346
        %v2348 = vmul.f32 %v2342, 1.442695
        %v2349 = vpow.pop %v2348
        %v2350 = vmul.f32 %v2343, 1.442695
        %v2351 = vpow.pop %v2350
        %v2352 = vsel %vm706, %v2345, 0.0
        %2353 = vadd.xlane.f32.xlu0 %v2352
        %v2354 = vpop.xlane.xlu0 %2353
        %v2355 = vsel %vm706, %v2347, 0.0
        %2356 = vadd.xlane.f32.xlu0 %v2355
        %v2357 = vpop.xlane.xlu0 %2356
        %v2358 = vsel %vm706, %v2349, 0.0
        %2359 = vadd.xlane.f32.xlu0 %v2358
        %v2360 = vpop.xlane.xlu0 %2359
        %v2361 = vsel %vm706, %v2351, 0.0
        %2362 = vadd.xlane.f32.xlu0 %v2361
        %v2363 = vpop.xlane.xlu0 %2362
        %v2364 = vrcp.pop %v2354
        %v2365 = vmul.f32 %v2345, %v2364
        %v2366 = vrcp.pop %v2357
        %v2367 = vmul.f32 %v2347, %v2366
        %v2368 = vrcp.pop %v2360
        %v2369 = vmul.f32 %v2349, %v2368
        %v2370 = vrcp.pop %v2363
        %v2371 = vmul.f32 %v2351, %v2370
        %2372 = vrot.lane.b32.xlu0 %v657, 112
        %v2373 = vpop.permute.xlu0 %2372
        %v2376 = vsel %vm706, %v2365, 0
        %2378 = vmatprep.subr.mxu0 0.0
        %2379 = vmatpush1.msra.mxu0 %v2373
        %2380 = vmatprep.subr.mxu0 0.0
        %2381 = vmatpush1.msra.mxu0 0.0
        %2382 = vmatprep.subr.mxu0 0.0
        %2383 = vmatpush1.msra.mxu0 0.0
        %2384 = vmatprep.subr.mxu0 0.0
        %2385 = vmatpush1.msra.mxu0 0.0
        %2386 = vmatprep.subr.mxu0 0.0
        %2387 = vmatpush1.msra.mxu0 0.0
        %2388 = vmatprep.subr.mxu0 0.0
        %2389 = vmatpush1.msra.mxu0 0.0
        %2390 = vmatprep.subr.mxu0 0.0
        %2391 = vmatpush1.msra.mxu0 0.0
        %2392 = vmatprep.subr.mxu0 0.0
        %2393 = vmatpush1.msra.mxu0 0.0
        %2394 = vmatprep.subr.mxu0 0.0
        %2395 = vmatpush1.msra.mxu0 0.0
        %2396 = vmatprep.subr.mxu0 0.0
        %2397 = vmatpush1.msra.mxu0 0.0
        %2398 = vmatprep.subr.mxu0 0.0
        %2399 = vmatpush1.msra.mxu0 0.0
        %2400 = vmatprep.subr.mxu0 0.0
        %2401 = vmatpush1.msra.mxu0 0.0
        %2402 = vmatprep.subr.mxu0 0.0
        %2403 = vmatpush1.msra.mxu0 0.0
        %2404 = vmatprep.subr.mxu0 0.0
        %2405 = vmatpush1.msra.mxu0 0.0
        %2406 = vmatprep.subr.mxu0 0.0
        %2407 = vmatpush1.msra.mxu0 0.0
        %2408 = vmatprep.subr.mxu0 0.0
        %2409 = vmatpush1.msra.mxu0 0.0
        %2410 = vmatprep.subr.mxu0 0.0
        %2411 = vmatpush1.msra.mxu0 0.0
        %2412 = vmatprep.subr.mxu0 0.0
        %2413 = vmatpush1.msra.mxu0 0.0
        %2414 = vmatprep.subr.mxu0 0.0
        %2415 = vmatpush1.msra.mxu0 0.0
        %2416 = vmatprep.subr.mxu0 0.0
        %2417 = vmatpush1.msra.mxu0 0.0
        %2418 = vmatprep.subr.mxu0 0.0
        %2419 = vmatpush1.msra.mxu0 0.0
        %2420 = vmatprep.subr.mxu0 0.0
        %2421 = vmatpush1.msra.mxu0 0.0
        %2422 = vmatprep.subr.mxu0 0.0
        %2423 = vmatpush1.msra.mxu0 0.0
        %2424 = vmatprep.subr.mxu0 0.0
        %2425 = vmatpush1.msra.mxu0 0.0
        %2426 = vmatprep.subr.mxu0 0.0
        %2427 = vmatpush1.msra.mxu0 0.0
        %2428 = vmatprep.subr.mxu0 0.0
        %2429 = vmatpush1.msra.mxu0 0.0
        %2430 = vmatprep.subr.mxu0 0.0
        %2431 = vmatpush1.msra.mxu0 0.0
        %2432 = vmatprep.subr.mxu0 0.0
        %2433 = vmatpush1.msra.mxu0 0.0
        %2434 = vmatprep.subr.mxu0 0.0
        %2435 = vmatpush1.msra.mxu0 0.0
        %2436 = vmatprep.subr.mxu0 0.0
        %2437 = vmatpush1.msra.mxu0 0.0
        %2438 = vmatprep.subr.mxu0 0.0
        %2439 = vmatpush1.msra.mxu0 0.0
        %2440 = vmatprep.subr.mxu0 0.0
        %2441 = vmatpush1.msra.mxu0 0.0
        %2442 = vmatprep.mubr.f32.mxu0 0.0
        %2443 = vmatmul.mubr.f32.gmra.mrb[0].mxu0 %v2376
        %v2444 = vpop.f32.mrb[0].mxu0
        %v2445 = vadd.f32 0.0, %v2444
        %v2446 = vpop.f32.mrb[0].mxu0
        %2447 = vdwg.mxu0
        %2448 = vrot.lane.b32.xlu0 %v662, 112
        %v2449 = vpop.permute.xlu0 %2448
        %v2452 = vsel %vm706, %v2367, 0
        %2454 = vmatprep.subr.mxu0 0.0
        %2455 = vmatpush1.msra.mxu0 %v2449
        %2456 = vmatprep.subr.mxu0 0.0
        %2457 = vmatpush1.msra.mxu0 0.0
        %2458 = vmatprep.subr.mxu0 0.0
        %2459 = vmatpush1.msra.mxu0 0.0
        %2460 = vmatprep.subr.mxu0 0.0
        %2461 = vmatpush1.msra.mxu0 0.0
        %2462 = vmatprep.subr.mxu0 0.0
        %2463 = vmatpush1.msra.mxu0 0.0
        %2464 = vmatprep.subr.mxu0 0.0
        %2465 = vmatpush1.msra.mxu0 0.0
        %2466 = vmatprep.subr.mxu0 0.0
        %2467 = vmatpush1.msra.mxu0 0.0
        %2468 = vmatprep.subr.mxu0 0.0
        %2469 = vmatpush1.msra.mxu0 0.0
        %2470 = vmatprep.subr.mxu0 0.0
        %2471 = vmatpush1.msra.mxu0 0.0
        %2472 = vmatprep.subr.mxu0 0.0
        %2473 = vmatpush1.msra.mxu0 0.0
        %2474 = vmatprep.subr.mxu0 0.0
        %2475 = vmatpush1.msra.mxu0 0.0
        %2476 = vmatprep.subr.mxu0 0.0
        %2477 = vmatpush1.msra.mxu0 0.0
        %2478 = vmatprep.subr.mxu0 0.0
        %2479 = vmatpush1.msra.mxu0 0.0
        %2480 = vmatprep.subr.mxu0 0.0
        %2481 = vmatpush1.msra.mxu0 0.0
        %2482 = vmatprep.subr.mxu0 0.0
        %2483 = vmatpush1.msra.mxu0 0.0
        %2484 = vmatprep.subr.mxu0 0.0
        %2485 = vmatpush1.msra.mxu0 0.0
        %2486 = vmatprep.subr.mxu0 0.0
        %2487 = vmatpush1.msra.mxu0 0.0
        %2488 = vmatprep.subr.mxu0 0.0
        %2489 = vmatpush1.msra.mxu0 0.0
        %2490 = vmatprep.subr.mxu0 0.0
        %2491 = vmatpush1.msra.mxu0 0.0
        %2492 = vmatprep.subr.mxu0 0.0
        %2493 = vmatpush1.msra.mxu0 0.0
        %2494 = vmatprep.subr.mxu0 0.0
        %2495 = vmatpush1.msra.mxu0 0.0
        %2496 = vmatprep.subr.mxu0 0.0
        %2497 = vmatpush1.msra.mxu0 0.0
        %2498 = vmatprep.subr.mxu0 0.0
        %2499 = vmatpush1.msra.mxu0 0.0
        %2500 = vmatprep.subr.mxu0 0.0
        %2501 = vmatpush1.msra.mxu0 0.0
        %2502 = vmatprep.subr.mxu0 0.0
        %2503 = vmatpush1.msra.mxu0 0.0
        %2504 = vmatprep.subr.mxu0 0.0
        %2505 = vmatpush1.msra.mxu0 0.0
        %2506 = vmatprep.subr.mxu0 0.0
        %2507 = vmatpush1.msra.mxu0 0.0
        %2508 = vmatprep.subr.mxu0 0.0
        %2509 = vmatpush1.msra.mxu0 0.0
        %2510 = vmatprep.subr.mxu0 0.0
        %2511 = vmatpush1.msra.mxu0 0.0
        %2512 = vmatprep.subr.mxu0 0.0
        %2513 = vmatpush1.msra.mxu0 0.0
        %2514 = vmatprep.subr.mxu0 0.0
        %2515 = vmatpush1.msra.mxu0 0.0
        %2516 = vmatprep.subr.mxu0 0.0
        %2517 = vmatpush1.msra.mxu0 0.0
        %2518 = vmatprep.mubr.f32.mxu0 0.0
        %2519 = vmatmul.mubr.f32.gmra.mrb[0].mxu0 %v2452
        %v2520 = vpop.f32.mrb[0].mxu0
        %v2521 = vadd.f32 0.0, %v2520
        %v2522 = vpop.f32.mrb[0].mxu0
        %2523 = vdwg.mxu0
        %2524 = vrot.lane.b32.xlu0 %v667, 112
        %v2525 = vpop.permute.xlu0 %2524
        %v2528 = vsel %vm706, %v2369, 0
        %2530 = vmatprep.subr.mxu0 0.0
        %2531 = vmatpush1.msra.mxu0 %v2525
        %2532 = vmatprep.subr.mxu0 0.0
        %2533 = vmatpush1.msra.mxu0 0.0
        %2534 = vmatprep.subr.mxu0 0.0
        %2535 = vmatpush1.msra.mxu0 0.0
        %2536 = vmatprep.subr.mxu0 0.0
        %2537 = vmatpush1.msra.mxu0 0.0
        %2538 = vmatprep.subr.mxu0 0.0
        %2539 = vmatpush1.msra.mxu0 0.0
        %2540 = vmatprep.subr.mxu0 0.0
        %2541 = vmatpush1.msra.mxu0 0.0
        %2542 = vmatprep.subr.mxu0 0.0
        %2543 = vmatpush1.msra.mxu0 0.0
        %2544 = vmatprep.subr.mxu0 0.0
        %2545 = vmatpush1.msra.mxu0 0.0
        %2546 = vmatprep.subr.mxu0 0.0
        %2547 = vmatpush1.msra.mxu0 0.0
        %2548 = vmatprep.subr.mxu0 0.0
        %2549 = vmatpush1.msra.mxu0 0.0
        %2550 = vmatprep.subr.mxu0 0.0
        %2551 = vmatpush1.msra.mxu0 0.0
        %2552 = vmatprep.subr.mxu0 0.0
        %2553 = vmatpush1.msra.mxu0 0.0
        %2554 = vmatprep.subr.mxu0 0.0
        %2555 = vmatpush1.msra.mxu0 0.0
        %2556 = vmatprep.subr.mxu0 0.0
        %2557 = vmatpush1.msra.mxu0 0.0
        %2558 = vmatprep.subr.mxu0 0.0
        %2559 = vmatpush1.msra.mxu0 0.0
        %2560 = vmatprep.subr.mxu0 0.0
        %2561 = vmatpush1.msra.mxu0 0.0
        %2562 = vmatprep.subr.mxu0 0.0
        %2563 = vmatpush1.msra.mxu0 0.0
        %2564 = vmatprep.subr.mxu0 0.0
        %2565 = vmatpush1.msra.mxu0 0.0
        %2566 = vmatprep.subr.mxu0 0.0
        %2567 = vmatpush1.msra.mxu0 0.0
        %2568 = vmatprep.subr.mxu0 0.0
        %2569 = vmatpush1.msra.mxu0 0.0
        %2570 = vmatprep.subr.mxu0 0.0
        %2571 = vmatpush1.msra.mxu0 0.0
        %2572 = vmatprep.subr.mxu0 0.0
        %2573 = vmatpush1.msra.mxu0 0.0
        %2574 = vmatprep.subr.mxu0 0.0
        %2575 = vmatpush1.msra.mxu0 0.0
        %2576 = vmatprep.subr.mxu0 0.0
        %2577 = vmatpush1.msra.mxu0 0.0
        %2578 = vmatprep.subr.mxu0 0.0
        %2579 = vmatpush1.msra.mxu0 0.0
        %2580 = vmatprep.subr.mxu0 0.0
        %2581 = vmatpush1.msra.mxu0 0.0
        %2582 = vmatprep.subr.mxu0 0.0
        %2583 = vmatpush1.msra.mxu0 0.0
        %2584 = vmatprep.subr.mxu0 0.0
        %2585 = vmatpush1.msra.mxu0 0.0
        %2586 = vmatprep.subr.mxu0 0.0
        %2587 = vmatpush1.msra.mxu0 0.0
        %2588 = vmatprep.subr.mxu0 0.0
        %2589 = vmatpush1.msra.mxu0 0.0
        %2590 = vmatprep.subr.mxu0 0.0
        %2591 = vmatpush1.msra.mxu0 0.0
        %2592 = vmatprep.subr.mxu0 0.0
        %2593 = vmatpush1.msra.mxu0 0.0
        %2594 = vmatprep.mubr.f32.mxu0 0.0
        %2595 = vmatmul.mubr.f32.gmra.mrb[0].mxu0 %v2528
        %v2596 = vpop.f32.mrb[0].mxu0
        %v2597 = vadd.f32 0.0, %v2596
        %v2598 = vpop.f32.mrb[0].mxu0
        %2599 = vdwg.mxu0
        %2600 = vrot.lane.b32.xlu0 %v672, 112
        %v2601 = vpop.permute.xlu0 %2600
        %v2604 = vsel %vm706, %v2371, 0
        %2606 = vmatprep.subr.mxu0 0.0
        %2607 = vmatpush1.msra.mxu0 %v2601
        %2608 = vmatprep.subr.mxu0 0.0
        %2609 = vmatpush1.msra.mxu0 0.0
        %2610 = vmatprep.subr.mxu0 0.0
        %2611 = vmatpush1.msra.mxu0 0.0
        %2612 = vmatprep.subr.mxu0 0.0
        %2613 = vmatpush1.msra.mxu0 0.0
        %2614 = vmatprep.subr.mxu0 0.0
        %2615 = vmatpush1.msra.mxu0 0.0
        %2616 = vmatprep.subr.mxu0 0.0
        %2617 = vmatpush1.msra.mxu0 0.0
        %2618 = vmatprep.subr.mxu0 0.0
        %2619 = vmatpush1.msra.mxu0 0.0
        %2620 = vmatprep.subr.mxu0 0.0
        %2621 = vmatpush1.msra.mxu0 0.0
        %2622 = vmatprep.subr.mxu0 0.0
        %2623 = vmatpush1.msra.mxu0 0.0
        %2624 = vmatprep.subr.mxu0 0.0
        %2625 = vmatpush1.msra.mxu0 0.0
        %2626 = vmatprep.subr.mxu0 0.0
        %2627 = vmatpush1.msra.mxu0 0.0
        %2628 = vmatprep.subr.mxu0 0.0
        %2629 = vmatpush1.msra.mxu0 0.0
        %2630 = vmatprep.subr.mxu0 0.0
        %2631 = vmatpush1.msra.mxu0 0.0
        %2632 = vmatprep.subr.mxu0 0.0
        %2633 = vmatpush1.msra.mxu0 0.0
        %2634 = vmatprep.subr.mxu0 0.0
        %2635 = vmatpush1.msra.mxu0 0.0
        %2636 = vmatprep.subr.mxu0 0.0
        %2637 = vmatpush1.msra.mxu0 0.0
        %2638 = vmatprep.subr.mxu0 0.0
        %2639 = vmatpush1.msra.mxu0 0.0
        %2640 = vmatprep.subr.mxu0 0.0
        %2641 = vmatpush1.msra.mxu0 0.0
        %2642 = vmatprep.subr.mxu0 0.0
        %2643 = vmatpush1.msra.mxu0 0.0
        %2644 = vmatprep.subr.mxu0 0.0
        %2645 = vmatpush1.msra.mxu0 0.0
        %2646 = vmatprep.subr.mxu0 0.0
        %2647 = vmatpush1.msra.mxu0 0.0
        %2648 = vmatprep.subr.mxu0 0.0
        %2649 = vmatpush1.msra.mxu0 0.0
        %2650 = vmatprep.subr.mxu0 0.0
        %2651 = vmatpush1.msra.mxu0 0.0
        %2652 = vmatprep.subr.mxu0 0.0
        %2653 = vmatpush1.msra.mxu0 0.0
        %2654 = vmatprep.subr.mxu0 0.0
        %2655 = vmatpush1.msra.mxu0 0.0
        %2656 = vmatprep.subr.mxu0 0.0
        %2657 = vmatpush1.msra.mxu0 0.0
        %2658 = vmatprep.subr.mxu0 0.0
        %2659 = vmatpush1.msra.mxu0 0.0
        %2660 = vmatprep.subr.mxu0 0.0
        %2661 = vmatpush1.msra.mxu0 0.0
        %2662 = vmatprep.subr.mxu0 0.0
        %2663 = vmatpush1.msra.mxu0 0.0
        %2664 = vmatprep.subr.mxu0 0.0
        %2665 = vmatpush1.msra.mxu0 0.0
        %2666 = vmatprep.subr.mxu0 0.0
        %2667 = vmatpush1.msra.mxu0 0.0
        %2668 = vmatprep.subr.mxu0 0.0
        %2669 = vmatpush1.msra.mxu0 0.0
        %2670 = vmatprep.mubr.f32.mxu0 0.0
        %2671 = vmatmul.mubr.f32.gmra.mrb[0].mxu0 %v2604
        %v2672 = vpop.f32.mrb[0].mxu0
        %v2673 = vadd.f32 0.0, %v2672
        %v2674 = vpop.f32.mrb[0].mxu0
        %2675 = vdwg.mxu0
        %2676 = vrot.lane.b32.xlu0 %v675, 104
        %v2677 = vpop.permute.xlu0 %2676
        %2678 = vrot.lane.b32.xlu0 %v549, 72
        %v2679 = vpop.permute.xlu0 %2678
        %v2680 = vsel %vm706, %v2677, 0
        %v2682 = vsel %vm706, %v2679, 0
        %2684 = vmatprep.subr.mxu0 0.0
        %2685 = vmatpush1.xpose.msra.mxu0 %v2682
        %2686 = vmatprep.subr.mxu0 0.0
        %2687 = vmatpush1.xpose.msra.mxu0 0.0
        %2688 = vmatprep.subr.mxu0 0.0
        %2689 = vmatpush1.xpose.msra.mxu0 0.0
        %2690 = vmatprep.subr.mxu0 0.0
        %2691 = vmatpush1.xpose.msra.mxu0 0.0
        %2692 = vmatprep.subr.mxu0 0.0
        %2693 = vmatpush1.xpose.msra.mxu0 0.0
        %2694 = vmatprep.subr.mxu0 0.0
        %2695 = vmatpush1.xpose.msra.mxu0 0.0
        %2696 = vmatprep.subr.mxu0 0.0
        %2697 = vmatpush1.xpose.msra.mxu0 0.0
        %2698 = vmatprep.subr.mxu0 0.0
        %2699 = vmatpush1.xpose.msra.mxu0 0.0
        %2700 = vmatprep.subr.mxu0 0.0
        %2701 = vmatpush1.xpose.msra.mxu0 0.0
        %2702 = vmatprep.subr.mxu0 0.0
        %2703 = vmatpush1.xpose.msra.mxu0 0.0
        %2704 = vmatprep.subr.mxu0 0.0
        %2705 = vmatpush1.xpose.msra.mxu0 0.0
        %2706 = vmatprep.subr.mxu0 0.0
        %2707 = vmatpush1.xpose.msra.mxu0 0.0
        %2708 = vmatprep.subr.mxu0 0.0
        %2709 = vmatpush1.xpose.msra.mxu0 0.0
        %2710 = vmatprep.subr.mxu0 0.0
        %2711 = vmatpush1.xpose.msra.mxu0 0.0
        %2712 = vmatprep.subr.mxu0 0.0
        %2713 = vmatpush1.xpose.msra.mxu0 0.0
        %2714 = vmatprep.subr.mxu0 0.0
        %2715 = vmatpush1.xpose.msra.mxu0 0.0
        %2716 = vmatprep.subr.mxu0 0.0
        %2717 = vmatpush1.xpose.msra.mxu0 0.0
        %2718 = vmatprep.subr.mxu0 0.0
        %2719 = vmatpush1.xpose.msra.mxu0 0.0
        %2720 = vmatprep.subr.mxu0 0.0
        %2721 = vmatpush1.xpose.msra.mxu0 0.0
        %2722 = vmatprep.subr.mxu0 0.0
        %2723 = vmatpush1.xpose.msra.mxu0 0.0
        %2724 = vmatprep.subr.mxu0 0.0
        %2725 = vmatpush1.xpose.msra.mxu0 0.0
        %2726 = vmatprep.subr.mxu0 0.0
        %2727 = vmatpush1.xpose.msra.mxu0 0.0
        %2728 = vmatprep.subr.mxu0 0.0
        %2729 = vmatpush1.xpose.msra.mxu0 0.0
        %2730 = vmatprep.subr.mxu0 0.0
        %2731 = vmatpush1.xpose.msra.mxu0 0.0
        %2732 = vmatprep.subr.mxu0 0.0
        %2733 = vmatpush1.xpose.msra.mxu0 0.0
        %2734 = vmatprep.subr.mxu0 0.0
        %2735 = vmatpush1.xpose.msra.mxu0 0.0
        %2736 = vmatprep.subr.mxu0 0.0
        %2737 = vmatpush1.xpose.msra.mxu0 0.0
        %2738 = vmatprep.subr.mxu0 0.0
        %2739 = vmatpush1.xpose.msra.mxu0 0.0
        %2740 = vmatprep.subr.mxu0 0.0
        %2741 = vmatpush1.xpose.msra.mxu0 0.0
        %2742 = vmatprep.subr.mxu0 0.0
        %2743 = vmatpush1.xpose.msra.mxu0 0.0
        %2744 = vmatprep.subr.mxu0 0.0
        %2745 = vmatpush1.xpose.msra.mxu0 0.0
        %2746 = vmatprep.subr.mxu0 0.0
        %2747 = vmatpush1.xpose.msra.mxu0 0.0
        %2748 = vmatprep.mubr.f32.mxu0 0.0
        %2749 = vmatmul.mubr.f32.gmra.mrb[0].mxu0 %v2680
        %v2750 = vpop.f32.mrb[0].mxu0
        %v2751 = vadd.f32 %v686, %v2750
        %v2752 = vpop.f32.mrb[0].mxu0
        %2753 = vdwg.mxu0
        %2754 = vrot.lane.b32.xlu0 %v676, 104
        %v2755 = vpop.permute.xlu0 %2754
        %2756 = vrot.lane.b32.xlu0 %v554, 72
        %v2757 = vpop.permute.xlu0 %2756
        %v2758 = vsel %vm706, %v2755, 0
        %v2760 = vsel %vm706, %v2757, 0
        %2762 = vmatprep.subr.mxu0 0.0
        %2763 = vmatpush1.xpose.msra.mxu0 %v2760
        %2764 = vmatprep.subr.mxu0 0.0
        %2765 = vmatpush1.xpose.msra.mxu0 0.0
        %2766 = vmatprep.subr.mxu0 0.0
        %2767 = vmatpush1.xpose.msra.mxu0 0.0
        %2768 = vmatprep.subr.mxu0 0.0
        %2769 = vmatpush1.xpose.msra.mxu0 0.0
        %2770 = vmatprep.subr.mxu0 0.0
        %2771 = vmatpush1.xpose.msra.mxu0 0.0
        %2772 = vmatprep.subr.mxu0 0.0
        %2773 = vmatpush1.xpose.msra.mxu0 0.0
        %2774 = vmatprep.subr.mxu0 0.0
        %2775 = vmatpush1.xpose.msra.mxu0 0.0
        %2776 = vmatprep.subr.mxu0 0.0
        %2777 = vmatpush1.xpose.msra.mxu0 0.0
        %2778 = vmatprep.subr.mxu0 0.0
        %2779 = vmatpush1.xpose.msra.mxu0 0.0
        %2780 = vmatprep.subr.mxu0 0.0
        %2781 = vmatpush1.xpose.msra.mxu0 0.0
        %2782 = vmatprep.subr.mxu0 0.0
        %2783 = vmatpush1.xpose.msra.mxu0 0.0
        %2784 = vmatprep.subr.mxu0 0.0
        %2785 = vmatpush1.xpose.msra.mxu0 0.0
        %2786 = vmatprep.subr.mxu0 0.0
        %2787 = vmatpush1.xpose.msra.mxu0 0.0
        %2788 = vmatprep.subr.mxu0 0.0
        %2789 = vmatpush1.xpose.msra.mxu0 0.0
        %2790 = vmatprep.subr.mxu0 0.0
        %2791 = vmatpush1.xpose.msra.mxu0 0.0
        %2792 = vmatprep.subr.mxu0 0.0
        %2793 = vmatpush1.xpose.msra.mxu0 0.0
        %2794 = vmatprep.subr.mxu0 0.0
        %2795 = vmatpush1.xpose.msra.mxu0 0.0
        %2796 = vmatprep.subr.mxu0 0.0
        %2797 = vmatpush1.xpose.msra.mxu0 0.0
        %2798 = vmatprep.subr.mxu0 0.0
        %2799 = vmatpush1.xpose.msra.mxu0 0.0
        %2800 = vmatprep.subr.mxu0 0.0
        %2801 = vmatpush1.xpose.msra.mxu0 0.0
        %2802 = vmatprep.subr.mxu0 0.0
        %2803 = vmatpush1.xpose.msra.mxu0 0.0
        %2804 = vmatprep.subr.mxu0 0.0
        %2805 = vmatpush1.xpose.msra.mxu0 0.0
        %2806 = vmatprep.subr.mxu0 0.0
        %2807 = vmatpush1.xpose.msra.mxu0 0.0
        %2808 = vmatprep.subr.mxu0 0.0
        %2809 = vmatpush1.xpose.msra.mxu0 0.0
        %2810 = vmatprep.subr.mxu0 0.0
        %2811 = vmatpush1.xpose.msra.mxu0 0.0
        %2812 = vmatprep.subr.mxu0 0.0
        %2813 = vmatpush1.xpose.msra.mxu0 0.0
        %2814 = vmatprep.subr.mxu0 0.0
        %2815 = vmatpush1.xpose.msra.mxu0 0.0
        %2816 = vmatprep.subr.mxu0 0.0
        %2817 = vmatpush1.xpose.msra.mxu0 0.0
        %2818 = vmatprep.subr.mxu0 0.0
        %2819 = vmatpush1.xpose.msra.mxu0 0.0
        %2820 = vmatprep.subr.mxu0 0.0
        %2821 = vmatpush1.xpose.msra.mxu0 0.0
        %2822 = vmatprep.subr.mxu0 0.0
        %2823 = vmatpush1.xpose.msra.mxu0 0.0
        %2824 = vmatprep.subr.mxu0 0.0
        %2825 = vmatpush1.xpose.msra.mxu0 0.0
        %2826 = vmatprep.mubr.f32.mxu0 0.0
        %2827 = vmatmul.mubr.f32.gmra.mrb[0].mxu0 %v2758
        %v2828 = vpop.f32.mrb[0].mxu0
        %v2829 = vadd.f32 %v690, %v2828
        %v2830 = vpop.f32.mrb[0].mxu0
        %2831 = vdwg.mxu0
        %2832 = vrot.lane.b32.xlu0 %v677, 104
        %v2833 = vpop.permute.xlu0 %2832
        %2834 = vrot.lane.b32.xlu0 %v559, 72
        %v2835 = vpop.permute.xlu0 %2834
        %v2836 = vsel %vm706, %v2833, 0
        %v2838 = vsel %vm706, %v2835, 0
        %2840 = vmatprep.subr.mxu0 0.0
        %2841 = vmatpush1.xpose.msra.mxu0 %v2838
        %2842 = vmatprep.subr.mxu0 0.0
        %2843 = vmatpush1.xpose.msra.mxu0 0.0
        %2844 = vmatprep.subr.mxu0 0.0
        %2845 = vmatpush1.xpose.msra.mxu0 0.0
        %2846 = vmatprep.subr.mxu0 0.0
        %2847 = vmatpush1.xpose.msra.mxu0 0.0
        %2848 = vmatprep.subr.mxu0 0.0
        %2849 = vmatpush1.xpose.msra.mxu0 0.0
        %2850 = vmatprep.subr.mxu0 0.0
        %2851 = vmatpush1.xpose.msra.mxu0 0.0
        %2852 = vmatprep.subr.mxu0 0.0
        %2853 = vmatpush1.xpose.msra.mxu0 0.0
        %2854 = vmatprep.subr.mxu0 0.0
        %2855 = vmatpush1.xpose.msra.mxu0 0.0
        %2856 = vmatprep.subr.mxu0 0.0
        %2857 = vmatpush1.xpose.msra.mxu0 0.0
        %2858 = vmatprep.subr.mxu0 0.0
        %2859 = vmatpush1.xpose.msra.mxu0 0.0
        %2860 = vmatprep.subr.mxu0 0.0
        %2861 = vmatpush1.xpose.msra.mxu0 0.0
        %2862 = vmatprep.subr.mxu0 0.0
        %2863 = vmatpush1.xpose.msra.mxu0 0.0
        %2864 = vmatprep.subr.mxu0 0.0
        %2865 = vmatpush1.xpose.msra.mxu0 0.0
        %2866 = vmatprep.subr.mxu0 0.0
        %2867 = vmatpush1.xpose.msra.mxu0 0.0
        %2868 = vmatprep.subr.mxu0 0.0
        %2869 = vmatpush1.xpose.msra.mxu0 0.0
        %2870 = vmatprep.subr.mxu0 0.0
        %2871 = vmatpush1.xpose.msra.mxu0 0.0
        %2872 = vmatprep.subr.mxu0 0.0
        %2873 = vmatpush1.xpose.msra.mxu0 0.0
        %2874 = vmatprep.subr.mxu0 0.0
        %2875 = vmatpush1.xpose.msra.mxu0 0.0
        %2876 = vmatprep.subr.mxu0 0.0
        %2877 = vmatpush1.xpose.msra.mxu0 0.0
        %2878 = vmatprep.subr.mxu0 0.0
        %2879 = vmatpush1.xpose.msra.mxu0 0.0
        %2880 = vmatprep.subr.mxu0 0.0
        %2881 = vmatpush1.xpose.msra.mxu0 0.0
        %2882 = vmatprep.subr.mxu0 0.0
        %2883 = vmatpush1.xpose.msra.mxu0 0.0
        %2884 = vmatprep.subr.mxu0 0.0
        %2885 = vmatpush1.xpose.msra.mxu0 0.0
        %2886 = vmatprep.subr.mxu0 0.0
        %2887 = vmatpush1.xpose.msra.mxu0 0.0
        %2888 = vmatprep.subr.mxu0 0.0
        %2889 = vmatpush1.xpose.msra.mxu0 0.0
        %2890 = vmatprep.subr.mxu0 0.0
        %2891 = vmatpush1.xpose.msra.mxu0 0.0
        %2892 = vmatprep.subr.mxu0 0.0
        %2893 = vmatpush1.xpose.msra.mxu0 0.0
        %2894 = vmatprep.subr.mxu0 0.0
        %2895 = vmatpush1.xpose.msra.mxu0 0.0
        %2896 = vmatprep.subr.mxu0 0.0
        %2897 = vmatpush1.xpose.msra.mxu0 0.0
        %2898 = vmatprep.subr.mxu0 0.0
        %2899 = vmatpush1.xpose.msra.mxu0 0.0
        %2900 = vmatprep.subr.mxu0 0.0
        %2901 = vmatpush1.xpose.msra.mxu0 0.0
        %2902 = vmatprep.subr.mxu0 0.0
        %2903 = vmatpush1.xpose.msra.mxu0 0.0
        %2904 = vmatprep.mubr.f32.mxu0 0.0
        %2905 = vmatmul.mubr.f32.gmra.mrb[0].mxu0 %v2836
        %v2906 = vpop.f32.mrb[0].mxu0
        %v2907 = vadd.f32 %v694, %v2906
        %v2908 = vpop.f32.mrb[0].mxu0
        %2909 = vdwg.mxu0
        %2910 = vrot.lane.b32.xlu0 %v678, 104
        %v2911 = vpop.permute.xlu0 %2910
        %2912 = vrot.lane.b32.xlu0 %v564, 72
        %v2913 = vpop.permute.xlu0 %2912
        %v2914 = vsel %vm706, %v2911, 0
        %v2916 = vsel %vm706, %v2913, 0
        %2918 = vmatprep.subr.mxu0 0.0
        %2919 = vmatpush1.xpose.msra.mxu0 %v2916
        %2920 = vmatprep.subr.mxu0 0.0
        %2921 = vmatpush1.xpose.msra.mxu0 0.0
        %2922 = vmatprep.subr.mxu0 0.0
        %2923 = vmatpush1.xpose.msra.mxu0 0.0
        %2924 = vmatprep.subr.mxu0 0.0
        %2925 = vmatpush1.xpose.msra.mxu0 0.0
        %2926 = vmatprep.subr.mxu0 0.0
        %2927 = vmatpush1.xpose.msra.mxu0 0.0
        %2928 = vmatprep.subr.mxu0 0.0
        %2929 = vmatpush1.xpose.msra.mxu0 0.0
        %2930 = vmatprep.subr.mxu0 0.0
        %2931 = vmatpush1.xpose.msra.mxu0 0.0
        %2932 = vmatprep.subr.mxu0 0.0
        %2933 = vmatpush1.xpose.msra.mxu0 0.0
        %2934 = vmatprep.subr.mxu0 0.0
        %2935 = vmatpush1.xpose.msra.mxu0 0.0
        %2936 = vmatprep.subr.mxu0 0.0
        %2937 = vmatpush1.xpose.msra.mxu0 0.0
        %2938 = vmatprep.subr.mxu0 0.0
        %2939 = vmatpush1.xpose.msra.mxu0 0.0
        %2940 = vmatprep.subr.mxu0 0.0
        %2941 = vmatpush1.xpose.msra.mxu0 0.0
        %2942 = vmatprep.subr.mxu0 0.0
        %2943 = vmatpush1.xpose.msra.mxu0 0.0
        %2944 = vmatprep.subr.mxu0 0.0
        %2945 = vmatpush1.xpose.msra.mxu0 0.0
        %2946 = vmatprep.subr.mxu0 0.0
        %2947 = vmatpush1.xpose.msra.mxu0 0.0
        %2948 = vmatprep.subr.mxu0 0.0
        %2949 = vmatpush1.xpose.msra.mxu0 0.0
        %2950 = vmatprep.subr.mxu0 0.0
        %2951 = vmatpush1.xpose.msra.mxu0 0.0
        %2952 = vmatprep.subr.mxu0 0.0
        %2953 = vmatpush1.xpose.msra.mxu0 0.0
        %2954 = vmatprep.subr.mxu0 0.0
        %2955 = vmatpush1.xpose.msra.mxu0 0.0
        %2956 = vmatprep.subr.mxu0 0.0
        %2957 = vmatpush1.xpose.msra.mxu0 0.0
        %2958 = vmatprep.subr.mxu0 0.0
        %2959 = vmatpush1.xpose.msra.mxu0 0.0
        %2960 = vmatprep.subr.mxu0 0.0
        %2961 = vmatpush1.xpose.msra.mxu0 0.0
        %2962 = vmatprep.subr.mxu0 0.0
        %2963 = vmatpush1.xpose.msra.mxu0 0.0
        %2964 = vmatprep.subr.mxu0 0.0
        %2965 = vmatpush1.xpose.msra.mxu0 0.0
        %2966 = vmatprep.subr.mxu0 0.0
        %2967 = vmatpush1.xpose.msra.mxu0 0.0
        %2968 = vmatprep.subr.mxu0 0.0
        %2969 = vmatpush1.xpose.msra.mxu0 0.0
        %2970 = vmatprep.subr.mxu0 0.0
        %2971 = vmatpush1.xpose.msra.mxu0 0.0
        %2972 = vmatprep.subr.mxu0 0.0
        %2973 = vmatpush1.xpose.msra.mxu0 0.0
        %2974 = vmatprep.subr.mxu0 0.0
        %2975 = vmatpush1.xpose.msra.mxu0 0.0
        %2976 = vmatprep.subr.mxu0 0.0
        %2977 = vmatpush1.xpose.msra.mxu0 0.0
        %2978 = vmatprep.subr.mxu0 0.0
        %2979 = vmatpush1.xpose.msra.mxu0 0.0
        %2980 = vmatprep.subr.mxu0 0.0
        %2981 = vmatpush1.xpose.msra.mxu0 0.0
        %2982 = vmatprep.mubr.f32.mxu0 0.0
        %2983 = vmatmul.mubr.f32.gmra.mrb[0].mxu0 %v2914
        %v2984 = vpop.f32.mrb[0].mxu0
        %v2985 = vadd.f32 %v698, %v2984
        %v2986 = vpop.f32.mrb[0].mxu0
        %2987 = vdwg.mxu0
        %v2988 = vsel %vm706, %v2751, -inf
        %2989 = vmax.xlane.f32.xlu0 %v2988
        %v2990 = vpop.xlane.xlu0 %2989
        %v2991 = vsel %vm706, %v2829, -inf
        %2992 = vmax.xlane.f32.xlu0 %v2991
        %v2993 = vpop.xlane.xlu0 %2992
        %v2994 = vsel %vm706, %v2907, -inf
        %2995 = vmax.xlane.f32.xlu0 %v2994
        %v2996 = vpop.xlane.xlu0 %2995
        %v2997 = vsel %vm706, %v2985, -inf
        %2998 = vmax.xlane.f32.xlu0 %v2997
        %v2999 = vpop.xlane.xlu0 %2998
        %v3000 = vsub.f32 %v2751, %v2990
        %v3001 = vsub.f32 %v2829, %v2993
        %v3002 = vsub.f32 %v2907, %v2996
        %v3003 = vsub.f32 %v2985, %v2999
        %v3004 = vmul.f32 %v3000, 1.442695
        %v3005 = vpow.pop %v3004
        %v3006 = vmul.f32 %v3001, 1.442695
        %v3007 = vpow.pop %v3006
        %v3008 = vmul.f32 %v3002, 1.442695
        %v3009 = vpow.pop %v3008
        %v3010 = vmul.f32 %v3003, 1.442695
        %v3011 = vpow.pop %v3010
        %v3012 = vsel %vm706, %v3005, 0.0
        %3013 = vadd.xlane.f32.xlu0 %v3012
        %v3014 = vpop.xlane.xlu0 %3013
        %v3015 = vsel %vm706, %v3007, 0.0
        %3016 = vadd.xlane.f32.xlu0 %v3015
        %v3017 = vpop.xlane.xlu0 %3016
        %v3018 = vsel %vm706, %v3009, 0.0
        %3019 = vadd.xlane.f32.xlu0 %v3018
        %v3020 = vpop.xlane.xlu0 %3019
        %v3021 = vsel %vm706, %v3011, 0.0
        %3022 = vadd.xlane.f32.xlu0 %v3021
        %v3023 = vpop.xlane.xlu0 %3022
        %v3024 = vrcp.pop %v3014
        %v3025 = vmul.f32 %v3005, %v3024
        %v3026 = vrcp.pop %v3017
        %v3027 = vmul.f32 %v3007, %v3026
        %v3028 = vrcp.pop %v3020
        %v3029 = vmul.f32 %v3009, %v3028
        %v3030 = vrcp.pop %v3023
        %v3031 = vmul.f32 %v3011, %v3030
        %3032 = vrot.lane.b32.xlu0 %v657, 104
        %v3033 = vpop.permute.xlu0 %3032
        %v3036 = vsel %vm706, %v3025, 0
        %3038 = vmatprep.subr.mxu0 0.0
        %3039 = vmatpush1.msra.mxu0 %v3033
        %3040 = vmatprep.subr.mxu0 0.0
        %3041 = vmatpush1.msra.mxu0 0.0
        %3042 = vmatprep.subr.mxu0 0.0
        %3043 = vmatpush1.msra.mxu0 0.0
        %3044 = vmatprep.subr.mxu0 0.0
        %3045 = vmatpush1.msra.mxu0 0.0
        %3046 = vmatprep.subr.mxu0 0.0
        %3047 = vmatpush1.msra.mxu0 0.0
        %3048 = vmatprep.subr.mxu0 0.0
        %3049 = vmatpush1.msra.mxu0 0.0
        %3050 = vmatprep.subr.mxu0 0.0
        %3051 = vmatpush1.msra.mxu0 0.0
        %3052 = vmatprep.subr.mxu0 0.0
        %3053 = vmatpush1.msra.mxu0 0.0
        %3054 = vmatprep.subr.mxu0 0.0
        %3055 = vmatpush1.msra.mxu0 0.0
        %3056 = vmatprep.subr.mxu0 0.0
        %3057 = vmatpush1.msra.mxu0 0.0
        %3058 = vmatprep.subr.mxu0 0.0
        %3059 = vmatpush1.msra.mxu0 0.0
        %3060 = vmatprep.subr.mxu0 0.0
        %3061 = vmatpush1.msra.mxu0 0.0
        %3062 = vmatprep.subr.mxu0 0.0
        %3063 = vmatpush1.msra.mxu0 0.0
        %3064 = vmatprep.subr.mxu0 0.0
        %3065 = vmatpush1.msra.mxu0 0.0
        %3066 = vmatprep.subr.mxu0 0.0
        %3067 = vmatpush1.msra.mxu0 0.0
        %3068 = vmatprep.subr.mxu0 0.0
        %3069 = vmatpush1.msra.mxu0 0.0
        %3070 = vmatprep.subr.mxu0 0.0
        %3071 = vmatpush1.msra.mxu0 0.0
        %3072 = vmatprep.subr.mxu0 0.0
        %3073 = vmatpush1.msra.mxu0 0.0
        %3074 = vmatprep.subr.mxu0 0.0
        %3075 = vmatpush1.msra.mxu0 0.0
        %3076 = vmatprep.subr.mxu0 0.0
        %3077 = vmatpush1.msra.mxu0 0.0
        %3078 = vmatprep.subr.mxu0 0.0
        %3079 = vmatpush1.msra.mxu0 0.0
        %3080 = vmatprep.subr.mxu0 0.0
        %3081 = vmatpush1.msra.mxu0 0.0
        %3082 = vmatprep.subr.mxu0 0.0
        %3083 = vmatpush1.msra.mxu0 0.0
        %3084 = vmatprep.subr.mxu0 0.0
        %3085 = vmatpush1.msra.mxu0 0.0
        %3086 = vmatprep.subr.mxu0 0.0
        %3087 = vmatpush1.msra.mxu0 0.0
        %3088 = vmatprep.subr.mxu0 0.0
        %3089 = vmatpush1.msra.mxu0 0.0
        %3090 = vmatprep.subr.mxu0 0.0
        %3091 = vmatpush1.msra.mxu0 0.0
        %3092 = vmatprep.subr.mxu0 0.0
        %3093 = vmatpush1.msra.mxu0 0.0
        %3094 = vmatprep.subr.mxu0 0.0
        %3095 = vmatpush1.msra.mxu0 0.0
        %3096 = vmatprep.subr.mxu0 0.0
        %3097 = vmatpush1.msra.mxu0 0.0
        %3098 = vmatprep.subr.mxu0 0.0
        %3099 = vmatpush1.msra.mxu0 0.0
        %3100 = vmatprep.subr.mxu0 0.0
        %3101 = vmatpush1.msra.mxu0 0.0
        %3102 = vmatprep.mubr.f32.mxu0 0.0
        %3103 = vmatmul.mubr.f32.gmra.mrb[0].mxu0 %v3036
        %v3104 = vpop.f32.mrb[0].mxu0
        %v3105 = vadd.f32 0.0, %v3104
        %v3106 = vpop.f32.mrb[0].mxu0
        %3107 = vdwg.mxu0
        %3108 = vrot.lane.b32.xlu0 %v662, 104
        %v3109 = vpop.permute.xlu0 %3108
        %v3112 = vsel %vm706, %v3027, 0
        %3114 = vmatprep.subr.mxu0 0.0
        %3115 = vmatpush1.msra.mxu0 %v3109
        %3116 = vmatprep.subr.mxu0 0.0
        %3117 = vmatpush1.msra.mxu0 0.0
        %3118 = vmatprep.subr.mxu0 0.0
        %3119 = vmatpush1.msra.mxu0 0.0
        %3120 = vmatprep.subr.mxu0 0.0
        %3121 = vmatpush1.msra.mxu0 0.0
        %3122 = vmatprep.subr.mxu0 0.0
        %3123 = vmatpush1.msra.mxu0 0.0
        %3124 = vmatprep.subr.mxu0 0.0
        %3125 = vmatpush1.msra.mxu0 0.0
        %3126 = vmatprep.subr.mxu0 0.0
        %3127 = vmatpush1.msra.mxu0 0.0
        %3128 = vmatprep.subr.mxu0 0.0
        %3129 = vmatpush1.msra.mxu0 0.0
        %3130 = vmatprep.subr.mxu0 0.0
        %3131 = vmatpush1.msra.mxu0 0.0
        %3132 = vmatprep.subr.mxu0 0.0
        %3133 = vmatpush1.msra.mxu0 0.0
        %3134 = vmatprep.subr.mxu0 0.0
        %3135 = vmatpush1.msra.mxu0 0.0
        %3136 = vmatprep.subr.mxu0 0.0
        %3137 = vmatpush1.msra.mxu0 0.0
        %3138 = vmatprep.subr.mxu0 0.0
        %3139 = vmatpush1.msra.mxu0 0.0
        %3140 = vmatprep.subr.mxu0 0.0
        %3141 = vmatpush1.msra.mxu0 0.0
        %3142 = vmatprep.subr.mxu0 0.0
        %3143 = vmatpush1.msra.mxu0 0.0
        %3144 = vmatprep.subr.mxu0 0.0
        %3145 = vmatpush1.msra.mxu0 0.0
        %3146 = vmatprep.subr.mxu0 0.0
        %3147 = vmatpush1.msra.mxu0 0.0
        %3148 = vmatprep.subr.mxu0 0.0
        %3149 = vmatpush1.msra.mxu0 0.0
        %3150 = vmatprep.subr.mxu0 0.0
        %3151 = vmatpush1.msra.mxu0 0.0
        %3152 = vmatprep.subr.mxu0 0.0
        %3153 = vmatpush1.msra.mxu0 0.0
        %3154 = vmatprep.subr.mxu0 0.0
        %3155 = vmatpush1.msra.mxu0 0.0
        %3156 = vmatprep.subr.mxu0 0.0
        %3157 = vmatpush1.msra.mxu0 0.0
        %3158 = vmatprep.subr.mxu0 0.0
        %3159 = vmatpush1.msra.mxu0 0.0
        %3160 = vmatprep.subr.mxu0 0.0
        %3161 = vmatpush1.msra.mxu0 0.0
        %3162 = vmatprep.subr.mxu0 0.0
        %3163 = vmatpush1.msra.mxu0 0.0
        %3164 = vmatprep.subr.mxu0 0.0
        %3165 = vmatpush1.msra.mxu0 0.0
        %3166 = vmatprep.subr.mxu0 0.0
        %3167 = vmatpush1.msra.mxu0 0.0
        %3168 = vmatprep.subr.mxu0 0.0
        %3169 = vmatpush1.msra.mxu0 0.0
        %3170 = vmatprep.subr.mxu0 0.0
        %3171 = vmatpush1.msra.mxu0 0.0
        %3172 = vmatprep.subr.mxu0 0.0
        %3173 = vmatpush1.msra.mxu0 0.0
        %3174 = vmatprep.subr.mxu0 0.0
        %3175 = vmatpush1.msra.mxu0 0.0
        %3176 = vmatprep.subr.mxu0 0.0
        %3177 = vmatpush1.msra.mxu0 0.0
        %3178 = vmatprep.mubr.f32.mxu0 0.0
        %3179 = vmatmul.mubr.f32.gmra.mrb[0].mxu0 %v3112
        %v3180 = vpop.f32.mrb[0].mxu0
        %v3181 = vadd.f32 0.0, %v3180
        %v3182 = vpop.f32.mrb[0].mxu0
        %3183 = vdwg.mxu0
        %3184 = vrot.lane.b32.xlu0 %v667, 104
        %v3185 = vpop.permute.xlu0 %3184
        %v3188 = vsel %vm706, %v3029, 0
        %3190 = vmatprep.subr.mxu0 0.0
        %3191 = vmatpush1.msra.mxu0 %v3185
        %3192 = vmatprep.subr.mxu0 0.0
        %3193 = vmatpush1.msra.mxu0 0.0
        %3194 = vmatprep.subr.mxu0 0.0
        %3195 = vmatpush1.msra.mxu0 0.0
        %3196 = vmatprep.subr.mxu0 0.0
        %3197 = vmatpush1.msra.mxu0 0.0
        %3198 = vmatprep.subr.mxu0 0.0
        %3199 = vmatpush1.msra.mxu0 0.0
        %3200 = vmatprep.subr.mxu0 0.0
        %3201 = vmatpush1.msra.mxu0 0.0
        %3202 = vmatprep.subr.mxu0 0.0
        %3203 = vmatpush1.msra.mxu0 0.0
        %3204 = vmatprep.subr.mxu0 0.0
        %3205 = vmatpush1.msra.mxu0 0.0
        %3206 = vmatprep.subr.mxu0 0.0
        %3207 = vmatpush1.msra.mxu0 0.0
        %3208 = vmatprep.subr.mxu0 0.0
        %3209 = vmatpush1.msra.mxu0 0.0
        %3210 = vmatprep.subr.mxu0 0.0
        %3211 = vmatpush1.msra.mxu0 0.0
        %3212 = vmatprep.subr.mxu0 0.0
        %3213 = vmatpush1.msra.mxu0 0.0
        %3214 = vmatprep.subr.mxu0 0.0
        %3215 = vmatpush1.msra.mxu0 0.0
        %3216 = vmatprep.subr.mxu0 0.0
        %3217 = vmatpush1.msra.mxu0 0.0
        %3218 = vmatprep.subr.mxu0 0.0
        %3219 = vmatpush1.msra.mxu0 0.0
        %3220 = vmatprep.subr.mxu0 0.0
        %3221 = vmatpush1.msra.mxu0 0.0
        %3222 = vmatprep.subr.mxu0 0.0
        %3223 = vmatpush1.msra.mxu0 0.0
        %3224 = vmatprep.subr.mxu0 0.0
        %3225 = vmatpush1.msra.mxu0 0.0
        %3226 = vmatprep.subr.mxu0 0.0
        %3227 = vmatpush1.msra.mxu0 0.0
        %3228 = vmatprep.subr.mxu0 0.0
        %3229 = vmatpush1.msra.mxu0 0.0
        %3230 = vmatprep.subr.mxu0 0.0
        %3231 = vmatpush1.msra.mxu0 0.0
        %3232 = vmatprep.subr.mxu0 0.0
        %3233 = vmatpush1.msra.mxu0 0.0
        %3234 = vmatprep.subr.mxu0 0.0
        %3235 = vmatpush1.msra.mxu0 0.0
        %3236 = vmatprep.subr.mxu0 0.0
        %3237 = vmatpush1.msra.mxu0 0.0
        %3238 = vmatprep.subr.mxu0 0.0
        %3239 = vmatpush1.msra.mxu0 0.0
        %3240 = vmatprep.subr.mxu0 0.0
        %3241 = vmatpush1.msra.mxu0 0.0
        %3242 = vmatprep.subr.mxu0 0.0
        %3243 = vmatpush1.msra.mxu0 0.0
        %3244 = vmatprep.subr.mxu0 0.0
        %3245 = vmatpush1.msra.mxu0 0.0
        %3246 = vmatprep.subr.mxu0 0.0
        %3247 = vmatpush1.msra.mxu0 0.0
        %3248 = vmatprep.subr.mxu0 0.0
        %3249 = vmatpush1.msra.mxu0 0.0
        %3250 = vmatprep.subr.mxu0 0.0
        %3251 = vmatpush1.msra.mxu0 0.0
        %3252 = vmatprep.subr.mxu0 0.0
        %3253 = vmatpush1.msra.mxu0 0.0
        %3254 = vmatprep.mubr.f32.mxu0 0.0
        %3255 = vmatmul.mubr.f32.gmra.mrb[0].mxu0 %v3188
        %v3256 = vpop.f32.mrb[0].mxu0
        %v3257 = vadd.f32 0.0, %v3256
        %v3258 = vpop.f32.mrb[0].mxu0
        %3259 = vdwg.mxu0
        %3260 = vrot.lane.b32.xlu0 %v672, 104
        %v3261 = vpop.permute.xlu0 %3260
        %v3264 = vsel %vm706, %v3031, 0
        %3266 = vmatprep.subr.mxu0 0.0
        %3267 = vmatpush1.msra.mxu0 %v3261
        %3268 = vmatprep.subr.mxu0 0.0
        %3269 = vmatpush1.msra.mxu0 0.0
        %3270 = vmatprep.subr.mxu0 0.0
        %3271 = vmatpush1.msra.mxu0 0.0
        %3272 = vmatprep.subr.mxu0 0.0
        %3273 = vmatpush1.msra.mxu0 0.0
        %3274 = vmatprep.subr.mxu0 0.0
        %3275 = vmatpush1.msra.mxu0 0.0
        %3276 = vmatprep.subr.mxu0 0.0
        %3277 = vmatpush1.msra.mxu0 0.0
        %3278 = vmatprep.subr.mxu0 0.0
        %3279 = vmatpush1.msra.mxu0 0.0
        %3280 = vmatprep.subr.mxu0 0.0
        %3281 = vmatpush1.msra.mxu0 0.0
        %3282 = vmatprep.subr.mxu0 0.0
        %3283 = vmatpush1.msra.mxu0 0.0
        %3284 = vmatprep.subr.mxu0 0.0
        %3285 = vmatpush1.msra.mxu0 0.0
        %3286 = vmatprep.subr.mxu0 0.0
        %3287 = vmatpush1.msra.mxu0 0.0
        %3288 = vmatprep.subr.mxu0 0.0
        %3289 = vmatpush1.msra.mxu0 0.0
        %3290 = vmatprep.subr.mxu0 0.0
        %3291 = vmatpush1.msra.mxu0 0.0
        %3292 = vmatprep.subr.mxu0 0.0
        %3293 = vmatpush1.msra.mxu0 0.0
        %3294 = vmatprep.subr.mxu0 0.0
        %3295 = vmatpush1.msra.mxu0 0.0
        %3296 = vmatprep.subr.mxu0 0.0
        %3297 = vmatpush1.msra.mxu0 0.0
        %3298 = vmatprep.subr.mxu0 0.0
        %3299 = vmatpush1.msra.mxu0 0.0
        %3300 = vmatprep.subr.mxu0 0.0
        %3301 = vmatpush1.msra.mxu0 0.0
        %3302 = vmatprep.subr.mxu0 0.0
        %3303 = vmatpush1.msra.mxu0 0.0
        %3304 = vmatprep.subr.mxu0 0.0
        %3305 = vmatpush1.msra.mxu0 0.0
        %3306 = vmatprep.subr.mxu0 0.0
        %3307 = vmatpush1.msra.mxu0 0.0
        %3308 = vmatprep.subr.mxu0 0.0
        %3309 = vmatpush1.msra.mxu0 0.0
        %3310 = vmatprep.subr.mxu0 0.0
        %3311 = vmatpush1.msra.mxu0 0.0
        %3312 = vmatprep.subr.mxu0 0.0
        %3313 = vmatpush1.msra.mxu0 0.0
        %3314 = vmatprep.subr.mxu0 0.0
        %3315 = vmatpush1.msra.mxu0 0.0
        %3316 = vmatprep.subr.mxu0 0.0
        %3317 = vmatpush1.msra.mxu0 0.0
        %3318 = vmatprep.subr.mxu0 0.0
        %3319 = vmatpush1.msra.mxu0 0.0
        %3320 = vmatprep.subr.mxu0 0.0
        %3321 = vmatpush1.msra.mxu0 0.0
        %3322 = vmatprep.subr.mxu0 0.0
        %3323 = vmatpush1.msra.mxu0 0.0
        %3324 = vmatprep.subr.mxu0 0.0
        %3325 = vmatpush1.msra.mxu0 0.0
        %3326 = vmatprep.subr.mxu0 0.0
        %3327 = vmatpush1.msra.mxu0 0.0
        %3328 = vmatprep.subr.mxu0 0.0
        %3329 = vmatpush1.msra.mxu0 0.0
        %3330 = vmatprep.mubr.f32.mxu0 0.0
        %3331 = vmatmul.mubr.f32.gmra.mrb[0].mxu0 %v3264
        %v3332 = vpop.f32.mrb[0].mxu0
        %v3333 = vadd.f32 0.0, %v3332
        %v3334 = vpop.f32.mrb[0].mxu0
        %3335 = vdwg.mxu0
        %3340 = vrot.lane.b32.xlu0 %v1782, 8
        %v3341 = vpop.permute.xlu0 %3340
        %3342 = vrot.lane.b32.xlu0 %v1859, 8
        %v3343 = vpop.permute.xlu0 %3342
        %3344 = vrot.lane.b32.xlu0 %v1936, 8
        %v3345 = vpop.permute.xlu0 %3344
        %3346 = vrot.lane.b32.xlu0 %v2013, 8
        %v3347 = vpop.permute.xlu0 %3346
        %3356 = vrot.lane.b32.xlu0 %v2445, 16
        %v3357 = vpop.permute.xlu0 %3356
        %3358 = vrot.lane.b32.xlu0 %v2521, 16
        %v3359 = vpop.permute.xlu0 %3358
        %3360 = vrot.lane.b32.xlu0 %v2597, 16
        %v3361 = vpop.permute.xlu0 %3360
        %3362 = vrot.lane.b32.xlu0 %v2673, 16
        %v3363 = vpop.permute.xlu0 %3362
        %3372 = vrot.lane.b32.xlu0 %v3105, 24
        %v3373 = vpop.permute.xlu0 %3372
        %3374 = vrot.lane.b32.xlu0 %v3181, 24
        %v3375 = vpop.permute.xlu0 %3374
        %3376 = vrot.lane.b32.xlu0 %v3257, 24
        %v3377 = vpop.permute.xlu0 %3376
        %3378 = vrot.lane.b32.xlu0 %v3333, 24
        %v3379 = vpop.permute.xlu0 %3378
        %v3384 = vsel %vm706, %v1130, %v3341
        %v3385 = vsel %vm706, %v1203, %v3343
        %v3386 = vsel %vm706, %v1276, %v3345
        %v3387 = vsel %vm706, %v1349, %v3347
        %vm3388 = vcmask 130048
        %v3389 = vsel %vm3388, %v3384, %v3357
        %v3390 = vsel %vm3388, %v3385, %v3359
        %v3391 = vsel %vm3388, %v3386, %v3361
        %v3392 = vsel %vm3388, %v3387, %v3363
        %vm3393 = vcmask 195584
        %v3394 = vsel %vm3393, %v3389, %v3373
        %v3395 = vsel %vm3393, %v3390, %v3375
        %v3396 = vsel %vm3393, %v3391, %v3377
        %v3397 = vsel %vm3393, %v3392, %v3379
        %v3398 = vld [vmem:[#allocation8] sm:$0xff]
        %v3399 = vld [vmem:[#allocation8 + $0x8] sm:$0xff]
        %v3400 = vld [vmem:[#allocation8 + $0x10] sm:$0xff]
        %v3401 = vld [vmem:[#allocation8 + $0x18] sm:$0xff]
        %v3402 = vld [vmem:[%s8] sm:$0x1]
        %v3404 = vlaneseq
        %v3405 = vshrl.u32 %v3404, 7
        %v3406 = vsub.s32 0, %v3405
        %v3407 = vrot.slane %v3402, %v3406
        %v3410 = vsel %vm469, %v3394, 0
        %v3413 = vsel %vm469, %v3395, 0
        %v3416 = vsel %vm469, %v3396, 0
        %v3419 = vsel %vm469, %v3397, 0
        %3421 = vmatprep.subr.mxu0 0.0
        %3422 = vmatpush1.msra.mxu0 %v3398
        %3423 = vmatprep.subr.mxu0 0.0
        %3424 = vmatpush1.msra.mxu0 %v3399
        %3425 = vmatprep.subr.mxu0 0.0
        %3426 = vmatpush1.msra.mxu0 %v3400
        %3427 = vmatprep.subr.mxu0 0.0
        %3428 = vmatpush1.msra.mxu0 %v3401
        %3429 = vmatprep.subr.mxu0 0.0
        %3430 = vmatpush1.msra.mxu0 0.0
        %3431 = vmatprep.subr.mxu0 0.0
        %3432 = vmatpush1.msra.mxu0 0.0
        %3433 = vmatprep.subr.mxu0 0.0
        %3434 = vmatpush1.msra.mxu0 0.0
        %3435 = vmatprep.subr.mxu0 0.0
        %3436 = vmatpush1.msra.mxu0 0.0
        %3437 = vmatprep.subr.mxu0 0.0
        %3438 = vmatpush1.msra.mxu0 0.0
        %3439 = vmatprep.subr.mxu0 0.0
        %3440 = vmatpush1.msra.mxu0 0.0
        %3441 = vmatprep.subr.mxu0 0.0
        %3442 = vmatpush1.msra.mxu0 0.0
        %3443 = vmatprep.subr.mxu0 0.0
        %3444 = vmatpush1.msra.mxu0 0.0
        %3445 = vmatprep.subr.mxu0 0.0
        %3446 = vmatpush1.msra.mxu0 0.0
        %3447 = vmatprep.subr.mxu0 0.0
        %3448 = vmatpush1.msra.mxu0 0.0
        %3449 = vmatprep.subr.mxu0 0.0
        %3450 = vmatpush1.msra.mxu0 0.0
        %3451 = vmatprep.subr.mxu0 0.0
        %3452 = vmatpush1.msra.mxu0 0.0
        %3453 = vmatprep.subr.mxu0 0.0
        %3454 = vmatpush1.msra.mxu0 0.0
        %3455 = vmatprep.subr.mxu0 0.0
        %3456 = vmatpush1.msra.mxu0 0.0
        %3457 = vmatprep.subr.mxu0 0.0
        %3458 = vmatpush1.msra.mxu0 0.0
        %3459 = vmatprep.subr.mxu0 0.0
        %3460 = vmatpush1.msra.mxu0 0.0
        %3461 = vmatprep.subr.mxu0 0.0
        %3462 = vmatpush1.msra.mxu0 0.0
        %3463 = vmatprep.subr.mxu0 0.0
        %3464 = vmatpush1.msra.mxu0 0.0
        %3465 = vmatprep.subr.mxu0 0.0
        %3466 = vmatpush1.msra.mxu0 0.0
        %3467 = vmatprep.subr.mxu0 0.0
        %3468 = vmatpush1.msra.mxu0 0.0
        %3469 = vmatprep.subr.mxu0 0.0
        %3470 = vmatpush1.msra.mxu0 0.0
        %3471 = vmatprep.subr.mxu0 0.0
        %3472 = vmatpush1.msra.mxu0 0.0
        %3473 = vmatprep.subr.mxu0 0.0
        %3474 = vmatpush1.msra.mxu0 0.0
        %3475 = vmatprep.subr.mxu0 0.0
        %3476 = vmatpush1.msra.mxu0 0.0
        %3477 = vmatprep.subr.mxu0 0.0
        %3478 = vmatpush1.msra.mxu0 0.0
        %3479 = vmatprep.subr.mxu0 0.0
        %3480 = vmatpush1.msra.mxu0 0.0
        %3481 = vmatprep.subr.mxu0 0.0
        %3482 = vmatpush1.msra.mxu0 0.0
        %3483 = vmatprep.subr.mxu0 0.0
        %3484 = vmatpush1.msra.mxu0 0.0
        %3485 = vmatprep.mubr.f32.mxu0 0.0
        %3486 = vmatmul.mubr.f32.gmra.mrb[0].mxu0 %v3410
        %v3487 = vpop.f32.mrb[0].mxu0
        %v3488 = vadd.f32 %v3407, %v3487
        %v3489 = vpop.f32.mrb[0].mxu0
        %3490 = vmatprep.mubr.f32.mxu0 0.0
        %3491 = vmatmul.mubr.f32.gmra.mrb[0].mxu0 %v3413
        %v3492 = vpop.f32.mrb[0].mxu0
        %v3493 = vadd.f32 %v3407, %v3492
        %v3494 = vpop.f32.mrb[0].mxu0
        %3495 = vmatprep.mubr.f32.mxu0 0.0
        %3496 = vmatmul.mubr.f32.gmra.mrb[0].mxu0 %v3416
        %v3497 = vpop.f32.mrb[0].mxu0
        %v3498 = vadd.f32 %v3407, %v3497
        %v3499 = vpop.f32.mrb[0].mxu0
        %3500 = vmatprep.mubr.f32.mxu0 0.0
        %3501 = vmatmul.mubr.f32.gmra.mrb[0].mxu0 %v3419
        %v3502 = vpop.f32.mrb[0].mxu0
        %v3503 = vadd.f32 %v3407, %v3502
        %v3504 = vpop.f32.mrb[0].mxu0
        %3505 = vdwg.mxu0
        %3506 = vst.msk [vmem:[%s433] sm:$0xff] %vm469, %v3488
        %3507 = vst.msk [vmem:[%s433 + $0x8] sm:$0xff] %vm469, %v3493
        %3508 = vst.msk [vmem:[%s433 + $0x10] sm:$0xff] %vm469, %v3498
        %3509 = vst.msk [vmem:[%s433 + $0x18] sm:$0xff] %vm469, %v3503
        %s3510 = sand.u32 %s242, 1
        %s3511 = scalar_lea.sflag [#allocation4], %s3510
        %s3512 = sand.u32 %s242, 1
        %s3513 = smul.addr %s3512, 32
        %s3514 = scalar_lea.vmem [#allocation10], %s3513
        // Predicated region
        $region73: #{tpu_custom_call.1} parent=55 // pred_check
          %p3515 = pneg %p252
        $region74: #{tpu_custom_call.1} parent=55 // pred_check_branch
          %3517 = sbr.rel (%p3515) target = $region76
        $region75: #{tpu_custom_call.1} parent=55 // pred_region
          %s3518 = smul.u32 4, %s30
          %s3520 = ssub.s32 512, 512
          %3521 = vsyncadd %s3511, %s3520
          %s3522 = smul.addr %s3518, 128
          %s3523 = scalar_lea.hbm %s9, %s3522
          %s3524 = sshll.u32 %s3514, 4
          %s3525 = int_to_ptr.vmem [resolvable:$true] %s3524
          %3530 = dma.vmem_to_hbm [thread:$0]  %s3525, 512, %s3523, %s3511, 128, 128, 8
        $region76: #{tpu_custom_call.1} parent=55 // pred_fallthru
          _
      $region56: #{tpu_custom_call.1} parent=5 // pred_fallthru
        _
      %p3531 = scmp.le.s32.totalorder 2, %s25
      // Predicated region
      $region77: #{tpu_custom_call.1} parent=5 // pred_check
        %p3532 = pneg %p3531
      $region78: #{tpu_custom_call.1} parent=5 // pred_check_branch
        %3534 = sbr.rel (%p3532) target = $region80
      $region79: #{tpu_custom_call.1} parent=5 // pred_region
        %s3535 = ssub.s32 %s25, 2
        // Predicated region
        $region81: #{tpu_custom_call.1} parent=79 // pred_check
          %p3536 = pneg %p258
        $region82: #{tpu_custom_call.1} parent=79 // pred_check_branch
          %3538 = sbr.rel (%p3536) target = $region84
        $region83: #{tpu_custom_call.1} parent=79 // pred_region
          %s3539 = sand.u32 %s243, 1
          %s3540 = scalar_lea.sflag [#allocation4], %s3539
          %s3541 = sand.u32 %s243, 1
          %s3542 = smul.addr %s3541, 32
          %s3543 = scalar_lea.vmem [#allocation10], %s3542
          %3544 = dma.done %s3540, 512
        $region84: #{tpu_custom_call.1} parent=79 // pred_fallthru
          _
      $region80: #{tpu_custom_call.1} parent=5 // pred_fallthru
        _
    $region6: #{tpu_custom_call.1} parent=1 // loop_footer
      %s29 = sadd.s32 1, %s25
    $region7: #{tpu_custom_call.1} parent=1 // loop_footer_branch
      %24 = sbr.rel target = $region3
    $region8: #{tpu_custom_call.1} parent=1 // loop_exit
      _
    %3545 = vsyncpa [#allocation3], 1
    %s3546 = scalar_lea.sflag [#allocation3], 1
    %3547 = vsyncpa %s3546, 1
    %3548 = vsyncpa [#allocation6], 1
    %s3549 = scalar_lea.sflag [#allocation6], 1
    %3550 = vsyncpa %s3549, 1
    %3551 = vsyncpa [#allocation9], 1
    %3552 = vsyncpa [#allocation4], 1
    %s3553 = scalar_lea.sflag [#allocation4], 1
    %3554 = vsyncpa %s3553, 1

</llo_original>
